<compile_context>
chip_gen: v6e
topology: v6e:2x2x1
jax: 0.10.0
libtpu: 0.0.40
codegen_flags: <defaults>
</compile_context>

<pallas_src>
import functools
import math

import numpy as np
import jax
import jax.numpy as jnp
from jax.experimental import pallas as pl
from jax.experimental.pallas import tpu as pltpu


# ----------------------------- in-kernel math helpers -----------------------------

def _erf(x):
    # Abramowitz & Stegun 7.1.26 rational approximation, |err| <= 1.5e-7 (f32-exact).
    # Matches torch.nn.functional.gelu (exact erf form) without an erf primitive.
    sign = jnp.where(x >= 0.0, 1.0, -1.0)
    ax = jnp.abs(x)
    t = 1.0 / (1.0 + 0.3275911 * ax)
    poly = ((((1.061405429 * t - 1.453152027) * t + 1.421413741) * t
             - 0.284496736) * t + 0.254829592) * t
    return sign * (1.0 - poly * jnp.exp(-ax * ax))


def _gelu(x):
    return 0.5 * x * (1.0 + _erf(x * (1.0 / math.sqrt(2.0))))


def _layer_norm(x, gamma, beta, eps):
    mu = jnp.mean(x, axis=-1, keepdims=True)
    xc = x - mu
    var = jnp.mean(xc * xc, axis=-1, keepdims=True)
    return xc * jax.lax.rsqrt(var + eps) * gamma + beta


# ----------------------------- fused all-layer encoder kernel -----------------------------

def fused_encoder_kernel(x_ref, mask_ref,
                         wq_ref, bq_ref, wk_ref, bk_ref, wv_ref, bv_ref,
                         wo_ref, bo_ref, g1_ref, b1_ref,
                         w1_ref, bf1_ref, w2_ref, bf2_ref, g2_ref, b2_ref,
                         out_ref, attn_ref,
                         *, n_layer, n_head, d_head, batch, seq, eps):
    BS = batch * seq
    x = x_ref[...]                     # (B*S, D)
    pad = mask_ref[...] > 0.5          # (B, S, S) bool — hoisted, reused by every layer/head

    scale = 1.0 / math.sqrt(d_head)
    neg_inf = jnp.float32(-1e9)

    for l in range(n_layer):           # layers fused: activations never leave VMEM
        head_out = None
        probs = []
        for h in range(n_head):        # leading-axis weight indexing only (no lane slices)
            qh = jnp.dot(x, wq_ref[l, h], preferred_element_type=jnp.float32) + bq_ref[l, h]
            kh = jnp.dot(x, wk_ref[l, h], preferred_element_type=jnp.float32) + bk_ref[l, h]
            vh = jnp.dot(x, wv_ref[l, h], preferred_element_type=jnp.float32) + bv_ref[l, h]
            q3 = qh.reshape(batch, seq, d_head)        # (B, S, dh) — sublane-aligned split
            k3 = kh.reshape(batch, seq, d_head)
            v3 = vh.reshape(batch, seq, d_head)

            scores = jnp.einsum('bqd,bkd->bqk', q3, k3,
                                preferred_element_type=jnp.float32) * scale
            scores = jnp.where(pad, neg_inf, scores)   # masked_fill_(attn_mask, -1e9)
            m = jnp.max(scores, axis=-1, keepdims=True)
            e = jnp.exp(scores - m)
            denom = jnp.sum(e, axis=-1, keepdims=True)
            prob = e * pl.reciprocal(denom, approx=True)   # softmax(dim=-1), EUP recip
            probs.append(prob)

            ctx = jnp.einsum('bqk,bkd->bqd', prob, v3,
                             preferred_element_type=jnp.float32)
            part = jnp.dot(ctx.reshape(BS, d_head), wo_ref[l, h],
                           preferred_element_type=jnp.float32)
            head_out = part if head_out is None else head_out + part

        attn_ref[l] = jnp.stack(probs, axis=1)          # one (B, H, S, S) store per layer

        attn_out = head_out + bo_ref[l]
        # residual + LayerNorm 1
        y = _layer_norm(x + attn_out, g1_ref[l], b1_ref[l], eps)
        # PoswiseFeedForwardNet: conv1d(k=1) == dense matmul; GELU in between
        hdn = _gelu(jnp.dot(y, w1_ref[l], preferred_element_type=jnp.float32) + bf1_ref[l])
        ffn = jnp.dot(hdn, w2_ref[l], preferred_element_type=jnp.float32) + bf2_ref[l]
        # residual + LayerNorm 2
        x = _layer_norm(ffn + y, g2_ref[l], b2_ref[l], eps)

    out_ref[...] = x


# ----------------------------- wrapper: pack weights + single pallas_call -----------------------------

def pack_layer_params(layer_params, n_head, d_head):
    """Stack per-layer param dicts into arrays with a leading layer axis and pre-split
    Q/K/V/O per head so the kernel only ever indexes leading (major) axes."""
    L = len(layer_params)
    D = layer_params[0]["wq"].shape[0]
    H, dh = n_head, d_head

    def stack(name):
        return jnp.stack([p[name] for p in layer_params], axis=0)

    def split_in(w):     # (L, D, H*dh) -> (L, H, D, dh)
        return w.reshape(L, D, H, dh).transpose(0, 2, 1, 3)

    def split_bias(b):   # (L, 1, H*dh) -> (L, H, 1, dh)
        return b.reshape(L, 1, H, dh).transpose(0, 2, 1, 3)

    def split_out(w):    # (L, H*dh, D) -> (L, H, dh, D)
        return w.reshape(L, H, dh, D)

    return dict(
        wq=split_in(stack("wq")), bq=split_bias(stack("bq")),
        wk=split_in(stack("wk")), bk=split_bias(stack("bk")),
        wv=split_in(stack("wv")), bv=split_bias(stack("bv")),
        wo=split_out(stack("wo")), bo=stack("bo"),
        g1=stack("g1"), b1=stack("b1"),
        w1=stack("w1"), bf1=stack("bf1"),
        w2=stack("w2"), bf2=stack("bf2"),
        g2=stack("g2"), b2=stack("b2"),
    )


def second_encoder_layers(x, attn_mask, packed, *, n_layer, n_head, d_head, eps):
    """Run all EncoderLayers in one fused Pallas invocation.
    x: (B,S,D) f32, attn_mask: (B,S,S) f32 (1.0 = pad key)."""
    B, S, D = x.shape
    H = n_head
    BS = B * S

    weight_order = ["wq", "bq", "wk", "bk", "wv", "bv", "wo", "bo",
                    "g1", "b1", "w1", "bf1", "w2", "bf2", "g2", "b2"]
    weights = [packed[name] for name in weight_order]

    kernel = functools.partial(
        fused_encoder_kernel, n_layer=n_layer, n_head=n_head, d_head=d_head,
        batch=B, seq=S, eps=eps)

    n_in = 2 + len(weights)
    vmem_spec = lambda: pl.BlockSpec(memory_space=pltpu.MemorySpace.VMEM)

    out2d, attn = pl.pallas_call(
        kernel,
        out_shape=(jax.ShapeDtypeStruct((BS, D), jnp.float32),
                   jax.ShapeDtypeStruct((n_layer, B, H, S, S), jnp.float32)),
        in_specs=[vmem_spec() for _ in range(n_in)],
        out_specs=(vmem_spec(), vmem_spec()),
    )(x.reshape(BS, D), attn_mask, *weights)

    return out2d.reshape(B, S, D), attn


# ----------------------------- SecondEncoder forward (glue + fused kernel) -----------------------------

def get_sinusoid_encoding_table(n_seq, d_hidn):
    pos = np.arange(n_seq)[:, None].astype(np.float64)
    i = np.arange(d_hidn)[None, :]
    angle = pos / np.power(10000.0, 2.0 * (i // 2) / d_hidn)
    table = np.zeros((n_seq, d_hidn), dtype=np.float64)
    table[:, 0::2] = np.sin(angle[:, 0::2])
    table[:, 1::2] = np.cos(angle[:, 1::2])
    return jnp.asarray(table, dtype=jnp.float32)


def second_encoder_forward(inputs, cls_inputs, layer_params, pos_table,
                           *, i_pad, n_head, d_head, eps):
    B, S, D = inputs.shape
    n_layer = len(layer_params)

    # positions = arange(S)+1, zeroed where cls_inputs == i_pad
    positions = jnp.broadcast_to(jnp.arange(1, S + 1, dtype=cls_inputs.dtype), (B, S))
    positions = jnp.where(cls_inputs == i_pad, 0, positions)
    outputs = inputs + jnp.take(pos_table, positions, axis=0)   # glue: embedding gather

    # get_attn_pad_mask(cls_inputs, cls_inputs, i_pad): (B, S_q, S_k), 1.0 where key is pad
    key_pad = (cls_inputs == i_pad).astype(jnp.float32)          # (B, S)
    attn_mask = jnp.broadcast_to(key_pad[:, None, :], (B, S, S))

    packed = pack_layer_params(layer_params, n_head, d_head)
    outputs, attn_stacked = second_encoder_layers(
        outputs, attn_mask, packed,
        n_layer=n_layer, n_head=n_head, d_head=d_head, eps=eps)

    attn_probs = [attn_stacked[l] for l in range(n_layer)]
    return outputs, attn_probs


# ----------------------------- pure-JAX reference (correctness check only) -----------------------------

def _reference_forward(inputs, cls_inputs, layer_params, pos_table,
                       *, i_pad, n_head, d_head, eps):
    B, S, D = inputs.shape
    positions = jnp.broadcast_to(jnp.arange(1, S + 1, dtype=cls_inputs.dtype), (B, S))
    positions = jnp.where(cls_inputs == i_pad, 0, positions)
    x = inputs + jnp.take(pos_table, positions, axis=0)
    pad = jnp.broadcast_to((cls_inputs == i_pad)[:, None, :], (B, S, S))

    def ln(v, g, b):
        mu = jnp.mean(v, axis=-1, keepdims=True)
        var = jnp.mean((v - mu) ** 2, axis=-1, keepdims=True)
        return (v - mu) * jax.lax.rsqrt(var + eps) * g + b

    attn_probs = []
    for p in layer_params:
        q = (x @ p["wq"] + p["bq"]).reshape(B, S, n_head, d_head).transpose(0, 2, 1, 3)
        k = (x @ p["wk"] + p["bk"]).reshape(B, S, n_head, d_head).transpose(0, 2, 1, 3)
        v = (x @ p["wv"] + p["bv"]).reshape(B, S, n_head, d_head).transpose(0, 2, 1, 3)
        scores = jnp.einsum('bhqd,bhkd->bhqk', q, k) / math.sqrt(d_head)
        scores = jnp.where(pad[:, None, :, :], -1e9, scores)
        prob = jax.nn.softmax(scores, axis=-1)
        attn_probs.append(prob)
        ctx = jnp.einsum('bhqk,bhkd->bhqd', prob, v).transpose(0, 2, 1, 3)
        ctx = ctx.reshape(B, S, n_head * d_head)
        att_out = ctx @ p["wo"] + p["bo"]
        y = ln(x + att_out, p["g1"], p["b1"])
        h = jax.nn.gelu(y @ p["w1"] + p["bf1"], approximate=False)
        f = h @ p["w2"] + p["bf2"]
        x = ln(f + y, p["g2"], p["b2"])
    return x, attn_probs


# ----------------------------- deterministic parameter init -----------------------------

def init_layer_params(key, d_hidn, n_head, d_head):
    d_hd = n_head * d_head
    d_ff = d_hidn * 4
    ks = jax.random.split(key, 10)
    nrm = lambda k, shape: jax.random.normal(k, shape, jnp.float32) * 0.02
    return dict(
        wq=nrm(ks[0], (d_hidn, d_hd)), bq=nrm(ks[1], (1, d_hd)),
        wk=nrm(ks[2], (d_hidn, d_hd)), bk=nrm(ks[3], (1, d_hd)),
        wv=nrm(ks[4], (d_hidn, d_hd)), bv=nrm(ks[5], (1, d_hd)),
        wo=nrm(ks[6], (d_hd, d_hidn)), bo=nrm(ks[7], (1, d_hidn)),
        g1=jnp.ones((1, d_hidn), jnp.float32), b1=jnp.zeros((1, d_hidn), jnp.float32),
        w1=nrm(ks[8], (d_hidn, d_ff)), bf1=jnp.zeros((1, d_ff), jnp.float32),
        w2=nrm(ks[9], (d_ff, d_hidn)), bf2=jnp.zeros((1, d_hidn), jnp.float32),
        g2=jnp.ones((1, d_hidn), jnp.float32), b2=jnp.zeros((1, d_hidn), jnp.float32),
    )


if __name__ == "__main__":
    # config: d_hidn=32, n_head=2, d_head=16, n_enc_seq=8, i_pad=0, layer_norm_epsilon=1e-12
    B, S, D = 2, 8, 32
    n_head, d_head = 2, 16
    n_layer = 2
    i_pad = 0
    eps = 1e-12
    n_enc_vocab = 100

    key = jax.random.PRNGKey(0)
    k_in, k_ids, k_p = jax.random.split(key, 3)

    # SecondEncoder takes already-embedded float `inputs` plus integer `cls_inputs` token ids.
    inputs = jax.random.normal(k_in, (B, S, D), jnp.float32)
    cls_inputs = jax.random.randint(k_ids, (B, S), 1, n_enc_vocab, dtype=jnp.int32)
    cls_inputs = cls_inputs.at[0, -2:].set(i_pad)   # exercise the pad-mask path

    pos_table = get_sinusoid_encoding_table(S + 1, D)
    layer_keys = jax.random.split(k_p, n_layer)
    layer_params = [init_layer_params(k, D, n_head, d_head) for k in layer_keys]

    outputs, attn_probs = second_encoder_forward(
        inputs, cls_inputs, layer_params, pos_table,
        i_pad=i_pad, n_head=n_head, d_head=d_head, eps=eps)

    jax.block_until_ready(outputs)
    for ap in attn_probs:
        jax.block_until_ready(ap)

    assert outputs.shape == (B, S, D)
    assert all(ap.shape == (B, n_head, S, S) for ap in attn_probs)

    # Correctness check against a pure-JAX reference (loose tolerance: kernel uses the EUP
    # approx reciprocal for the softmax denom and an erf approximation for exact-GELU).
    ref_out, ref_probs = _reference_forward(
        inputs, cls_inputs, layer_params, pos_table,
        i_pad=i_pad, n_head=n_head, d_head=d_head, eps=eps)
    assert bool(jnp.all(jnp.isfinite(outputs)))
    assert float(jnp.max(jnp.abs(outputs - ref_out))) < 5e-2
    for ap, rp in zip(attn_probs, ref_probs):
        assert float(jnp.max(jnp.abs(ap - rp))) < 5e-2

    print("KERNEL_OK")
</pallas_src>

<mosaic_0001>
module attributes {stable_mosaic.version = 11 : i64} {
  func.func @fused_encoder_kernel(%arg0: memref<16x32xf32, #tpu.memory_space<vmem>>, %arg1: memref<2x8x8xf32, #tpu.memory_space<vmem>>, %arg2: memref<2x2x32x16xf32, #tpu.memory_space<vmem>>, %arg3: memref<2x2x1x16xf32, #tpu.memory_space<vmem>>, %arg4: memref<2x2x32x16xf32, #tpu.memory_space<vmem>>, %arg5: memref<2x2x1x16xf32, #tpu.memory_space<vmem>>, %arg6: memref<2x2x32x16xf32, #tpu.memory_space<vmem>>, %arg7: memref<2x2x1x16xf32, #tpu.memory_space<vmem>>, %arg8: memref<2x2x16x32xf32, #tpu.memory_space<vmem>>, %arg9: memref<2x1x32xf32, #tpu.memory_space<vmem>>, %arg10: memref<2x1x32xf32, #tpu.memory_space<vmem>>, %arg11: memref<2x1x32xf32, #tpu.memory_space<vmem>>, %arg12: memref<2x32x128xf32, #tpu.memory_space<vmem>>, %arg13: memref<2x1x128xf32, #tpu.memory_space<vmem>>, %arg14: memref<2x128x32xf32, #tpu.memory_space<vmem>>, %arg15: memref<2x1x32xf32, #tpu.memory_space<vmem>>, %arg16: memref<2x1x32xf32, #tpu.memory_space<vmem>>, %arg17: memref<2x1x32xf32, #tpu.memory_space<vmem>>, %arg18: memref<16x32xf32, #tpu.memory_space<vmem>>, %arg19: memref<2x2x2x8x8xf32, #tpu.memory_space<vmem>>) attributes {dimension_semantics = [], scalar_prefetch = 0 : i64, scratch_operands = 0 : i64, tpu.core_type = #tpu.core_type<tc>} {
    %c0 = arith.constant 0 : index
    %c0_0 = arith.constant 0 : index
    %0 = vector.load %arg0[%c0, %c0_0] : memref<16x32xf32, #tpu.memory_space<vmem>>, vector<16x32xf32>
    %c0_1 = arith.constant 0 : index
    %c0_2 = arith.constant 0 : index
    %c0_3 = arith.constant 0 : index
    %1 = vector.load %arg1[%c0_1, %c0_2, %c0_3] : memref<2x8x8xf32, #tpu.memory_space<vmem>>, vector<2x8x8xf32>
    %cst = arith.constant 5.000000e-01 : f32
    %2 = vector.broadcast %cst : f32 to vector<2x8x8xf32>
    %3 = arith.cmpf ogt, %1, %2 : vector<2x8x8xf32>
    %c0_4 = arith.constant 0 : index
    %c0_5 = arith.constant 0 : index
    %c0_6 = arith.constant 0 : index
    %c0_7 = arith.constant 0 : index
    %4 = vector.load %arg2[%c0_4, %c0_5, %c0_6, %c0_7] : memref<2x2x32x16xf32, #tpu.memory_space<vmem>>, vector<1x1x32x16xf32>
    %5 = vector.shape_cast %4 : vector<1x1x32x16xf32> to vector<32x16xf32>
    %cst_8 = arith.constant dense<0.000000e+00> : vector<16x16xf32>
    %6 = tpu.matmul %0, %5, %cst_8 {dimension_numbers = #tpu.dot_dimension_numbers<[1], [0], [0], [1], [0, 0, 1, 1], [], []>} : vector<16x32xf32>, vector<32x16xf32>, vector<16x16xf32> -> vector<16x16xf32>
    %c0_9 = arith.constant 0 : index
    %c0_10 = arith.constant 0 : index
    %c0_11 = arith.constant 0 : index
    %c0_12 = arith.constant 0 : index
    %7 = vector.load %arg3[%c0_9, %c0_10, %c0_11, %c0_12] : memref<2x2x1x16xf32, #tpu.memory_space<vmem>>, vector<1x1x1x16xf32>
    %8 = vector.shape_cast %7 : vector<1x1x1x16xf32> to vector<1x16xf32>
    %9 = vector.broadcast %8 : vector<1x16xf32> to vector<16x16xf32>
    %10 = arith.addf %6, %9 : vector<16x16xf32>
    %c0_13 = arith.constant 0 : index
    %c0_14 = arith.constant 0 : index
    %c0_15 = arith.constant 0 : index
    %c0_16 = arith.constant 0 : index
    %11 = vector.load %arg4[%c0_13, %c0_14, %c0_15, %c0_16] : memref<2x2x32x16xf32, #tpu.memory_space<vmem>>, vector<1x1x32x16xf32>
    %12 = vector.shape_cast %11 : vector<1x1x32x16xf32> to vector<32x16xf32>
    %cst_17 = arith.constant dense<0.000000e+00> : vector<16x16xf32>
    %13 = tpu.matmul %0, %12, %cst_17 {dimension_numbers = #tpu.dot_dimension_numbers<[1], [0], [0], [1], [0, 0, 1, 1], [], []>} : vector<16x32xf32>, vector<32x16xf32>, vector<16x16xf32> -> vector<16x16xf32>
    %c0_18 = arith.constant 0 : index
    %c0_19 = arith.constant 0 : index
    %c0_20 = arith.constant 0 : index
    %c0_21 = arith.constant 0 : index
    %14 = vector.load %arg5[%c0_18, %c0_19, %c0_20, %c0_21] : memref<2x2x1x16xf32, #tpu.memory_space<vmem>>, vector<1x1x1x16xf32>
    %15 = vector.shape_cast %14 : vector<1x1x1x16xf32> to vector<1x16xf32>
    %16 = vector.broadcast %15 : vector<1x16xf32> to vector<16x16xf32>
    %17 = arith.addf %13, %16 : vector<16x16xf32>
    %c0_22 = arith.constant 0 : index
    %c0_23 = arith.constant 0 : index
    %c0_24 = arith.constant 0 : index
    %c0_25 = arith.constant 0 : index
    %18 = vector.load %arg6[%c0_22, %c0_23, %c0_24, %c0_25] : memref<2x2x32x16xf32, #tpu.memory_space<vmem>>, vector<1x1x32x16xf32>
    %19 = vector.shape_cast %18 : vector<1x1x32x16xf32> to vector<32x16xf32>
    %cst_26 = arith.constant dense<0.000000e+00> : vector<16x16xf32>
    %20 = tpu.matmul %0, %19, %cst_26 {dimension_numbers = #tpu.dot_dimension_numbers<[1], [0], [0], [1], [0, 0, 1, 1], [], []>} : vector<16x32xf32>, vector<32x16xf32>, vector<16x16xf32> -> vector<16x16xf32>
    %c0_27 = arith.constant 0 : index
    %c0_28 = arith.constant 0 : index
    %c0_29 = arith.constant 0 : index
    %c0_30 = arith.constant 0 : index
    %21 = vector.load %arg7[%c0_27, %c0_28, %c0_29, %c0_30] : memref<2x2x1x16xf32, #tpu.memory_space<vmem>>, vector<1x1x1x16xf32>
    %22 = vector.shape_cast %21 : vector<1x1x1x16xf32> to vector<1x16xf32>
    %23 = vector.broadcast %22 : vector<1x16xf32> to vector<16x16xf32>
    %24 = arith.addf %20, %23 : vector<16x16xf32>
    %25 = vector.shape_cast %10 : vector<16x16xf32> to vector<2x8x16xf32>
    %26 = vector.shape_cast %17 : vector<16x16xf32> to vector<2x8x16xf32>
    %27 = vector.shape_cast %24 : vector<16x16xf32> to vector<2x8x16xf32>
    "tpu.trace_start"() <{level = 10 : i32, message = "bqd,bkd->bqk"}> : () -> ()
    %cst_31 = arith.constant dense<0.000000e+00> : vector<2x8x8xf32>
    %28 = tpu.matmul %25, %26, %cst_31 {dimension_numbers = #tpu.dot_dimension_numbers<[2], [2], [1], [1], [0, 0, 0, 1, 1, 1], [0], [0]>} : vector<2x8x16xf32>, vector<2x8x16xf32>, vector<2x8x8xf32> -> vector<2x8x8xf32>
    "tpu.trace_stop"() : () -> ()
    %cst_32 = arith.constant 2.500000e-01 : f32
    %29 = vector.broadcast %cst_32 : f32 to vector<2x8x8xf32>
    %30 = arith.mulf %28, %29 : vector<2x8x8xf32>
    %cst_33 = arith.constant -1.000000e+09 : f32
    %31 = vector.broadcast %cst_33 : f32 to vector<2x8x8xf32>
    %32 = arith.select %3, %31, %30 : vector<2x8x8xi1>, vector<2x8x8xf32>
    %cst_34 = arith.constant dense<0xFF800000> : vector<2x8xf32>
    %33 = vector.multi_reduction <maximumf>, %32, %cst_34 [2] : vector<2x8x8xf32> to vector<2x8xf32>
    %34 = vector.shape_cast %33 : vector<2x8xf32> to vector<2x8x1xf32>
    %35 = vector.broadcast %34 : vector<2x8x1xf32> to vector<2x8x8xf32>
    %36 = arith.subf %32, %35 : vector<2x8x8xf32>
    %37 = math.exp %36 : vector<2x8x8xf32>
    %cst_35 = arith.constant dense<0.000000e+00> : vector<2x8xf32>
    %38 = vector.multi_reduction <add>, %37, %cst_35 [2] : vector<2x8x8xf32> to vector<2x8xf32>
    %39 = vector.shape_cast %38 : vector<2x8xf32> to vector<2x8x1xf32>
    %40 = tpu.reciprocal %39 {approx = true} : vector<2x8x1xf32> -> vector<2x8x1xf32>
    %41 = vector.broadcast %40 : vector<2x8x1xf32> to vector<2x8x8xf32>
    %42 = arith.mulf %37, %41 : vector<2x8x8xf32>
    "tpu.trace_start"() <{level = 10 : i32, message = "bqk,bkd->bqd"}> : () -> ()
    %cst_36 = arith.constant dense<0.000000e+00> : vector<2x8x16xf32>
    %43 = tpu.matmul %42, %27, %cst_36 {dimension_numbers = #tpu.dot_dimension_numbers<[2], [1], [1], [2], [0, 0, 0, 1, 1, 2], [0], [0]>} : vector<2x8x8xf32>, vector<2x8x16xf32>, vector<2x8x16xf32> -> vector<2x8x16xf32>
    "tpu.trace_stop"() : () -> ()
    %44 = vector.shape_cast %43 : vector<2x8x16xf32> to vector<16x16xf32>
    %c0_37 = arith.constant 0 : index
    %c0_38 = arith.constant 0 : index
    %c0_39 = arith.constant 0 : index
    %c0_40 = arith.constant 0 : index
    %45 = vector.load %arg8[%c0_37, %c0_38, %c0_39, %c0_40] : memref<2x2x16x32xf32, #tpu.memory_space<vmem>>, vector<1x1x16x32xf32>
    %46 = vector.shape_cast %45 : vector<1x1x16x32xf32> to vector<16x32xf32>
    %cst_41 = arith.constant dense<0.000000e+00> : vector<16x32xf32>
    %47 = tpu.matmul %44, %46, %cst_41 {dimension_numbers = #tpu.dot_dimension_numbers<[1], [0], [0], [1], [0, 0, 1, 1], [], []>} : vector<16x16xf32>, vector<16x32xf32>, vector<16x32xf32> -> vector<16x32xf32>
    %c0_42 = arith.constant 0 : index
    %c1 = arith.constant 1 : index
    %c0_43 = arith.constant 0 : index
    %c0_44 = arith.constant 0 : index
    %48 = vector.load %arg2[%c0_42, %c1, %c0_43, %c0_44] : memref<2x2x32x16xf32, #tpu.memory_space<vmem>>, vector<1x1x32x16xf32>
    %49 = vector.shape_cast %48 : vector<1x1x32x16xf32> to vector<32x16xf32>
    %cst_45 = arith.constant dense<0.000000e+00> : vector<16x16xf32>
    %50 = tpu.matmul %0, %49, %cst_45 {dimension_numbers = #tpu.dot_dimension_numbers<[1], [0], [0], [1], [0, 0, 1, 1], [], []>} : vector<16x32xf32>, vector<32x16xf32>, vector<16x16xf32> -> vector<16x16xf32>
    %c0_46 = arith.constant 0 : index
    %c1_47 = arith.constant 1 : index
    %c0_48 = arith.constant 0 : index
    %c0_49 = arith.constant 0 : index
    %51 = vector.load %arg3[%c0_46, %c1_47, %c0_48, %c0_49] : memref<2x2x1x16xf32, #tpu.memory_space<vmem>>, vector<1x1x1x16xf32>
    %52 = vector.shape_cast %51 : vector<1x1x1x16xf32> to vector<1x16xf32>
    %53 = vector.broadcast %52 : vector<1x16xf32> to vector<16x16xf32>
    %54 = arith.addf %50, %53 : vector<16x16xf32>
    %c0_50 = arith.constant 0 : index
    %c1_51 = arith.constant 1 : index
    %c0_52 = arith.constant 0 : index
    %c0_53 = arith.constant 0 : index
    %55 = vector.load %arg4[%c0_50, %c1_51, %c0_52, %c0_53] : memref<2x2x32x16xf32, #tpu.memory_space<vmem>>, vector<1x1x32x16xf32>
    %56 = vector.shape_cast %55 : vector<1x1x32x16xf32> to vector<32x16xf32>
    %cst_54 = arith.constant dense<0.000000e+00> : vector<16x16xf32>
    %57 = tpu.matmul %0, %56, %cst_54 {dimension_numbers = #tpu.dot_dimension_numbers<[1], [0], [0], [1], [0, 0, 1, 1], [], []>} : vector<16x32xf32>, vector<32x16xf32>, vector<16x16xf32> -> vector<16x16xf32>
    %c0_55 = arith.constant 0 : index
    %c1_56 = arith.constant 1 : index
    %c0_57 = arith.constant 0 : index
    %c0_58 = arith.constant 0 : index
    %58 = vector.load %arg5[%c0_55, %c1_56, %c0_57, %c0_58] : memref<2x2x1x16xf32, #tpu.memory_space<vmem>>, vector<1x1x1x16xf32>
    %59 = vector.shape_cast %58 : vector<1x1x1x16xf32> to vector<1x16xf32>
    %60 = vector.broadcast %59 : vector<1x16xf32> to vector<16x16xf32>
    %61 = arith.addf %57, %60 : vector<16x16xf32>
    %c0_59 = arith.constant 0 : index
    %c1_60 = arith.constant 1 : index
    %c0_61 = arith.constant 0 : index
    %c0_62 = arith.constant 0 : index
    %62 = vector.load %arg6[%c0_59, %c1_60, %c0_61, %c0_62] : memref<2x2x32x16xf32, #tpu.memory_space<vmem>>, vector<1x1x32x16xf32>
    %63 = vector.shape_cast %62 : vector<1x1x32x16xf32> to vector<32x16xf32>
    %cst_63 = arith.constant dense<0.000000e+00> : vector<16x16xf32>
    %64 = tpu.matmul %0, %63, %cst_63 {dimension_numbers = #tpu.dot_dimension_numbers<[1], [0], [0], [1], [0, 0, 1, 1], [], []>} : vector<16x32xf32>, vector<32x16xf32>, vector<16x16xf32> -> vector<16x16xf32>
    %c0_64 = arith.constant 0 : index
    %c1_65 = arith.constant 1 : index
    %c0_66 = arith.constant 0 : index
    %c0_67 = arith.constant 0 : index
    %65 = vector.load %arg7[%c0_64, %c1_65, %c0_66, %c0_67] : memref<2x2x1x16xf32, #tpu.memory_space<vmem>>, vector<1x1x1x16xf32>
    %66 = vector.shape_cast %65 : vector<1x1x1x16xf32> to vector<1x16xf32>
    %67 = vector.broadcast %66 : vector<1x16xf32> to vector<16x16xf32>
    %68 = arith.addf %64, %67 : vector<16x16xf32>
    %69 = vector.shape_cast %54 : vector<16x16xf32> to vector<2x8x16xf32>
    %70 = vector.shape_cast %61 : vector<16x16xf32> to vector<2x8x16xf32>
    %71 = vector.shape_cast %68 : vector<16x16xf32> to vector<2x8x16xf32>
    "tpu.trace_start"() <{level = 10 : i32, message = "bqd,bkd->bqk"}> : () -> ()
    %cst_68 = arith.constant dense<0.000000e+00> : vector<2x8x8xf32>
    %72 = tpu.matmul %69, %70, %cst_68 {dimension_numbers = #tpu.dot_dimension_numbers<[2], [2], [1], [1], [0, 0, 0, 1, 1, 1], [0], [0]>} : vector<2x8x16xf32>, vector<2x8x16xf32>, vector<2x8x8xf32> -> vector<2x8x8xf32>
    "tpu.trace_stop"() : () -> ()
    %cst_69 = arith.constant 2.500000e-01 : f32
    %73 = vector.broadcast %cst_69 : f32 to vector<2x8x8xf32>
    %74 = arith.mulf %72, %73 : vector<2x8x8xf32>
    %cst_70 = arith.constant -1.000000e+09 : f32
    %75 = vector.broadcast %cst_70 : f32 to vector<2x8x8xf32>
    %76 = arith.select %3, %75, %74 : vector<2x8x8xi1>, vector<2x8x8xf32>
    %cst_71 = arith.constant dense<0xFF800000> : vector<2x8xf32>
    %77 = vector.multi_reduction <maximumf>, %76, %cst_71 [2] : vector<2x8x8xf32> to vector<2x8xf32>
    %78 = vector.shape_cast %77 : vector<2x8xf32> to vector<2x8x1xf32>
    %79 = vector.broadcast %78 : vector<2x8x1xf32> to vector<2x8x8xf32>
    %80 = arith.subf %76, %79 : vector<2x8x8xf32>
    %81 = math.exp %80 : vector<2x8x8xf32>
    %cst_72 = arith.constant dense<0.000000e+00> : vector<2x8xf32>
    %82 = vector.multi_reduction <add>, %81, %cst_72 [2] : vector<2x8x8xf32> to vector<2x8xf32>
    %83 = vector.shape_cast %82 : vector<2x8xf32> to vector<2x8x1xf32>
    %84 = tpu.reciprocal %83 {approx = true} : vector<2x8x1xf32> -> vector<2x8x1xf32>
    %85 = vector.broadcast %84 : vector<2x8x1xf32> to vector<2x8x8xf32>
    %86 = arith.mulf %81, %85 : vector<2x8x8xf32>
    "tpu.trace_start"() <{level = 10 : i32, message = "bqk,bkd->bqd"}> : () -> ()
    %cst_73 = arith.constant dense<0.000000e+00> : vector<2x8x16xf32>
    %87 = tpu.matmul %86, %71, %cst_73 {dimension_numbers = #tpu.dot_dimension_numbers<[2], [1], [1], [2], [0, 0, 0, 1, 1, 2], [0], [0]>} : vector<2x8x8xf32>, vector<2x8x16xf32>, vector<2x8x16xf32> -> vector<2x8x16xf32>
    "tpu.trace_stop"() : () -> ()
    %88 = vector.shape_cast %87 : vector<2x8x16xf32> to vector<16x16xf32>
    %c0_74 = arith.constant 0 : index
    %c1_75 = arith.constant 1 : index
    %c0_76 = arith.constant 0 : index
    %c0_77 = arith.constant 0 : index
    %89 = vector.load %arg8[%c0_74, %c1_75, %c0_76, %c0_77] : memref<2x2x16x32xf32, #tpu.memory_space<vmem>>, vector<1x1x16x32xf32>
    %90 = vector.shape_cast %89 : vector<1x1x16x32xf32> to vector<16x32xf32>
    %cst_78 = arith.constant dense<0.000000e+00> : vector<16x32xf32>
    %91 = tpu.matmul %88, %90, %cst_78 {dimension_numbers = #tpu.dot_dimension_numbers<[1], [0], [0], [1], [0, 0, 1, 1], [], []>} : vector<16x16xf32>, vector<16x32xf32>, vector<16x32xf32> -> vector<16x32xf32>
    %92 = arith.addf %47, %91 : vector<16x32xf32>
    %93 = vector.shape_cast %42 : vector<2x8x8xf32> to vector<2x1x8x8xf32>
    %94 = vector.shape_cast %86 : vector<2x8x8xf32> to vector<2x1x8x8xf32>
    %95 = tpu.concatenate %93, %94 in 1 : vector<2x1x8x8xf32>, vector<2x1x8x8xf32> -> vector<2x2x8x8xf32>
    %c0_79 = arith.constant 0 : index
    %c0_80 = arith.constant 0 : index
    %c0_81 = arith.constant 0 : index
    %c0_82 = arith.constant 0 : index
    %c0_83 = arith.constant 0 : index
    %96 = vector.load %arg19[%c0_79, %c0_80, %c0_81, %c0_82, %c0_83] : memref<2x2x2x8x8xf32, #tpu.memory_space<vmem>>, vector<1x2x2x8x8xf32>
    %97 = vector.shape_cast %96 : vector<1x2x2x8x8xf32> to vector<2x2x8x8xf32>
    %98 = vector.shape_cast %95 : vector<2x2x8x8xf32> to vector<1x2x2x8x8xf32>
    tpu.vector_store %arg19[%c0_79, %c0_80, %c0_81, %c0_82, %c0_83], %98 {strides = array<i32>} : memref<2x2x2x8x8xf32, #tpu.memory_space<vmem>>, vector<1x2x2x8x8xf32>,
    %c0_84 = arith.constant 0 : index
    %c0_85 = arith.constant 0 : index
    %c0_86 = arith.constant 0 : index
    %99 = vector.load %arg9[%c0_84, %c0_85, %c0_86] : memref<2x1x32xf32, #tpu.memory_space<vmem>>, vector<1x1x32xf32>
    %100 = vector.shape_cast %99 : vector<1x1x32xf32> to vector<1x32xf32>
    %101 = vector.broadcast %100 : vector<1x32xf32> to vector<16x32xf32>
    %102 = arith.addf %92, %101 : vector<16x32xf32>
    %103 = arith.addf %0, %102 : vector<16x32xf32>
    %c0_87 = arith.constant 0 : index
    %c0_88 = arith.constant 0 : index
    %c0_89 = arith.constant 0 : index
    %104 = vector.load %arg10[%c0_87, %c0_88, %c0_89] : memref<2x1x32xf32, #tpu.memory_space<vmem>>, vector<1x1x32xf32>
    %105 = vector.shape_cast %104 : vector<1x1x32xf32> to vector<1x32xf32>
    %c0_90 = arith.constant 0 : index
    %c0_91 = arith.constant 0 : index
    %c0_92 = arith.constant 0 : index
    %106 = vector.load %arg11[%c0_90, %c0_91, %c0_92] : memref<2x1x32xf32, #tpu.memory_space<vmem>>, vector<1x1x32xf32>
    %107 = vector.shape_cast %106 : vector<1x1x32xf32> to vector<1x32xf32>
    %cst_93 = arith.constant dense<0.000000e+00> : vector<16xf32>
    %108 = vector.multi_reduction <add>, %103, %cst_93 [1] : vector<16x32xf32> to vector<16xf32>
    %109 = vector.shape_cast %108 : vector<16xf32> to vector<16x1xf32>
    %cst_94 = arith.constant 3.200000e+01 : f32
    %110 = vector.broadcast %cst_94 : f32 to vector<16x1xf32>
    %111 = arith.divf %109, %110 : vector<16x1xf32>
    %112 = vector.broadcast %111 : vector<16x1xf32> to vector<16x32xf32>
    %113 = arith.subf %103, %112 : vector<16x32xf32>
    %114 = arith.mulf %113, %113 : vector<16x32xf32>
    %cst_95 = arith.constant dense<0.000000e+00> : vector<16xf32>
    %115 = vector.multi_reduction <add>, %114, %cst_95 [1] : vector<16x32xf32> to vector<16xf32>
    %116 = vector.shape_cast %115 : vector<16xf32> to vector<16x1xf32>
    %cst_96 = arith.constant 3.200000e+01 : f32
    %117 = vector.broadcast %cst_96 : f32 to vector<16x1xf32>
    %118 = arith.divf %116, %117 : vector<16x1xf32>
    %cst_97 = arith.constant 9.99999996E-13 : f32
    %119 = vector.broadcast %cst_97 : f32 to vector<16x1xf32>
    %120 = arith.addf %118, %119 : vector<16x1xf32>
    %121 = math.rsqrt %120 : vector<16x1xf32>
    %122 = vector.broadcast %121 : vector<16x1xf32> to vector<16x32xf32>
    %123 = arith.mulf %113, %122 : vector<16x32xf32>
    %124 = vector.broadcast %105 : vector<1x32xf32> to vector<16x32xf32>
    %125 = arith.mulf %123, %124 : vector<16x32xf32>
    %126 = vector.broadcast %107 : vector<1x32xf32> to vector<16x32xf32>
    %127 = arith.addf %125, %126 : vector<16x32xf32>
    %c0_98 = arith.constant 0 : index
    %c0_99 = arith.constant 0 : index
    %c0_100 = arith.constant 0 : index
    %128 = vector.load %arg12[%c0_98, %c0_99, %c0_100] : memref<2x32x128xf32, #tpu.memory_space<vmem>>, vector<1x32x128xf32>
    %129 = vector.shape_cast %128 : vector<1x32x128xf32> to vector<32x128xf32>
    %cst_101 = arith.constant dense<0.000000e+00> : vector<16x128xf32>
    %130 = tpu.matmul %127, %129, %cst_101 {dimension_numbers = #tpu.dot_dimension_numbers<[1], [0], [0], [1], [0, 0, 1, 1], [], []>} : vector<16x32xf32>, vector<32x128xf32>, vector<16x128xf32> -> vector<16x128xf32>
    %c0_102 = arith.constant 0 : index
    %c0_103 = arith.constant 0 : index
    %c0_104 = arith.constant 0 : index
    %131 = vector.load %arg13[%c0_102, %c0_103, %c0_104] : memref<2x1x128xf32, #tpu.memory_space<vmem>>, vector<1x1x128xf32>
    %132 = vector.shape_cast %131 : vector<1x1x128xf32> to vector<1x128xf32>
    %133 = vector.broadcast %132 : vector<1x128xf32> to vector<16x128xf32>
    %134 = arith.addf %130, %133 : vector<16x128xf32>
    %cst_105 = arith.constant 5.000000e-01 : f32
    %135 = vector.broadcast %cst_105 : f32 to vector<16x128xf32>
    %136 = arith.mulf %135, %134 : vector<16x128xf32>
    %cst_106 = arith.constant 0.707106769 : f32
    %137 = vector.broadcast %cst_106 : f32 to vector<16x128xf32>
    %138 = arith.mulf %134, %137 : vector<16x128xf32>
    %cst_107 = arith.constant 0.000000e+00 : f32
    %139 = vector.broadcast %cst_107 : f32 to vector<16x128xf32>
    %140 = arith.cmpf oge, %138, %139 : vector<16x128xf32>
    %cst_108 = arith.constant 1.000000e+00 : f32
    %cst_109 = arith.constant -1.000000e+00 : f32
    %141 = vector.broadcast %cst_108 : f32 to vector<16x128xf32>
    %142 = vector.broadcast %cst_109 : f32 to vector<16x128xf32>
    %143 = arith.select %140, %141, %142 : vector<16x128xi1>, vector<16x128xf32>
    %144 = math.absf %138 : vector<16x128xf32>
    %cst_110 = arith.constant 0.327591091 : f32
    %145 = vector.broadcast %cst_110 : f32 to vector<16x128xf32>
    %146 = arith.mulf %145, %144 : vector<16x128xf32>
    %cst_111 = arith.constant 1.000000e+00 : f32
    %147 = vector.broadcast %cst_111 : f32 to vector<16x128xf32>
    %148 = arith.addf %147, %146 : vector<16x128xf32>
    %cst_112 = arith.constant 1.000000e+00 : f32
    %149 = vector.broadcast %cst_112 : f32 to vector<16x128xf32>
    %150 = arith.divf %149, %148 : vector<16x128xf32>
    %cst_113 = arith.constant 1.06140542 : f32
    %151 = vector.broadcast %cst_113 : f32 to vector<16x128xf32>
    %152 = arith.mulf %151, %150 : vector<16x128xf32>
    %cst_114 = arith.constant 1.45315206 : f32
    %153 = vector.broadcast %cst_114 : f32 to vector<16x128xf32>
    %154 = arith.subf %152, %153 : vector<16x128xf32>
    %155 = arith.mulf %154, %150 : vector<16x128xf32>
    %cst_115 = arith.constant 1.42141378 : f32
    %156 = vector.broadcast %cst_115 : f32 to vector<16x128xf32>
    %157 = arith.addf %155, %156 : vector<16x128xf32>
    %158 = arith.mulf %157, %150 : vector<16x128xf32>
    %cst_116 = arith.constant 0.284496725 : f32
    %159 = vector.broadcast %cst_116 : f32 to vector<16x128xf32>
    %160 = arith.subf %158, %159 : vector<16x128xf32>
    %161 = arith.mulf %160, %150 : vector<16x128xf32>
    %cst_117 = arith.constant 0.254829586 : f32
    %162 = vector.broadcast %cst_117 : f32 to vector<16x128xf32>
    %163 = arith.addf %161, %162 : vector<16x128xf32>
    %164 = arith.mulf %163, %150 : vector<16x128xf32>
    %cst_118 = arith.constant 0.000000e+00 : f32
    %165 = vector.broadcast %cst_118 : f32 to vector<16x128xf32>
    %166 = arith.subf %165, %144 : vector<16x128xf32>
    %167 = arith.mulf %166, %144 : vector<16x128xf32>
    %168 = math.exp %167 : vector<16x128xf32>
    %169 = arith.mulf %164, %168 : vector<16x128xf32>
    %cst_119 = arith.constant 1.000000e+00 : f32
    %170 = vector.broadcast %cst_119 : f32 to vector<16x128xf32>
    %171 = arith.subf %170, %169 : vector<16x128xf32>
    %172 = arith.mulf %143, %171 : vector<16x128xf32>
    %cst_120 = arith.constant 1.000000e+00 : f32
    %173 = vector.broadcast %cst_120 : f32 to vector<16x128xf32>
    %174 = arith.addf %173, %172 : vector<16x128xf32>
    %175 = arith.mulf %136, %174 : vector<16x128xf32>
    %c0_121 = arith.constant 0 : index
    %c0_122 = arith.constant 0 : index
    %c0_123 = arith.constant 0 : index
    %176 = vector.load %arg14[%c0_121, %c0_122, %c0_123] : memref<2x128x32xf32, #tpu.memory_space<vmem>>, vector<1x128x32xf32>
    %177 = vector.shape_cast %176 : vector<1x128x32xf32> to vector<128x32xf32>
    %cst_124 = arith.constant dense<0.000000e+00> : vector<16x32xf32>
    %178 = tpu.matmul %175, %177, %cst_124 {dimension_numbers = #tpu.dot_dimension_numbers<[1], [0], [0], [1], [0, 0, 1, 1], [], []>} : vector<16x128xf32>, vector<128x32xf32>, vector<16x32xf32> -> vector<16x32xf32>
    %c0_125 = arith.constant 0 : index
    %c0_126 = arith.constant 0 : index
    %c0_127 = arith.constant 0 : index
    %179 = vector.load %arg15[%c0_125, %c0_126, %c0_127] : memref<2x1x32xf32, #tpu.memory_space<vmem>>, vector<1x1x32xf32>
    %180 = vector.shape_cast %179 : vector<1x1x32xf32> to vector<1x32xf32>
    %181 = vector.broadcast %180 : vector<1x32xf32> to vector<16x32xf32>
    %182 = arith.addf %178, %181 : vector<16x32xf32>
    %183 = arith.addf %182, %127 : vector<16x32xf32>
    %c0_128 = arith.constant 0 : index
    %c0_129 = arith.constant 0 : index
    %c0_130 = arith.constant 0 : index
    %184 = vector.load %arg16[%c0_128, %c0_129, %c0_130] : memref<2x1x32xf32, #tpu.memory_space<vmem>>, vector<1x1x32xf32>
    %185 = vector.shape_cast %184 : vector<1x1x32xf32> to vector<1x32xf32>
    %c0_131 = arith.constant 0 : index
    %c0_132 = arith.constant 0 : index
    %c0_133 = arith.constant 0 : index
    %186 = vector.load %arg17[%c0_131, %c0_132, %c0_133] : memref<2x1x32xf32, #tpu.memory_space<vmem>>, vector<1x1x32xf32>
    %187 = vector.shape_cast %186 : vector<1x1x32xf32> to vector<1x32xf32>
    %cst_134 = arith.constant dense<0.000000e+00> : vector<16xf32>
    %188 = vector.multi_reduction <add>, %183, %cst_134 [1] : vector<16x32xf32> to vector<16xf32>
    %189 = vector.shape_cast %188 : vector<16xf32> to vector<16x1xf32>
    %cst_135 = arith.constant 3.200000e+01 : f32
    %190 = vector.broadcast %cst_135 : f32 to vector<16x1xf32>
    %191 = arith.divf %189, %190 : vector<16x1xf32>
    %192 = vector.broadcast %191 : vector<16x1xf32> to vector<16x32xf32>
    %193 = arith.subf %183, %192 : vector<16x32xf32>
    %194 = arith.mulf %193, %193 : vector<16x32xf32>
    %cst_136 = arith.constant dense<0.000000e+00> : vector<16xf32>
    %195 = vector.multi_reduction <add>, %194, %cst_136 [1] : vector<16x32xf32> to vector<16xf32>
    %196 = vector.shape_cast %195 : vector<16xf32> to vector<16x1xf32>
    %cst_137 = arith.constant 3.200000e+01 : f32
    %197 = vector.broadcast %cst_137 : f32 to vector<16x1xf32>
    %198 = arith.divf %196, %197 : vector<16x1xf32>
    %cst_138 = arith.constant 9.99999996E-13 : f32
    %199 = vector.broadcast %cst_138 : f32 to vector<16x1xf32>
    %200 = arith.addf %198, %199 : vector<16x1xf32>
    %201 = math.rsqrt %200 : vector<16x1xf32>
    %202 = vector.broadcast %201 : vector<16x1xf32> to vector<16x32xf32>
    %203 = arith.mulf %193, %202 : vector<16x32xf32>
    %204 = vector.broadcast %185 : vector<1x32xf32> to vector<16x32xf32>
    %205 = arith.mulf %203, %204 : vector<16x32xf32>
    %206 = vector.broadcast %187 : vector<1x32xf32> to vector<16x32xf32>
    %207 = arith.addf %205, %206 : vector<16x32xf32>
    %c1_139 = arith.constant 1 : index
    %c0_140 = arith.constant 0 : index
    %c0_141 = arith.constant 0 : index
    %c0_142 = arith.constant 0 : index
    %208 = vector.load %arg2[%c1_139, %c0_140, %c0_141, %c0_142] : memref<2x2x32x16xf32, #tpu.memory_space<vmem>>, vector<1x1x32x16xf32>
    %209 = vector.shape_cast %208 : vector<1x1x32x16xf32> to vector<32x16xf32>
    %cst_143 = arith.constant dense<0.000000e+00> : vector<16x16xf32>
    %210 = tpu.matmul %207, %209, %cst_143 {dimension_numbers = #tpu.dot_dimension_numbers<[1], [0], [0], [1], [0, 0, 1, 1], [], []>} : vector<16x32xf32>, vector<32x16xf32>, vector<16x16xf32> -> vector<16x16xf32>
    %c1_144 = arith.constant 1 : index
    %c0_145 = arith.constant 0 : index
    %c0_146 = arith.constant 0 : index
    %c0_147 = arith.constant 0 : index
    %211 = vector.load %arg3[%c1_144, %c0_145, %c0_146, %c0_147] : memref<2x2x1x16xf32, #tpu.memory_space<vmem>>, vector<1x1x1x16xf32>
    %212 = vector.shape_cast %211 : vector<1x1x1x16xf32> to vector<1x16xf32>
    %213 = vector.broadcast %212 : vector<1x16xf32> to vector<16x16xf32>
    %214 = arith.addf %210, %213 : vector<16x16xf32>
    %c1_148 = arith.constant 1 : index
    %c0_149 = arith.constant 0 : index
    %c0_150 = arith.constant 0 : index
    %c0_151 = arith.constant 0 : index
    %215 = vector.load %arg4[%c1_148, %c0_149, %c0_150, %c0_151] : memref<2x2x32x16xf32, #tpu.memory_space<vmem>>, vector<1x1x32x16xf32>
    %216 = vector.shape_cast %215 : vector<1x1x32x16xf32> to vector<32x16xf32>
    %cst_152 = arith.constant dense<0.000000e+00> : vector<16x16xf32>
    %217 = tpu.matmul %207, %216, %cst_152 {dimension_numbers = #tpu.dot_dimension_numbers<[1], [0], [0], [1], [0, 0, 1, 1], [], []>} : vector<16x32xf32>, vector<32x16xf32>, vector<16x16xf32> -> vector<16x16xf32>
    %c1_153 = arith.constant 1 : index
    %c0_154 = arith.constant 0 : index
    %c0_155 = arith.constant 0 : index
    %c0_156 = arith.constant 0 : index
    %218 = vector.load %arg5[%c1_153, %c0_154, %c0_155, %c0_156] : memref<2x2x1x16xf32, #tpu.memory_space<vmem>>, vector<1x1x1x16xf32>
    %219 = vector.shape_cast %218 : vector<1x1x1x16xf32> to vector<1x16xf32>
    %220 = vector.broadcast %219 : vector<1x16xf32> to vector<16x16xf32>
    %221 = arith.addf %217, %220 : vector<16x16xf32>
    %c1_157 = arith.constant 1 : index
    %c0_158 = arith.constant 0 : index
    %c0_159 = arith.constant 0 : index
    %c0_160 = arith.constant 0 : index
    %222 = vector.load %arg6[%c1_157, %c0_158, %c0_159, %c0_160] : memref<2x2x32x16xf32, #tpu.memory_space<vmem>>, vector<1x1x32x16xf32>
    %223 = vector.shape_cast %222 : vector<1x1x32x16xf32> to vector<32x16xf32>
    %cst_161 = arith.constant dense<0.000000e+00> : vector<16x16xf32>
    %224 = tpu.matmul %207, %223, %cst_161 {dimension_numbers = #tpu.dot_dimension_numbers<[1], [0], [0], [1], [0, 0, 1, 1], [], []>} : vector<16x32xf32>, vector<32x16xf32>, vector<16x16xf32> -> vector<16x16xf32>
    %c1_162 = arith.constant 1 : index
    %c0_163 = arith.constant 0 : index
    %c0_164 = arith.constant 0 : index
    %c0_165 = arith.constant 0 : index
    %225 = vector.load %arg7[%c1_162, %c0_163, %c0_164, %c0_165] : memref<2x2x1x16xf32, #tpu.memory_space<vmem>>, vector<1x1x1x16xf32>
    %226 = vector.shape_cast %225 : vector<1x1x1x16xf32> to vector<1x16xf32>
    %227 = vector.broadcast %226 : vector<1x16xf32> to vector<16x16xf32>
    %228 = arith.addf %224, %227 : vector<16x16xf32>
    %229 = vector.shape_cast %214 : vector<16x16xf32> to vector<2x8x16xf32>
    %230 = vector.shape_cast %221 : vector<16x16xf32> to vector<2x8x16xf32>
    %231 = vector.shape_cast %228 : vector<16x16xf32> to vector<2x8x16xf32>
    "tpu.trace_start"() <{level = 10 : i32, message = "bqd,bkd->bqk"}> : () -> ()
    %cst_166 = arith.constant dense<0.000000e+00> : vector<2x8x8xf32>
    %232 = tpu.matmul %229, %230, %cst_166 {dimension_numbers = #tpu.dot_dimension_numbers<[2], [2], [1], [1], [0, 0, 0, 1, 1, 1], [0], [0]>} : vector<2x8x16xf32>, vector<2x8x16xf32>, vector<2x8x8xf32> -> vector<2x8x8xf32>
    "tpu.trace_stop"() : () -> ()
    %cst_167 = arith.constant 2.500000e-01 : f32
    %233 = vector.broadcast %cst_167 : f32 to vector<2x8x8xf32>
    %234 = arith.mulf %232, %233 : vector<2x8x8xf32>
    %cst_168 = arith.constant -1.000000e+09 : f32
    %235 = vector.broadcast %cst_168 : f32 to vector<2x8x8xf32>
    %236 = arith.select %3, %235, %234 : vector<2x8x8xi1>, vector<2x8x8xf32>
    %cst_169 = arith.constant dense<0xFF800000> : vector<2x8xf32>
    %237 = vector.multi_reduction <maximumf>, %236, %cst_169 [2] : vector<2x8x8xf32> to vector<2x8xf32>
    %238 = vector.shape_cast %237 : vector<2x8xf32> to vector<2x8x1xf32>
    %239 = vector.broadcast %238 : vector<2x8x1xf32> to vector<2x8x8xf32>
    %240 = arith.subf %236, %239 : vector<2x8x8xf32>
    %241 = math.exp %240 : vector<2x8x8xf32>
    %cst_170 = arith.constant dense<0.000000e+00> : vector<2x8xf32>
    %242 = vector.multi_reduction <add>, %241, %cst_170 [2] : vector<2x8x8xf32> to vector<2x8xf32>
    %243 = vector.shape_cast %242 : vector<2x8xf32> to vector<2x8x1xf32>
    %244 = tpu.reciprocal %243 {approx = true} : vector<2x8x1xf32> -> vector<2x8x1xf32>
    %245 = vector.broadcast %244 : vector<2x8x1xf32> to vector<2x8x8xf32>
    %246 = arith.mulf %241, %245 : vector<2x8x8xf32>
    "tpu.trace_start"() <{level = 10 : i32, message = "bqk,bkd->bqd"}> : () -> ()
    %cst_171 = arith.constant dense<0.000000e+00> : vector<2x8x16xf32>
    %247 = tpu.matmul %246, %231, %cst_171 {dimension_numbers = #tpu.dot_dimension_numbers<[2], [1], [1], [2], [0, 0, 0, 1, 1, 2], [0], [0]>} : vector<2x8x8xf32>, vector<2x8x16xf32>, vector<2x8x16xf32> -> vector<2x8x16xf32>
    "tpu.trace_stop"() : () -> ()
    %248 = vector.shape_cast %247 : vector<2x8x16xf32> to vector<16x16xf32>
    %c1_172 = arith.constant 1 : index
    %c0_173 = arith.constant 0 : index
    %c0_174 = arith.constant 0 : index
    %c0_175 = arith.constant 0 : index
    %249 = vector.load %arg8[%c1_172, %c0_173, %c0_174, %c0_175] : memref<2x2x16x32xf32, #tpu.memory_space<vmem>>, vector<1x1x16x32xf32>
    %250 = vector.shape_cast %249 : vector<1x1x16x32xf32> to vector<16x32xf32>
    %cst_176 = arith.constant dense<0.000000e+00> : vector<16x32xf32>
    %251 = tpu.matmul %248, %250, %cst_176 {dimension_numbers = #tpu.dot_dimension_numbers<[1], [0], [0], [1], [0, 0, 1, 1], [], []>} : vector<16x16xf32>, vector<16x32xf32>, vector<16x32xf32> -> vector<16x32xf32>
    %c1_177 = arith.constant 1 : index
    %c1_178 = arith.constant 1 : index
    %c0_179 = arith.constant 0 : index
    %c0_180 = arith.constant 0 : index
    %252 = vector.load %arg2[%c1_177, %c1_178, %c0_179, %c0_180] : memref<2x2x32x16xf32, #tpu.memory_space<vmem>>, vector<1x1x32x16xf32>
    %253 = vector.shape_cast %252 : vector<1x1x32x16xf32> to vector<32x16xf32>
    %cst_181 = arith.constant dense<0.000000e+00> : vector<16x16xf32>
    %254 = tpu.matmul %207, %253, %cst_181 {dimension_numbers = #tpu.dot_dimension_numbers<[1], [0], [0], [1], [0, 0, 1, 1], [], []>} : vector<16x32xf32>, vector<32x16xf32>, vector<16x16xf32> -> vector<16x16xf32>
    %c1_182 = arith.constant 1 : index
    %c1_183 = arith.constant 1 : index
    %c0_184 = arith.constant 0 : index
    %c0_185 = arith.constant 0 : index
    %255 = vector.load %arg3[%c1_182, %c1_183, %c0_184, %c0_185] : memref<2x2x1x16xf32, #tpu.memory_space<vmem>>, vector<1x1x1x16xf32>
    %256 = vector.shape_cast %255 : vector<1x1x1x16xf32> to vector<1x16xf32>
    %257 = vector.broadcast %256 : vector<1x16xf32> to vector<16x16xf32>
    %258 = arith.addf %254, %257 : vector<16x16xf32>
    %c1_186 = arith.constant 1 : index
    %c1_187 = arith.constant 1 : index
    %c0_188 = arith.constant 0 : index
    %c0_189 = arith.constant 0 : index
    %259 = vector.load %arg4[%c1_186, %c1_187, %c0_188, %c0_189] : memref<2x2x32x16xf32, #tpu.memory_space<vmem>>, vector<1x1x32x16xf32>
    %260 = vector.shape_cast %259 : vector<1x1x32x16xf32> to vector<32x16xf32>
    %cst_190 = arith.constant dense<0.000000e+00> : vector<16x16xf32>
    %261 = tpu.matmul %207, %260, %cst_190 {dimension_numbers = #tpu.dot_dimension_numbers<[1], [0], [0], [1], [0, 0, 1, 1], [], []>} : vector<16x32xf32>, vector<32x16xf32>, vector<16x16xf32> -> vector<16x16xf32>
    %c1_191 = arith.constant 1 : index
    %c1_192 = arith.constant 1 : index
    %c0_193 = arith.constant 0 : index
    %c0_194 = arith.constant 0 : index
    %262 = vector.load %arg5[%c1_191, %c1_192, %c0_193, %c0_194] : memref<2x2x1x16xf32, #tpu.memory_space<vmem>>, vector<1x1x1x16xf32>
    %263 = vector.shape_cast %262 : vector<1x1x1x16xf32> to vector<1x16xf32>
    %264 = vector.broadcast %263 : vector<1x16xf32> to vector<16x16xf32>
    %265 = arith.addf %261, %264 : vector<16x16xf32>
    %c1_195 = arith.constant 1 : index
    %c1_196 = arith.constant 1 : index
    %c0_197 = arith.constant 0 : index
    %c0_198 = arith.constant 0 : index
    %266 = vector.load %arg6[%c1_195, %c1_196, %c0_197, %c0_198] : memref<2x2x32x16xf32, #tpu.memory_space<vmem>>, vector<1x1x32x16xf32>
    %267 = vector.shape_cast %266 : vector<1x1x32x16xf32> to vector<32x16xf32>
    %cst_199 = arith.constant dense<0.000000e+00> : vector<16x16xf32>
    %268 = tpu.matmul %207, %267, %cst_199 {dimension_numbers = #tpu.dot_dimension_numbers<[1], [0], [0], [1], [0, 0, 1, 1], [], []>} : vector<16x32xf32>, vector<32x16xf32>, vector<16x16xf32> -> vector<16x16xf32>
    %c1_200 = arith.constant 1 : index
    %c1_201 = arith.constant 1 : index
    %c0_202 = arith.constant 0 : index
    %c0_203 = arith.constant 0 : index
    %269 = vector.load %arg7[%c1_200, %c1_201, %c0_202, %c0_203] : memref<2x2x1x16xf32, #tpu.memory_space<vmem>>, vector<1x1x1x16xf32>
    %270 = vector.shape_cast %269 : vector<1x1x1x16xf32> to vector<1x16xf32>
    %271 = vector.broadcast %270 : vector<1x16xf32> to vector<16x16xf32>
    %272 = arith.addf %268, %271 : vector<16x16xf32>
    %273 = vector.shape_cast %258 : vector<16x16xf32> to vector<2x8x16xf32>
    %274 = vector.shape_cast %265 : vector<16x16xf32> to vector<2x8x16xf32>
    %275 = vector.shape_cast %272 : vector<16x16xf32> to vector<2x8x16xf32>
    "tpu.trace_start"() <{level = 10 : i32, message = "bqd,bkd->bqk"}> : () -> ()
    %cst_204 = arith.constant dense<0.000000e+00> : vector<2x8x8xf32>
    %276 = tpu.matmul %273, %274, %cst_204 {dimension_numbers = #tpu.dot_dimension_numbers<[2], [2], [1], [1], [0, 0, 0, 1, 1, 1], [0], [0]>} : vector<2x8x16xf32>, vector<2x8x16xf32>, vector<2x8x8xf32> -> vector<2x8x8xf32>
    "tpu.trace_stop"() : () -> ()
    %cst_205 = arith.constant 2.500000e-01 : f32
    %277 = vector.broadcast %cst_205 : f32 to vector<2x8x8xf32>
    %278 = arith.mulf %276, %277 : vector<2x8x8xf32>
    %cst_206 = arith.constant -1.000000e+09 : f32
    %279 = vector.broadcast %cst_206 : f32 to vector<2x8x8xf32>
    %280 = arith.select %3, %279, %278 : vector<2x8x8xi1>, vector<2x8x8xf32>
    %cst_207 = arith.constant dense<0xFF800000> : vector<2x8xf32>
    %281 = vector.multi_reduction <maximumf>, %280, %cst_207 [2] : vector<2x8x8xf32> to vector<2x8xf32>
    %282 = vector.shape_cast %281 : vector<2x8xf32> to vector<2x8x1xf32>
    %283 = vector.broadcast %282 : vector<2x8x1xf32> to vector<2x8x8xf32>
    %284 = arith.subf %280, %283 : vector<2x8x8xf32>
    %285 = math.exp %284 : vector<2x8x8xf32>
    %cst_208 = arith.constant dense<0.000000e+00> : vector<2x8xf32>
    %286 = vector.multi_reduction <add>, %285, %cst_208 [2] : vector<2x8x8xf32> to vector<2x8xf32>
    %287 = vector.shape_cast %286 : vector<2x8xf32> to vector<2x8x1xf32>
    %288 = tpu.reciprocal %287 {approx = true} : vector<2x8x1xf32> -> vector<2x8x1xf32>
    %289 = vector.broadcast %288 : vector<2x8x1xf32> to vector<2x8x8xf32>
    %290 = arith.mulf %285, %289 : vector<2x8x8xf32>
    "tpu.trace_start"() <{level = 10 : i32, message = "bqk,bkd->bqd"}> : () -> ()
    %cst_209 = arith.constant dense<0.000000e+00> : vector<2x8x16xf32>
    %291 = tpu.matmul %290, %275, %cst_209 {dimension_numbers = #tpu.dot_dimension_numbers<[2], [1], [1], [2], [0, 0, 0, 1, 1, 2], [0], [0]>} : vector<2x8x8xf32>, vector<2x8x16xf32>, vector<2x8x16xf32> -> vector<2x8x16xf32>
    "tpu.trace_stop"() : () -> ()
    %292 = vector.shape_cast %291 : vector<2x8x16xf32> to vector<16x16xf32>
    %c1_210 = arith.constant 1 : index
    %c1_211 = arith.constant 1 : index
    %c0_212 = arith.constant 0 : index
    %c0_213 = arith.constant 0 : index
    %293 = vector.load %arg8[%c1_210, %c1_211, %c0_212, %c0_213] : memref<2x2x16x32xf32, #tpu.memory_space<vmem>>, vector<1x1x16x32xf32>
    %294 = vector.shape_cast %293 : vector<1x1x16x32xf32> to vector<16x32xf32>
    %cst_214 = arith.constant dense<0.000000e+00> : vector<16x32xf32>
    %295 = tpu.matmul %292, %294, %cst_214 {dimension_numbers = #tpu.dot_dimension_numbers<[1], [0], [0], [1], [0, 0, 1, 1], [], []>} : vector<16x16xf32>, vector<16x32xf32>, vector<16x32xf32> -> vector<16x32xf32>
    %296 = arith.addf %251, %295 : vector<16x32xf32>
    %297 = vector.shape_cast %246 : vector<2x8x8xf32> to vector<2x1x8x8xf32>
    %298 = vector.shape_cast %290 : vector<2x8x8xf32> to vector<2x1x8x8xf32>
    %299 = tpu.concatenate %297, %298 in 1 : vector<2x1x8x8xf32>, vector<2x1x8x8xf32> -> vector<2x2x8x8xf32>
    %c1_215 = arith.constant 1 : index
    %c0_216 = arith.constant 0 : index
    %c0_217 = arith.constant 0 : index
    %c0_218 = arith.constant 0 : index
    %c0_219 = arith.constant 0 : index
    %300 = vector.load %arg19[%c1_215, %c0_216, %c0_217, %c0_218, %c0_219] : memref<2x2x2x8x8xf32, #tpu.memory_space<vmem>>, vector<1x2x2x8x8xf32>
    %301 = vector.shape_cast %300 : vector<1x2x2x8x8xf32> to vector<2x2x8x8xf32>
    %302 = vector.shape_cast %299 : vector<2x2x8x8xf32> to vector<1x2x2x8x8xf32>
    tpu.vector_store %arg19[%c1_215, %c0_216, %c0_217, %c0_218, %c0_219], %302 {strides = array<i32>} : memref<2x2x2x8x8xf32, #tpu.memory_space<vmem>>, vector<1x2x2x8x8xf32>,
    %c1_220 = arith.constant 1 : index
    %c0_221 = arith.constant 0 : index
    %c0_222 = arith.constant 0 : index
    %303 = vector.load %arg9[%c1_220, %c0_221, %c0_222] : memref<2x1x32xf32, #tpu.memory_space<vmem>>, vector<1x1x32xf32>
    %304 = vector.shape_cast %303 : vector<1x1x32xf32> to vector<1x32xf32>
    %305 = vector.broadcast %304 : vector<1x32xf32> to vector<16x32xf32>
    %306 = arith.addf %296, %305 : vector<16x32xf32>
    %307 = arith.addf %207, %306 : vector<16x32xf32>
    %c1_223 = arith.constant 1 : index
    %c0_224 = arith.constant 0 : index
    %c0_225 = arith.constant 0 : index
    %308 = vector.load %arg10[%c1_223, %c0_224, %c0_225] : memref<2x1x32xf32, #tpu.memory_space<vmem>>, vector<1x1x32xf32>
    %309 = vector.shape_cast %308 : vector<1x1x32xf32> to vector<1x32xf32>
    %c1_226 = arith.constant 1 : index
    %c0_227 = arith.constant 0 : index
    %c0_228 = arith.constant 0 : index
    %310 = vector.load %arg11[%c1_226, %c0_227, %c0_228] : memref<2x1x32xf32, #tpu.memory_space<vmem>>, vector<1x1x32xf32>
    %311 = vector.shape_cast %310 : vector<1x1x32xf32> to vector<1x32xf32>
    %cst_229 = arith.constant dense<0.000000e+00> : vector<16xf32>
    %312 = vector.multi_reduction <add>, %307, %cst_229 [1] : vector<16x32xf32> to vector<16xf32>
    %313 = vector.shape_cast %312 : vector<16xf32> to vector<16x1xf32>
    %cst_230 = arith.constant 3.200000e+01 : f32
    %314 = vector.broadcast %cst_230 : f32 to vector<16x1xf32>
    %315 = arith.divf %313, %314 : vector<16x1xf32>
    %316 = vector.broadcast %315 : vector<16x1xf32> to vector<16x32xf32>
    %317 = arith.subf %307, %316 : vector<16x32xf32>
    %318 = arith.mulf %317, %317 : vector<16x32xf32>
    %cst_231 = arith.constant dense<0.000000e+00> : vector<16xf32>
    %319 = vector.multi_reduction <add>, %318, %cst_231 [1] : vector<16x32xf32> to vector<16xf32>
    %320 = vector.shape_cast %319 : vector<16xf32> to vector<16x1xf32>
    %cst_232 = arith.constant 3.200000e+01 : f32
    %321 = vector.broadcast %cst_232 : f32 to vector<16x1xf32>
    %322 = arith.divf %320, %321 : vector<16x1xf32>
    %cst_233 = arith.constant 9.99999996E-13 : f32
    %323 = vector.broadcast %cst_233 : f32 to vector<16x1xf32>
    %324 = arith.addf %322, %323 : vector<16x1xf32>
    %325 = math.rsqrt %324 : vector<16x1xf32>
    %326 = vector.broadcast %325 : vector<16x1xf32> to vector<16x32xf32>
    %327 = arith.mulf %317, %326 : vector<16x32xf32>
    %328 = vector.broadcast %309 : vector<1x32xf32> to vector<16x32xf32>
    %329 = arith.mulf %327, %328 : vector<16x32xf32>
    %330 = vector.broadcast %311 : vector<1x32xf32> to vector<16x32xf32>
    %331 = arith.addf %329, %330 : vector<16x32xf32>
    %c1_234 = arith.constant 1 : index
    %c0_235 = arith.constant 0 : index
    %c0_236 = arith.constant 0 : index
    %332 = vector.load %arg12[%c1_234, %c0_235, %c0_236] : memref<2x32x128xf32, #tpu.memory_space<vmem>>, vector<1x32x128xf32>
    %333 = vector.shape_cast %332 : vector<1x32x128xf32> to vector<32x128xf32>
    %cst_237 = arith.constant dense<0.000000e+00> : vector<16x128xf32>
    %334 = tpu.matmul %331, %333, %cst_237 {dimension_numbers = #tpu.dot_dimension_numbers<[1], [0], [0], [1], [0, 0, 1, 1], [], []>} : vector<16x32xf32>, vector<32x128xf32>, vector<16x128xf32> -> vector<16x128xf32>
    %c1_238 = arith.constant 1 : index
    %c0_239 = arith.constant 0 : index
    %c0_240 = arith.constant 0 : index
    %335 = vector.load %arg13[%c1_238, %c0_239, %c0_240] : memref<2x1x128xf32, #tpu.memory_space<vmem>>, vector<1x1x128xf32>
    %336 = vector.shape_cast %335 : vector<1x1x128xf32> to vector<1x128xf32>
    %337 = vector.broadcast %336 : vector<1x128xf32> to vector<16x128xf32>
    %338 = arith.addf %334, %337 : vector<16x128xf32>
    %cst_241 = arith.constant 5.000000e-01 : f32
    %339 = vector.broadcast %cst_241 : f32 to vector<16x128xf32>
    %340 = arith.mulf %339, %338 : vector<16x128xf32>
    %cst_242 = arith.constant 0.707106769 : f32
    %341 = vector.broadcast %cst_242 : f32 to vector<16x128xf32>
    %342 = arith.mulf %338, %341 : vector<16x128xf32>
    %cst_243 = arith.constant 0.000000e+00 : f32
    %343 = vector.broadcast %cst_243 : f32 to vector<16x128xf32>
    %344 = arith.cmpf oge, %342, %343 : vector<16x128xf32>
    %cst_244 = arith.constant 1.000000e+00 : f32
    %cst_245 = arith.constant -1.000000e+00 : f32
    %345 = vector.broadcast %cst_244 : f32 to vector<16x128xf32>
    %346 = vector.broadcast %cst_245 : f32 to vector<16x128xf32>
    %347 = arith.select %344, %345, %346 : vector<16x128xi1>, vector<16x128xf32>
    %348 = math.absf %342 : vector<16x128xf32>
    %cst_246 = arith.constant 0.327591091 : f32
    %349 = vector.broadcast %cst_246 : f32 to vector<16x128xf32>
    %350 = arith.mulf %349, %348 : vector<16x128xf32>
    %cst_247 = arith.constant 1.000000e+00 : f32
    %351 = vector.broadcast %cst_247 : f32 to vector<16x128xf32>
    %352 = arith.addf %351, %350 : vector<16x128xf32>
    %cst_248 = arith.constant 1.000000e+00 : f32
    %353 = vector.broadcast %cst_248 : f32 to vector<16x128xf32>
    %354 = arith.divf %353, %352 : vector<16x128xf32>
    %cst_249 = arith.constant 1.06140542 : f32
    %355 = vector.broadcast %cst_249 : f32 to vector<16x128xf32>
    %356 = arith.mulf %355, %354 : vector<16x128xf32>
    %cst_250 = arith.constant 1.45315206 : f32
    %357 = vector.broadcast %cst_250 : f32 to vector<16x128xf32>
    %358 = arith.subf %356, %357 : vector<16x128xf32>
    %359 = arith.mulf %358, %354 : vector<16x128xf32>
    %cst_251 = arith.constant 1.42141378 : f32
    %360 = vector.broadcast %cst_251 : f32 to vector<16x128xf32>
    %361 = arith.addf %359, %360 : vector<16x128xf32>
    %362 = arith.mulf %361, %354 : vector<16x128xf32>
    %cst_252 = arith.constant 0.284496725 : f32
    %363 = vector.broadcast %cst_252 : f32 to vector<16x128xf32>
    %364 = arith.subf %362, %363 : vector<16x128xf32>
    %365 = arith.mulf %364, %354 : vector<16x128xf32>
    %cst_253 = arith.constant 0.254829586 : f32
    %366 = vector.broadcast %cst_253 : f32 to vector<16x128xf32>
    %367 = arith.addf %365, %366 : vector<16x128xf32>
    %368 = arith.mulf %367, %354 : vector<16x128xf32>
    %cst_254 = arith.constant 0.000000e+00 : f32
    %369 = vector.broadcast %cst_254 : f32 to vector<16x128xf32>
    %370 = arith.subf %369, %348 : vector<16x128xf32>
    %371 = arith.mulf %370, %348 : vector<16x128xf32>
    %372 = math.exp %371 : vector<16x128xf32>
    %373 = arith.mulf %368, %372 : vector<16x128xf32>
    %cst_255 = arith.constant 1.000000e+00 : f32
    %374 = vector.broadcast %cst_255 : f32 to vector<16x128xf32>
    %375 = arith.subf %374, %373 : vector<16x128xf32>
    %376 = arith.mulf %347, %375 : vector<16x128xf32>
    %cst_256 = arith.constant 1.000000e+00 : f32
    %377 = vector.broadcast %cst_256 : f32 to vector<16x128xf32>
    %378 = arith.addf %377, %376 : vector<16x128xf32>
    %379 = arith.mulf %340, %378 : vector<16x128xf32>
    %c1_257 = arith.constant 1 : index
    %c0_258 = arith.constant 0 : index
    %c0_259 = arith.constant 0 : index
    %380 = vector.load %arg14[%c1_257, %c0_258, %c0_259] : memref<2x128x32xf32, #tpu.memory_space<vmem>>, vector<1x128x32xf32>
    %381 = vector.shape_cast %380 : vector<1x128x32xf32> to vector<128x32xf32>
    %cst_260 = arith.constant dense<0.000000e+00> : vector<16x32xf32>
    %382 = tpu.matmul %379, %381, %cst_260 {dimension_numbers = #tpu.dot_dimension_numbers<[1], [0], [0], [1], [0, 0, 1, 1], [], []>} : vector<16x128xf32>, vector<128x32xf32>, vector<16x32xf32> -> vector<16x32xf32>
    %c1_261 = arith.constant 1 : index
    %c0_262 = arith.constant 0 : index
    %c0_263 = arith.constant 0 : index
    %383 = vector.load %arg15[%c1_261, %c0_262, %c0_263] : memref<2x1x32xf32, #tpu.memory_space<vmem>>, vector<1x1x32xf32>
    %384 = vector.shape_cast %383 : vector<1x1x32xf32> to vector<1x32xf32>
    %385 = vector.broadcast %384 : vector<1x32xf32> to vector<16x32xf32>
    %386 = arith.addf %382, %385 : vector<16x32xf32>
    %387 = arith.addf %386, %331 : vector<16x32xf32>
    %c1_264 = arith.constant 1 : index
    %c0_265 = arith.constant 0 : index
    %c0_266 = arith.constant 0 : index
    %388 = vector.load %arg16[%c1_264, %c0_265, %c0_266] : memref<2x1x32xf32, #tpu.memory_space<vmem>>, vector<1x1x32xf32>
    %389 = vector.shape_cast %388 : vector<1x1x32xf32> to vector<1x32xf32>
    %c1_267 = arith.constant 1 : index
    %c0_268 = arith.constant 0 : index
    %c0_269 = arith.constant 0 : index
    %390 = vector.load %arg17[%c1_267, %c0_268, %c0_269] : memref<2x1x32xf32, #tpu.memory_space<vmem>>, vector<1x1x32xf32>
    %391 = vector.shape_cast %390 : vector<1x1x32xf32> to vector<1x32xf32>
    %cst_270 = arith.constant dense<0.000000e+00> : vector<16xf32>
    %392 = vector.multi_reduction <add>, %387, %cst_270 [1] : vector<16x32xf32> to vector<16xf32>
    %393 = vector.shape_cast %392 : vector<16xf32> to vector<16x1xf32>
    %cst_271 = arith.constant 3.200000e+01 : f32
    %394 = vector.broadcast %cst_271 : f32 to vector<16x1xf32>
    %395 = arith.divf %393, %394 : vector<16x1xf32>
    %396 = vector.broadcast %395 : vector<16x1xf32> to vector<16x32xf32>
    %397 = arith.subf %387, %396 : vector<16x32xf32>
    %398 = arith.mulf %397, %397 : vector<16x32xf32>
    %cst_272 = arith.constant dense<0.000000e+00> : vector<16xf32>
    %399 = vector.multi_reduction <add>, %398, %cst_272 [1] : vector<16x32xf32> to vector<16xf32>
    %400 = vector.shape_cast %399 : vector<16xf32> to vector<16x1xf32>
    %cst_273 = arith.constant 3.200000e+01 : f32
    %401 = vector.broadcast %cst_273 : f32 to vector<16x1xf32>
    %402 = arith.divf %400, %401 : vector<16x1xf32>
    %cst_274 = arith.constant 9.99999996E-13 : f32
    %403 = vector.broadcast %cst_274 : f32 to vector<16x1xf32>
    %404 = arith.addf %402, %403 : vector<16x1xf32>
    %405 = math.rsqrt %404 : vector<16x1xf32>
    %406 = vector.broadcast %405 : vector<16x1xf32> to vector<16x32xf32>
    %407 = arith.mulf %397, %406 : vector<16x32xf32>
    %408 = vector.broadcast %389 : vector<1x32xf32> to vector<16x32xf32>
    %409 = arith.mulf %407, %408 : vector<16x32xf32>
    %410 = vector.broadcast %391 : vector<1x32xf32> to vector<16x32xf32>
    %411 = arith.addf %409, %410 : vector<16x32xf32>
    %c0_275 = arith.constant 0 : index
    %c0_276 = arith.constant 0 : index
    %412 = vector.load %arg18[%c0_275, %c0_276] : memref<16x32xf32, #tpu.memory_space<vmem>>, vector<16x32xf32>
    tpu.vector_store %arg18[%c0_275, %c0_276], %411 {strides = array<i32>} : memref<16x32xf32, #tpu.memory_space<vmem>>, vector<16x32xf32>,
    return
  }
}

</mosaic_0001>

<llo_original>
// kernel: tpu_custom_call.1
$region0: #{tpu_custom_call.1}
  #allocation0 [shape = 'u32[]', space=smem, size = 0x4, offset = 0x4, fixed_abs, tag = 'smem constant byte address 0x4 - core index']
  #allocation1 [shape = 'u32[144,128]{1,0:T(1,128)}', space=vmem, size = 0x12000, scoped, tag = 'internal scratch']
  %s0 = inlined_call_operand.vmem [shape: f32[16,32], index: 0, kind: input, shape index: {}]
  %s1 = inlined_call_operand.vmem [shape: f32[2,8,8], index: 1, kind: input, shape index: {}]
  %s2 = inlined_call_operand.vmem [shape: f32[2,2,32,16], index: 2, kind: input, shape index: {}]
  %s3 = inlined_call_operand.vmem [shape: f32[2,2,1,16], index: 3, kind: input, shape index: {}]
  %s4 = inlined_call_operand.vmem [shape: f32[2,2,32,16], index: 4, kind: input, shape index: {}]
  %s5 = inlined_call_operand.vmem [shape: f32[2,2,1,16], index: 5, kind: input, shape index: {}]
  %s6 = inlined_call_operand.vmem [shape: f32[2,2,32,16], index: 6, kind: input, shape index: {}]
  %s7 = inlined_call_operand.vmem [shape: f32[2,2,1,16], index: 7, kind: input, shape index: {}]
  %s8 = inlined_call_operand.vmem [shape: f32[2,2,16,32], index: 8, kind: input, shape index: {}]
  %s9 = inlined_call_operand.vmem [shape: f32[2,1,32], index: 9, kind: input, shape index: {}]
  %s10 = inlined_call_operand.vmem [shape: f32[2,1,32], index: 10, kind: input, shape index: {}]
  %s11 = inlined_call_operand.vmem [shape: f32[2,1,32], index: 11, kind: input, shape index: {}]
  %s12 = inlined_call_operand.vmem [shape: f32[2,32,128], index: 12, kind: input, shape index: {}]
  %s13 = inlined_call_operand.vmem [shape: f32[2,1,128], index: 13, kind: input, shape index: {}]
  %s14 = inlined_call_operand.vmem [shape: f32[2,128,32], index: 14, kind: input, shape index: {}]
  %s15 = inlined_call_operand.vmem [shape: f32[2,1,32], index: 15, kind: input, shape index: {}]
  %s16 = inlined_call_operand.vmem [shape: f32[2,1,32], index: 16, kind: input, shape index: {}]
  %s17 = inlined_call_operand.vmem [shape: f32[2,1,32], index: 17, kind: input, shape index: {}]
  %s18 = inlined_call_operand.hbm [shape: f32[16,32], index: 18, kind: output, shape index: {0}]
  %s19 = inlined_call_operand.hbm [shape: f32[2,2,2,8,8], index: 19, kind: output, shape index: {1}]
  %20 = xla_tuple %s18, %s19
  %s21 = sld [smem:[#allocation0]]
  $region90: #{tpu_custom_call.1} parent=0
    _
  %s23 = ssub.s32 1, %s21
  %s24 = scalar_select 0, %s23, %s21
  $region1: #{tpu_custom_call.1} parent=0
    #allocation2 [shape = 'u8[8192]{0}', space=vmem, size = 0x2000, scoped, tag = 'output window, operand 0, single buffered']
    #allocation3 [shape = 's32[1]{0}', space=sflag, size = 0x4, scoped, tag = 'scoped memory for tpu_custom_call.1']
    #allocation4 [shape = 'u8[32768]{0}', space=vmem, size = 0x8000, scoped, tag = 'output window, operand 1, single buffered']
    #allocation5 [shape = 's32[1]{0}', space=sflag, size = 0x4, scoped, tag = 'scoped memory for tpu_custom_call.1']
    %25 = vsyncpa [#allocation3], 0
    %26 = vsyncpa [#allocation5], 0
    // Predicated region
    $region2: #{tpu_custom_call.1} parent=1 // pred_check
      _
    $region3: #{tpu_custom_call.1} parent=1 // pred_check_branch
      %28 = sbr.rel (0) target = $region5
    $region4: #{tpu_custom_call.1} parent=1 // pred_region
      _
    $region5: #{tpu_custom_call.1} parent=1 // pred_fallthru
      _
    // Predicated region
    $region6: #{tpu_custom_call.1} parent=1 // pred_check
      _
    $region7: #{tpu_custom_call.1} parent=1 // pred_check_branch
      %30 = sbr.rel (0) target = $region9
    $region8: #{tpu_custom_call.1} parent=1 // pred_region
      _
    $region9: #{tpu_custom_call.1} parent=1 // pred_fallthru
      _
    // Predicated region
    $region10: #{tpu_custom_call.1} parent=1 // pred_check
      _
    $region11: #{tpu_custom_call.1} parent=1 // pred_check_branch
      %32 = sbr.rel (0) target = $region13
    $region12: #{tpu_custom_call.1} parent=1 // pred_region
      _
    $region13: #{tpu_custom_call.1} parent=1 // pred_fallthru
      _
    // Predicated region
    $region14: #{tpu_custom_call.1} parent=1 // pred_check
      _
    $region15: #{tpu_custom_call.1} parent=1 // pred_check_branch
      %34 = sbr.rel (0) target = $region17
    $region16: #{tpu_custom_call.1} parent=1 // pred_region
      _
    $region17: #{tpu_custom_call.1} parent=1 // pred_fallthru
      _
    // Predicated region
    $region18: #{tpu_custom_call.1} parent=1 // pred_check
      _
    $region19: #{tpu_custom_call.1} parent=1 // pred_check_branch
      %36 = sbr.rel (0) target = $region21
    $region20: #{tpu_custom_call.1} parent=1 // pred_region
      _
    $region21: #{tpu_custom_call.1} parent=1 // pred_fallthru
      _
    // Predicated region
    $region22: #{tpu_custom_call.1} parent=1 // pred_check
      _
    $region23: #{tpu_custom_call.1} parent=1 // pred_check_branch
      %38 = sbr.rel (0) target = $region25
    $region24: #{tpu_custom_call.1} parent=1 // pred_region
      _
    $region25: #{tpu_custom_call.1} parent=1 // pred_fallthru
      _
    // Predicated region
    $region26: #{tpu_custom_call.1} parent=1 // pred_check
      _
    $region27: #{tpu_custom_call.1} parent=1 // pred_check_branch
      %40 = sbr.rel (0) target = $region29
    $region28: #{tpu_custom_call.1} parent=1 // pred_region
      _
    $region29: #{tpu_custom_call.1} parent=1 // pred_fallthru
      _
    // Predicated region
    $region30: #{tpu_custom_call.1} parent=1 // pred_check
      _
    $region31: #{tpu_custom_call.1} parent=1 // pred_check_branch
      %42 = sbr.rel (0) target = $region33
    $region32: #{tpu_custom_call.1} parent=1 // pred_region
      _
    $region33: #{tpu_custom_call.1} parent=1 // pred_fallthru
      _
    // Predicated region
    $region34: #{tpu_custom_call.1} parent=1 // pred_check
      _
    $region35: #{tpu_custom_call.1} parent=1 // pred_check_branch
      %44 = sbr.rel (0) target = $region37
    $region36: #{tpu_custom_call.1} parent=1 // pred_region
      _
    $region37: #{tpu_custom_call.1} parent=1 // pred_fallthru
      _
    // Predicated region
    $region38: #{tpu_custom_call.1} parent=1 // pred_check
      _
    $region39: #{tpu_custom_call.1} parent=1 // pred_check_branch
      %46 = sbr.rel (0) target = $region41
    $region40: #{tpu_custom_call.1} parent=1 // pred_region
      _
    $region41: #{tpu_custom_call.1} parent=1 // pred_fallthru
      _
    // Predicated region
    $region42: #{tpu_custom_call.1} parent=1 // pred_check
      _
    $region43: #{tpu_custom_call.1} parent=1 // pred_check_branch
      %48 = sbr.rel (0) target = $region45
    $region44: #{tpu_custom_call.1} parent=1 // pred_region
      _
    $region45: #{tpu_custom_call.1} parent=1 // pred_fallthru
      _
    // Predicated region
    $region46: #{tpu_custom_call.1} parent=1 // pred_check
      _
    $region47: #{tpu_custom_call.1} parent=1 // pred_check_branch
      %50 = sbr.rel (0) target = $region49
    $region48: #{tpu_custom_call.1} parent=1 // pred_region
      _
    $region49: #{tpu_custom_call.1} parent=1 // pred_fallthru
      _
    // Predicated region
    $region50: #{tpu_custom_call.1} parent=1 // pred_check
      _
    $region51: #{tpu_custom_call.1} parent=1 // pred_check_branch
      %52 = sbr.rel (0) target = $region53
    $region52: #{tpu_custom_call.1} parent=1 // pred_region
      _
    $region53: #{tpu_custom_call.1} parent=1 // pred_fallthru
      _
    // Predicated region
    $region54: #{tpu_custom_call.1} parent=1 // pred_check
      _
    $region55: #{tpu_custom_call.1} parent=1 // pred_check_branch
      %54 = sbr.rel (0) target = $region57
    $region56: #{tpu_custom_call.1} parent=1 // pred_region
      _
    $region57: #{tpu_custom_call.1} parent=1 // pred_fallthru
      _
    // Predicated region
    $region58: #{tpu_custom_call.1} parent=1 // pred_check
      _
    $region59: #{tpu_custom_call.1} parent=1 // pred_check_branch
      %56 = sbr.rel (0) target = $region61
    $region60: #{tpu_custom_call.1} parent=1 // pred_region
      _
    $region61: #{tpu_custom_call.1} parent=1 // pred_fallthru
      _
    // Predicated region
    $region62: #{tpu_custom_call.1} parent=1 // pred_check
      _
    $region63: #{tpu_custom_call.1} parent=1 // pred_check_branch
      %58 = sbr.rel (0) target = $region65
    $region64: #{tpu_custom_call.1} parent=1 // pred_region
      _
    $region65: #{tpu_custom_call.1} parent=1 // pred_fallthru
      _
    // Predicated region
    $region66: #{tpu_custom_call.1} parent=1 // pred_check
      _
    $region67: #{tpu_custom_call.1} parent=1 // pred_check_branch
      %60 = sbr.rel (0) target = $region69
    $region68: #{tpu_custom_call.1} parent=1 // pred_region
      _
    $region69: #{tpu_custom_call.1} parent=1 // pred_fallthru
      _
    // Predicated region
    $region70: #{tpu_custom_call.1} parent=1 // pred_check
      _
    $region71: #{tpu_custom_call.1} parent=1 // pred_check_branch
      %62 = sbr.rel (0) target = $region73
    $region72: #{tpu_custom_call.1} parent=1 // pred_region
      _
    $region73: #{tpu_custom_call.1} parent=1 // pred_fallthru
      _
    %v63 = vld [vmem:[%s0] sm:$0xff]
    %v64 = vld [vmem:[%s0 + $0x8] sm:$0xff]
    %v65 = vld [vmem:[%s1] sm:$0xff]
    %v66 = vld [vmem:[%s1 + $0x8] sm:$0xff]
    %vm67 = vcmp.gt.f32.partialorder %v65, 0.5
    %vm68 = vcmp.gt.f32.partialorder %v66, 0.5
    %v69 = vld [vmem:[%s2] sm:$0xff]
    %v70 = vld [vmem:[%s2 + $0x8] sm:$0xff]
    %v71 = vld [vmem:[%s2 + $0x10] sm:$0xff]
    %v72 = vld [vmem:[%s2 + $0x18] sm:$0xff]
    %v73 = vld [vmem:[%s3] sm:$0x1]
    %v75 = vlaneseq
    %v76 = vshrl.u32 %v75, 7
    %v77 = vsub.s32 0, %v76
    %v78 = vrot.slane %v73, %v77
    %vm80 = vcmask 261120
    %v82 = vsel %vm80, %v63, 0
    %v85 = vsel %vm80, %v64, 0
    %87 = vmatprep.subr.mxu0 0.0
    %88 = vmatpush1.msra.mxu0 0.0
    %89 = vmatprep.subr.mxu0 0.0
    %90 = vmatpush1.msra.mxu0 0.0
    %91 = vmatprep.subr.mxu0 0.0
    %92 = vmatpush1.msra.mxu0 0.0
    %93 = vmatprep.subr.mxu0 0.0
    %94 = vmatpush1.msra.mxu0 0.0
    %95 = vmatprep.subr.mxu0 0.0
    %96 = vmatpush1.msra.mxu0 0.0
    %97 = vmatprep.subr.mxu0 0.0
    %98 = vmatpush1.msra.mxu0 0.0
    %99 = vmatprep.subr.mxu0 0.0
    %100 = vmatpush1.msra.mxu0 0.0
    %101 = vmatprep.subr.mxu0 0.0
    %102 = vmatpush1.msra.mxu0 0.0
    %103 = vmatprep.subr.mxu0 0.0
    %104 = vmatpush1.msra.mxu0 0.0
    %105 = vmatprep.subr.mxu0 0.0
    %106 = vmatpush1.msra.mxu0 0.0
    %107 = vmatprep.subr.mxu0 0.0
    %108 = vmatpush1.msra.mxu0 0.0
    %109 = vmatprep.subr.mxu0 0.0
    %110 = vmatpush1.msra.mxu0 0.0
    %111 = vmatprep.subr.mxu0 0.0
    %112 = vmatpush1.msra.mxu0 %v72
    %113 = vmatprep.subr.mxu0 0.0
    %114 = vmatpush1.msra.mxu0 %v71
    %115 = vmatprep.subr.mxu0 0.0
    %116 = vmatpush1.msra.mxu0 %v70
    %117 = vmatprep.subr.mxu0 0.0
    %118 = vmatpush1.msra.mxu0 %v69
    %119 = vmatprep.subr.mxu0 0.0
    %120 = vmatpush2.msra.mxu0 0.0
    %121 = vmatprep.subr.mxu0 0.0
    %122 = vmatpush2.msra.mxu0 0.0
    %123 = vmatprep.subr.mxu0 0.0
    %124 = vmatpush2.msra.mxu0 0.0
    %125 = vmatprep.subr.mxu0 0.0
    %126 = vmatpush2.msra.mxu0 0.0
    %127 = vmatprep.subr.mxu0 0.0
    %128 = vmatpush2.msra.mxu0 0.0
    %129 = vmatprep.subr.mxu0 0.0
    %130 = vmatpush2.msra.mxu0 0.0
    %131 = vmatprep.subr.mxu0 0.0
    %132 = vmatpush2.msra.mxu0 0.0
    %133 = vmatprep.subr.mxu0 0.0
    %134 = vmatpush2.msra.mxu0 0.0
    %135 = vmatprep.subr.mxu0 0.0
    %136 = vmatpush2.msra.mxu0 0.0
    %137 = vmatprep.subr.mxu0 0.0
    %138 = vmatpush2.msra.mxu0 0.0
    %139 = vmatprep.subr.mxu0 0.0
    %140 = vmatpush2.msra.mxu0 0.0
    %141 = vmatprep.subr.mxu0 0.0
    %142 = vmatpush2.msra.mxu0 0.0
    %143 = vmatprep.subr.mxu0 0.0
    %144 = vmatpush2.msra.mxu0 0.0
    %145 = vmatprep.subr.mxu0 0.0
    %146 = vmatpush2.msra.mxu0 0.0
    %147 = vmatprep.subr.mxu0 0.0
    %148 = vmatpush2.msra.mxu0 0.0
    %149 = vmatprep.subr.mxu0 0.0
    %150 = vmatpush2.msra.mxu0 0.0
    %151 = vmatprep.mubr.f32.mxu0 0.0
    %152 = vmatmul.mubr.f32.gmra.mxu0 %v82
    %v153 = vpop.f32.mrf.mxu0
    %v154 = vadd.f32 %v78, %v153
    %v155 = vpop.f32.mrf.mxu0
    %156 = vmatprep.mubr.f32.mxu0 0.0
    %157 = vmatmul.mubr.f32.gmra.mxu0 %v85
    %v158 = vpop.f32.mrf.mxu0
    %v159 = vadd.f32 %v78, %v158
    %v160 = vpop.f32.mrf.mxu0
    %161 = vdwg.mxu0
    %v162 = vld [vmem:[%s4] sm:$0xff]
    %v163 = vld [vmem:[%s4 + $0x8] sm:$0xff]
    %v164 = vld [vmem:[%s4 + $0x10] sm:$0xff]
    %v165 = vld [vmem:[%s4 + $0x18] sm:$0xff]
    %v166 = vld [vmem:[%s5] sm:$0x1]
    %v168 = vlaneseq
    %v169 = vshrl.u32 %v168, 7
    %v170 = vsub.s32 0, %v169
    %v171 = vrot.slane %v166, %v170
    %173 = vmatprep.subr.mxu0 0.0
    %174 = vmatpush1.msra.mxu0 0.0
    %175 = vmatprep.subr.mxu0 0.0
    %176 = vmatpush1.msra.mxu0 0.0
    %177 = vmatprep.subr.mxu0 0.0
    %178 = vmatpush1.msra.mxu0 0.0
    %179 = vmatprep.subr.mxu0 0.0
    %180 = vmatpush1.msra.mxu0 0.0
    %181 = vmatprep.subr.mxu0 0.0
    %182 = vmatpush1.msra.mxu0 0.0
    %183 = vmatprep.subr.mxu0 0.0
    %184 = vmatpush1.msra.mxu0 0.0
    %185 = vmatprep.subr.mxu0 0.0
    %186 = vmatpush1.msra.mxu0 0.0
    %187 = vmatprep.subr.mxu0 0.0
    %188 = vmatpush1.msra.mxu0 0.0
    %189 = vmatprep.subr.mxu0 0.0
    %190 = vmatpush1.msra.mxu0 0.0
    %191 = vmatprep.subr.mxu0 0.0
    %192 = vmatpush1.msra.mxu0 0.0
    %193 = vmatprep.subr.mxu0 0.0
    %194 = vmatpush1.msra.mxu0 0.0
    %195 = vmatprep.subr.mxu0 0.0
    %196 = vmatpush1.msra.mxu0 0.0
    %197 = vmatprep.subr.mxu0 0.0
    %198 = vmatpush1.msra.mxu0 %v165
    %199 = vmatprep.subr.mxu0 0.0
    %200 = vmatpush1.msra.mxu0 %v164
    %201 = vmatprep.subr.mxu0 0.0
    %202 = vmatpush1.msra.mxu0 %v163
    %203 = vmatprep.subr.mxu0 0.0
    %204 = vmatpush1.msra.mxu0 %v162
    %205 = vmatprep.subr.mxu0 0.0
    %206 = vmatpush2.msra.mxu0 0.0
    %207 = vmatprep.subr.mxu0 0.0
    %208 = vmatpush2.msra.mxu0 0.0
    %209 = vmatprep.subr.mxu0 0.0
    %210 = vmatpush2.msra.mxu0 0.0
    %211 = vmatprep.subr.mxu0 0.0
    %212 = vmatpush2.msra.mxu0 0.0
    %213 = vmatprep.subr.mxu0 0.0
    %214 = vmatpush2.msra.mxu0 0.0
    %215 = vmatprep.subr.mxu0 0.0
    %216 = vmatpush2.msra.mxu0 0.0
    %217 = vmatprep.subr.mxu0 0.0
    %218 = vmatpush2.msra.mxu0 0.0
    %219 = vmatprep.subr.mxu0 0.0
    %220 = vmatpush2.msra.mxu0 0.0
    %221 = vmatprep.subr.mxu0 0.0
    %222 = vmatpush2.msra.mxu0 0.0
    %223 = vmatprep.subr.mxu0 0.0
    %224 = vmatpush2.msra.mxu0 0.0
    %225 = vmatprep.subr.mxu0 0.0
    %226 = vmatpush2.msra.mxu0 0.0
    %227 = vmatprep.subr.mxu0 0.0
    %228 = vmatpush2.msra.mxu0 0.0
    %229 = vmatprep.subr.mxu0 0.0
    %230 = vmatpush2.msra.mxu0 0.0
    %231 = vmatprep.subr.mxu0 0.0
    %232 = vmatpush2.msra.mxu0 0.0
    %233 = vmatprep.subr.mxu0 0.0
    %234 = vmatpush2.msra.mxu0 0.0
    %235 = vmatprep.subr.mxu0 0.0
    %236 = vmatpush2.msra.mxu0 0.0
    %237 = vmatprep.mubr.f32.mxu0 0.0
    %238 = vmatmul.mubr.f32.gmra.mxu0 %v82
    %v239 = vpop.f32.mrf.mxu0
    %v240 = vadd.f32 %v171, %v239
    %v241 = vpop.f32.mrf.mxu0
    %242 = vmatprep.mubr.f32.mxu0 0.0
    %243 = vmatmul.mubr.f32.gmra.mxu0 %v85
    %v244 = vpop.f32.mrf.mxu0
    %v245 = vadd.f32 %v171, %v244
    %v246 = vpop.f32.mrf.mxu0
    %247 = vdwg.mxu0
    %v248 = vld [vmem:[%s6] sm:$0xff]
    %v249 = vld [vmem:[%s6 + $0x8] sm:$0xff]
    %v250 = vld [vmem:[%s6 + $0x10] sm:$0xff]
    %v251 = vld [vmem:[%s6 + $0x18] sm:$0xff]
    %v252 = vld [vmem:[%s7] sm:$0x1]
    %v254 = vlaneseq
    %v255 = vshrl.u32 %v254, 7
    %v256 = vsub.s32 0, %v255
    %v257 = vrot.slane %v252, %v256
    %259 = vmatprep.subr.mxu0 0.0
    %260 = vmatpush1.msra.mxu0 0.0
    %261 = vmatprep.subr.mxu0 0.0
    %262 = vmatpush1.msra.mxu0 0.0
    %263 = vmatprep.subr.mxu0 0.0
    %264 = vmatpush1.msra.mxu0 0.0
    %265 = vmatprep.subr.mxu0 0.0
    %266 = vmatpush1.msra.mxu0 0.0
    %267 = vmatprep.subr.mxu0 0.0
    %268 = vmatpush1.msra.mxu0 0.0
    %269 = vmatprep.subr.mxu0 0.0
    %270 = vmatpush1.msra.mxu0 0.0
    %271 = vmatprep.subr.mxu0 0.0
    %272 = vmatpush1.msra.mxu0 0.0
    %273 = vmatprep.subr.mxu0 0.0
    %274 = vmatpush1.msra.mxu0 0.0
    %275 = vmatprep.subr.mxu0 0.0
    %276 = vmatpush1.msra.mxu0 0.0
    %277 = vmatprep.subr.mxu0 0.0
    %278 = vmatpush1.msra.mxu0 0.0
    %279 = vmatprep.subr.mxu0 0.0
    %280 = vmatpush1.msra.mxu0 0.0
    %281 = vmatprep.subr.mxu0 0.0
    %282 = vmatpush1.msra.mxu0 0.0
    %283 = vmatprep.subr.mxu0 0.0
    %284 = vmatpush1.msra.mxu0 %v251
    %285 = vmatprep.subr.mxu0 0.0
    %286 = vmatpush1.msra.mxu0 %v250
    %287 = vmatprep.subr.mxu0 0.0
    %288 = vmatpush1.msra.mxu0 %v249
    %289 = vmatprep.subr.mxu0 0.0
    %290 = vmatpush1.msra.mxu0 %v248
    %291 = vmatprep.subr.mxu0 0.0
    %292 = vmatpush2.msra.mxu0 0.0
    %293 = vmatprep.subr.mxu0 0.0
    %294 = vmatpush2.msra.mxu0 0.0
    %295 = vmatprep.subr.mxu0 0.0
    %296 = vmatpush2.msra.mxu0 0.0
    %297 = vmatprep.subr.mxu0 0.0
    %298 = vmatpush2.msra.mxu0 0.0
    %299 = vmatprep.subr.mxu0 0.0
    %300 = vmatpush2.msra.mxu0 0.0
    %301 = vmatprep.subr.mxu0 0.0
    %302 = vmatpush2.msra.mxu0 0.0
    %303 = vmatprep.subr.mxu0 0.0
    %304 = vmatpush2.msra.mxu0 0.0
    %305 = vmatprep.subr.mxu0 0.0
    %306 = vmatpush2.msra.mxu0 0.0
    %307 = vmatprep.subr.mxu0 0.0
    %308 = vmatpush2.msra.mxu0 0.0
    %309 = vmatprep.subr.mxu0 0.0
    %310 = vmatpush2.msra.mxu0 0.0
    %311 = vmatprep.subr.mxu0 0.0
    %312 = vmatpush2.msra.mxu0 0.0
    %313 = vmatprep.subr.mxu0 0.0
    %314 = vmatpush2.msra.mxu0 0.0
    %315 = vmatprep.subr.mxu0 0.0
    %316 = vmatpush2.msra.mxu0 0.0
    %317 = vmatprep.subr.mxu0 0.0
    %318 = vmatpush2.msra.mxu0 0.0
    %319 = vmatprep.subr.mxu0 0.0
    %320 = vmatpush2.msra.mxu0 0.0
    %321 = vmatprep.subr.mxu0 0.0
    %322 = vmatpush2.msra.mxu0 0.0
    %323 = vmatprep.mubr.f32.mxu0 0.0
    %324 = vmatmul.mubr.f32.gmra.mxu0 %v82
    %v325 = vpop.f32.mrf.mxu0
    %v326 = vadd.f32 %v257, %v325
    %v327 = vpop.f32.mrf.mxu0
    %328 = vmatprep.mubr.f32.mxu0 0.0
    %329 = vmatmul.mubr.f32.gmra.mxu0 %v85
    %v330 = vpop.f32.mrf.mxu0
    %v331 = vadd.f32 %v257, %v330
    %v332 = vpop.f32.mrf.mxu0
    %333 = vdwg.mxu0
    %vm334 = vcmask 130048
    %v336 = vsel %vm334, %v154, 0
    %v339 = vsel %vm334, %v240, 0
    %341 = vmatprep.subr.mxu0 0.0
    %342 = vmatpush1.xpose.msra.mxu0 0.0
    %343 = vmatprep.subr.mxu0 0.0
    %344 = vmatpush1.xpose.msra.mxu0 0.0
    %345 = vmatprep.subr.mxu0 0.0
    %346 = vmatpush1.xpose.msra.mxu0 0.0
    %347 = vmatprep.subr.mxu0 0.0
    %348 = vmatpush1.xpose.msra.mxu0 0.0
    %349 = vmatprep.subr.mxu0 0.0
    %350 = vmatpush1.xpose.msra.mxu0 0.0
    %351 = vmatprep.subr.mxu0 0.0
    %352 = vmatpush1.xpose.msra.mxu0 0.0
    %353 = vmatprep.subr.mxu0 0.0
    %354 = vmatpush1.xpose.msra.mxu0 0.0
    %355 = vmatprep.subr.mxu0 0.0
    %356 = vmatpush1.xpose.msra.mxu0 0.0
    %357 = vmatprep.subr.mxu0 0.0
    %358 = vmatpush1.xpose.msra.mxu0 0.0
    %359 = vmatprep.subr.mxu0 0.0
    %360 = vmatpush1.xpose.msra.mxu0 0.0
    %361 = vmatprep.subr.mxu0 0.0
    %362 = vmatpush1.xpose.msra.mxu0 0.0
    %363 = vmatprep.subr.mxu0 0.0
    %364 = vmatpush1.xpose.msra.mxu0 0.0
    %365 = vmatprep.subr.mxu0 0.0
    %366 = vmatpush1.xpose.msra.mxu0 0.0
    %367 = vmatprep.subr.mxu0 0.0
    %368 = vmatpush1.xpose.msra.mxu0 0.0
    %369 = vmatprep.subr.mxu0 0.0
    %370 = vmatpush1.xpose.msra.mxu0 0.0
    %371 = vmatprep.subr.mxu0 0.0
    %372 = vmatpush1.xpose.msra.mxu0 %v339
    %373 = vmatprep.subr.mxu0 0.0
    %374 = vmatpush2.xpose.msra.mxu0 0.0
    %375 = vmatprep.subr.mxu0 0.0
    %376 = vmatpush2.xpose.msra.mxu0 0.0
    %377 = vmatprep.subr.mxu0 0.0
    %378 = vmatpush2.xpose.msra.mxu0 0.0
    %379 = vmatprep.subr.mxu0 0.0
    %380 = vmatpush2.xpose.msra.mxu0 0.0
    %381 = vmatprep.subr.mxu0 0.0
    %382 = vmatpush2.xpose.msra.mxu0 0.0
    %383 = vmatprep.subr.mxu0 0.0
    %384 = vmatpush2.xpose.msra.mxu0 0.0
    %385 = vmatprep.subr.mxu0 0.0
    %386 = vmatpush2.xpose.msra.mxu0 0.0
    %387 = vmatprep.subr.mxu0 0.0
    %388 = vmatpush2.xpose.msra.mxu0 0.0
    %389 = vmatprep.subr.mxu0 0.0
    %390 = vmatpush2.xpose.msra.mxu0 0.0
    %391 = vmatprep.subr.mxu0 0.0
    %392 = vmatpush2.xpose.msra.mxu0 0.0
    %393 = vmatprep.subr.mxu0 0.0
    %394 = vmatpush2.xpose.msra.mxu0 0.0
    %395 = vmatprep.subr.mxu0 0.0
    %396 = vmatpush2.xpose.msra.mxu0 0.0
    %397 = vmatprep.subr.mxu0 0.0
    %398 = vmatpush2.xpose.msra.mxu0 0.0
    %399 = vmatprep.subr.mxu0 0.0
    %400 = vmatpush2.xpose.msra.mxu0 0.0
    %401 = vmatprep.subr.mxu0 0.0
    %402 = vmatpush2.xpose.msra.mxu0 0.0
    %403 = vmatprep.subr.mxu0 0.0
    %404 = vmatpush2.xpose.msra.mxu0 0.0
    %405 = vmatprep.mubr.f32.mxu0 0.0
    %406 = vmatmul.mubr.f32.gmra.mxu0 %v336
    %v407 = vpop.f32.mrf.mxu0
    %v408 = vadd.f32 0.0, %v407
    %v409 = vpop.f32.mrf.mxu0
    %410 = vdwg.mxu0
    %v412 = vsel %vm334, %v159, 0
    %v415 = vsel %vm334, %v245, 0
    %417 = vmatprep.subr.mxu0 0.0
    %418 = vmatpush1.xpose.msra.mxu0 0.0
    %419 = vmatprep.subr.mxu0 0.0
    %420 = vmatpush1.xpose.msra.mxu0 0.0
    %421 = vmatprep.subr.mxu0 0.0
    %422 = vmatpush1.xpose.msra.mxu0 0.0
    %423 = vmatprep.subr.mxu0 0.0
    %424 = vmatpush1.xpose.msra.mxu0 0.0
    %425 = vmatprep.subr.mxu0 0.0
    %426 = vmatpush1.xpose.msra.mxu0 0.0
    %427 = vmatprep.subr.mxu0 0.0
    %428 = vmatpush1.xpose.msra.mxu0 0.0
    %429 = vmatprep.subr.mxu0 0.0
    %430 = vmatpush1.xpose.msra.mxu0 0.0
    %431 = vmatprep.subr.mxu0 0.0
    %432 = vmatpush1.xpose.msra.mxu0 0.0
    %433 = vmatprep.subr.mxu0 0.0
    %434 = vmatpush1.xpose.msra.mxu0 0.0
    %435 = vmatprep.subr.mxu0 0.0
    %436 = vmatpush1.xpose.msra.mxu0 0.0
    %437 = vmatprep.subr.mxu0 0.0
    %438 = vmatpush1.xpose.msra.mxu0 0.0
    %439 = vmatprep.subr.mxu0 0.0
    %440 = vmatpush1.xpose.msra.mxu0 0.0
    %441 = vmatprep.subr.mxu0 0.0
    %442 = vmatpush1.xpose.msra.mxu0 0.0
    %443 = vmatprep.subr.mxu0 0.0
    %444 = vmatpush1.xpose.msra.mxu0 0.0
    %445 = vmatprep.subr.mxu0 0.0
    %446 = vmatpush1.xpose.msra.mxu0 0.0
    %447 = vmatprep.subr.mxu0 0.0
    %448 = vmatpush1.xpose.msra.mxu0 %v415
    %449 = vmatprep.subr.mxu0 0.0
    %450 = vmatpush2.xpose.msra.mxu0 0.0
    %451 = vmatprep.subr.mxu0 0.0
    %452 = vmatpush2.xpose.msra.mxu0 0.0
    %453 = vmatprep.subr.mxu0 0.0
    %454 = vmatpush2.xpose.msra.mxu0 0.0
    %455 = vmatprep.subr.mxu0 0.0
    %456 = vmatpush2.xpose.msra.mxu0 0.0
    %457 = vmatprep.subr.mxu0 0.0
    %458 = vmatpush2.xpose.msra.mxu0 0.0
    %459 = vmatprep.subr.mxu0 0.0
    %460 = vmatpush2.xpose.msra.mxu0 0.0
    %461 = vmatprep.subr.mxu0 0.0
    %462 = vmatpush2.xpose.msra.mxu0 0.0
    %463 = vmatprep.subr.mxu0 0.0
    %464 = vmatpush2.xpose.msra.mxu0 0.0
    %465 = vmatprep.subr.mxu0 0.0
    %466 = vmatpush2.xpose.msra.mxu0 0.0
    %467 = vmatprep.subr.mxu0 0.0
    %468 = vmatpush2.xpose.msra.mxu0 0.0
    %469 = vmatprep.subr.mxu0 0.0
    %470 = vmatpush2.xpose.msra.mxu0 0.0
    %471 = vmatprep.subr.mxu0 0.0
    %472 = vmatpush2.xpose.msra.mxu0 0.0
    %473 = vmatprep.subr.mxu0 0.0
    %474 = vmatpush2.xpose.msra.mxu0 0.0
    %475 = vmatprep.subr.mxu0 0.0
    %476 = vmatpush2.xpose.msra.mxu0 0.0
    %477 = vmatprep.subr.mxu0 0.0
    %478 = vmatpush2.xpose.msra.mxu0 0.0
    %479 = vmatprep.subr.mxu0 0.0
    %480 = vmatpush2.xpose.msra.mxu0 0.0
    %481 = vmatprep.mubr.f32.mxu0 0.0
    %482 = vmatmul.mubr.f32.gmra.mxu0 %v412
    %v483 = vpop.f32.mrf.mxu0
    %v484 = vadd.f32 0.0, %v483
    %v485 = vpop.f32.mrf.mxu0
    %486 = vdwg.mxu0
    %v487 = vmul.f32 %v408, 0.25
    %v488 = vmul.f32 %v484, 0.25
    %v489 = vsel %vm67, -1e+09, %v487
    %v490 = vsel %vm68, -1e+09, %v488
    %vm491 = vcmask 64512
    %v492 = vsel %vm491, %v489, -inf
    %493 = vmax.xlane.f32.xlu0 %v492
    %v494 = vpop.xlane.xlu0 %493
    %v495 = vsel %vm491, %v490, -inf
    %496 = vmax.xlane.f32.xlu0 %v495
    %v497 = vpop.xlane.xlu0 %496
    %v498 = vsub.f32 %v489, %v494
    %v499 = vsub.f32 %v490, %v497
    %v500 = vmul.f32 %v498, 1.442695
    %v501 = vpow.pop %v500
    %v502 = vmul.f32 %v499, 1.442695
    %v503 = vpow.pop %v502
    %v504 = vsel %vm491, %v501, 0.0
    %505 = vadd.xlane.f32.xlu0 %v504
    %v506 = vpop.xlane.xlu0 %505
    %v507 = vsel %vm491, %v503, 0.0
    %508 = vadd.xlane.f32.xlu0 %v507
    %v509 = vpop.xlane.xlu0 %508
    %v510 = vrcp.pop %v506
    %v511 = vrcp.pop %v509
    %v512 = vmul.f32 %v501, %v510
    %v513 = vmul.f32 %v503, %v511
    %v515 = vsel %vm491, %v512, 0
    %517 = vmatprep.subr.mxu0 0.0
    %518 = vmatpush1.msra.mxu0 0.0
    %519 = vmatprep.subr.mxu0 0.0
    %520 = vmatpush1.msra.mxu0 0.0
    %521 = vmatprep.subr.mxu0 0.0
    %522 = vmatpush1.msra.mxu0 0.0
    %523 = vmatprep.subr.mxu0 0.0
    %524 = vmatpush1.msra.mxu0 0.0
    %525 = vmatprep.subr.mxu0 0.0
    %526 = vmatpush1.msra.mxu0 0.0
    %527 = vmatprep.subr.mxu0 0.0
    %528 = vmatpush1.msra.mxu0 0.0
    %529 = vmatprep.subr.mxu0 0.0
    %530 = vmatpush1.msra.mxu0 0.0
    %531 = vmatprep.subr.mxu0 0.0
    %532 = vmatpush1.msra.mxu0 0.0
    %533 = vmatprep.subr.mxu0 0.0
    %534 = vmatpush1.msra.mxu0 0.0
    %535 = vmatprep.subr.mxu0 0.0
    %536 = vmatpush1.msra.mxu0 0.0
    %537 = vmatprep.subr.mxu0 0.0
    %538 = vmatpush1.msra.mxu0 0.0
    %539 = vmatprep.subr.mxu0 0.0
    %540 = vmatpush1.msra.mxu0 0.0
    %541 = vmatprep.subr.mxu0 0.0
    %542 = vmatpush1.msra.mxu0 0.0
    %543 = vmatprep.subr.mxu0 0.0
    %544 = vmatpush1.msra.mxu0 0.0
    %545 = vmatprep.subr.mxu0 0.0
    %546 = vmatpush1.msra.mxu0 0.0
    %547 = vmatprep.subr.mxu0 0.0
    %548 = vmatpush1.msra.mxu0 %v326
    %549 = vmatprep.subr.mxu0 0.0
    %550 = vmatpush2.msra.mxu0 0.0
    %551 = vmatprep.subr.mxu0 0.0
    %552 = vmatpush2.msra.mxu0 0.0
    %553 = vmatprep.subr.mxu0 0.0
    %554 = vmatpush2.msra.mxu0 0.0
    %555 = vmatprep.subr.mxu0 0.0
    %556 = vmatpush2.msra.mxu0 0.0
    %557 = vmatprep.subr.mxu0 0.0
    %558 = vmatpush2.msra.mxu0 0.0
    %559 = vmatprep.subr.mxu0 0.0
    %560 = vmatpush2.msra.mxu0 0.0
    %561 = vmatprep.subr.mxu0 0.0
    %562 = vmatpush2.msra.mxu0 0.0
    %563 = vmatprep.subr.mxu0 0.0
    %564 = vmatpush2.msra.mxu0 0.0
    %565 = vmatprep.subr.mxu0 0.0
    %566 = vmatpush2.msra.mxu0 0.0
    %567 = vmatprep.subr.mxu0 0.0
    %568 = vmatpush2.msra.mxu0 0.0
    %569 = vmatprep.subr.mxu0 0.0
    %570 = vmatpush2.msra.mxu0 0.0
    %571 = vmatprep.subr.mxu0 0.0
    %572 = vmatpush2.msra.mxu0 0.0
    %573 = vmatprep.subr.mxu0 0.0
    %574 = vmatpush2.msra.mxu0 0.0
    %575 = vmatprep.subr.mxu0 0.0
    %576 = vmatpush2.msra.mxu0 0.0
    %577 = vmatprep.subr.mxu0 0.0
    %578 = vmatpush2.msra.mxu0 0.0
    %579 = vmatprep.subr.mxu0 0.0
    %580 = vmatpush2.msra.mxu0 0.0
    %581 = vmatprep.mubr.f32.mxu0 0.0
    %582 = vmatmul.mubr.f32.gmra.mxu0 %v515
    %v583 = vpop.f32.mrf.mxu0
    %v584 = vadd.f32 0.0, %v583
    %v585 = vpop.f32.mrf.mxu0
    %586 = vdwg.mxu0
    %v588 = vsel %vm491, %v513, 0
    %590 = vmatprep.subr.mxu0 0.0
    %591 = vmatpush1.msra.mxu0 0.0
    %592 = vmatprep.subr.mxu0 0.0
    %593 = vmatpush1.msra.mxu0 0.0
    %594 = vmatprep.subr.mxu0 0.0
    %595 = vmatpush1.msra.mxu0 0.0
    %596 = vmatprep.subr.mxu0 0.0
    %597 = vmatpush1.msra.mxu0 0.0
    %598 = vmatprep.subr.mxu0 0.0
    %599 = vmatpush1.msra.mxu0 0.0
    %600 = vmatprep.subr.mxu0 0.0
    %601 = vmatpush1.msra.mxu0 0.0
    %602 = vmatprep.subr.mxu0 0.0
    %603 = vmatpush1.msra.mxu0 0.0
    %604 = vmatprep.subr.mxu0 0.0
    %605 = vmatpush1.msra.mxu0 0.0
    %606 = vmatprep.subr.mxu0 0.0
    %607 = vmatpush1.msra.mxu0 0.0
    %608 = vmatprep.subr.mxu0 0.0
    %609 = vmatpush1.msra.mxu0 0.0
    %610 = vmatprep.subr.mxu0 0.0
    %611 = vmatpush1.msra.mxu0 0.0
    %612 = vmatprep.subr.mxu0 0.0
    %613 = vmatpush1.msra.mxu0 0.0
    %614 = vmatprep.subr.mxu0 0.0
    %615 = vmatpush1.msra.mxu0 0.0
    %616 = vmatprep.subr.mxu0 0.0
    %617 = vmatpush1.msra.mxu0 0.0
    %618 = vmatprep.subr.mxu0 0.0
    %619 = vmatpush1.msra.mxu0 0.0
    %620 = vmatprep.subr.mxu0 0.0
    %621 = vmatpush1.msra.mxu0 %v331
    %622 = vmatprep.subr.mxu0 0.0
    %623 = vmatpush2.msra.mxu0 0.0
    %624 = vmatprep.subr.mxu0 0.0
    %625 = vmatpush2.msra.mxu0 0.0
    %626 = vmatprep.subr.mxu0 0.0
    %627 = vmatpush2.msra.mxu0 0.0
    %628 = vmatprep.subr.mxu0 0.0
    %629 = vmatpush2.msra.mxu0 0.0
    %630 = vmatprep.subr.mxu0 0.0
    %631 = vmatpush2.msra.mxu0 0.0
    %632 = vmatprep.subr.mxu0 0.0
    %633 = vmatpush2.msra.mxu0 0.0
    %634 = vmatprep.subr.mxu0 0.0
    %635 = vmatpush2.msra.mxu0 0.0
    %636 = vmatprep.subr.mxu0 0.0
    %637 = vmatpush2.msra.mxu0 0.0
    %638 = vmatprep.subr.mxu0 0.0
    %639 = vmatpush2.msra.mxu0 0.0
    %640 = vmatprep.subr.mxu0 0.0
    %641 = vmatpush2.msra.mxu0 0.0
    %642 = vmatprep.subr.mxu0 0.0
    %643 = vmatpush2.msra.mxu0 0.0
    %644 = vmatprep.subr.mxu0 0.0
    %645 = vmatpush2.msra.mxu0 0.0
    %646 = vmatprep.subr.mxu0 0.0
    %647 = vmatpush2.msra.mxu0 0.0
    %648 = vmatprep.subr.mxu0 0.0
    %649 = vmatpush2.msra.mxu0 0.0
    %650 = vmatprep.subr.mxu0 0.0
    %651 = vmatpush2.msra.mxu0 0.0
    %652 = vmatprep.subr.mxu0 0.0
    %653 = vmatpush2.msra.mxu0 0.0
    %654 = vmatprep.mubr.f32.mxu0 0.0
    %655 = vmatmul.mubr.f32.gmra.mxu0 %v588
    %v656 = vpop.f32.mrf.mxu0
    %v657 = vadd.f32 0.0, %v656
    %v658 = vpop.f32.mrf.mxu0
    %659 = vdwg.mxu0
    %v660 = vld [vmem:[%s8] sm:$0xff]
    %v661 = vld [vmem:[%s8 + $0x8] sm:$0xff]
    %s662 = scalar_lea.vmem %s2, 32
    %v663 = vld [vmem:[%s662] sm:$0xff]
    %v664 = vld [vmem:[%s662 + $0x8] sm:$0xff]
    %v665 = vld [vmem:[%s662 + $0x10] sm:$0xff]
    %v666 = vld [vmem:[%s662 + $0x18] sm:$0xff]
    %s667 = scalar_lea.vmem %s3, 1
    %v668 = vld [vmem:[%s667] sm:$0x1]
    %v670 = vlaneseq
    %v671 = vshrl.u32 %v670, 7
    %v672 = vsub.s32 0, %v671
    %v673 = vrot.slane %v668, %v672
    %675 = vmatprep.subr.mxu0 0.0
    %676 = vmatpush1.msra.mxu0 0.0
    %677 = vmatprep.subr.mxu0 0.0
    %678 = vmatpush1.msra.mxu0 0.0
    %679 = vmatprep.subr.mxu0 0.0
    %680 = vmatpush1.msra.mxu0 0.0
    %681 = vmatprep.subr.mxu0 0.0
    %682 = vmatpush1.msra.mxu0 0.0
    %683 = vmatprep.subr.mxu0 0.0
    %684 = vmatpush1.msra.mxu0 0.0
    %685 = vmatprep.subr.mxu0 0.0
    %686 = vmatpush1.msra.mxu0 0.0
    %687 = vmatprep.subr.mxu0 0.0
    %688 = vmatpush1.msra.mxu0 0.0
    %689 = vmatprep.subr.mxu0 0.0
    %690 = vmatpush1.msra.mxu0 0.0
    %691 = vmatprep.subr.mxu0 0.0
    %692 = vmatpush1.msra.mxu0 0.0
    %693 = vmatprep.subr.mxu0 0.0
    %694 = vmatpush1.msra.mxu0 0.0
    %695 = vmatprep.subr.mxu0 0.0
    %696 = vmatpush1.msra.mxu0 0.0
    %697 = vmatprep.subr.mxu0 0.0
    %698 = vmatpush1.msra.mxu0 0.0
    %699 = vmatprep.subr.mxu0 0.0
    %700 = vmatpush1.msra.mxu0 %v666
    %701 = vmatprep.subr.mxu0 0.0
    %702 = vmatpush1.msra.mxu0 %v665
    %703 = vmatprep.subr.mxu0 0.0
    %704 = vmatpush1.msra.mxu0 %v664
    %705 = vmatprep.subr.mxu0 0.0
    %706 = vmatpush1.msra.mxu0 %v663
    %707 = vmatprep.subr.mxu0 0.0
    %708 = vmatpush2.msra.mxu0 0.0
    %709 = vmatprep.subr.mxu0 0.0
    %710 = vmatpush2.msra.mxu0 0.0
    %711 = vmatprep.subr.mxu0 0.0
    %712 = vmatpush2.msra.mxu0 0.0
    %713 = vmatprep.subr.mxu0 0.0
    %714 = vmatpush2.msra.mxu0 0.0
    %715 = vmatprep.subr.mxu0 0.0
    %716 = vmatpush2.msra.mxu0 0.0
    %717 = vmatprep.subr.mxu0 0.0
    %718 = vmatpush2.msra.mxu0 0.0
    %719 = vmatprep.subr.mxu0 0.0
    %720 = vmatpush2.msra.mxu0 0.0
    %721 = vmatprep.subr.mxu0 0.0
    %722 = vmatpush2.msra.mxu0 0.0
    %723 = vmatprep.subr.mxu0 0.0
    %724 = vmatpush2.msra.mxu0 0.0
    %725 = vmatprep.subr.mxu0 0.0
    %726 = vmatpush2.msra.mxu0 0.0
    %727 = vmatprep.subr.mxu0 0.0
    %728 = vmatpush2.msra.mxu0 0.0
    %729 = vmatprep.subr.mxu0 0.0
    %730 = vmatpush2.msra.mxu0 0.0
    %731 = vmatprep.subr.mxu0 0.0
    %732 = vmatpush2.msra.mxu0 0.0
    %733 = vmatprep.subr.mxu0 0.0
    %734 = vmatpush2.msra.mxu0 0.0
    %735 = vmatprep.subr.mxu0 0.0
    %736 = vmatpush2.msra.mxu0 0.0
    %737 = vmatprep.subr.mxu0 0.0
    %738 = vmatpush2.msra.mxu0 0.0
    %739 = vmatprep.mubr.f32.mxu0 0.0
    %740 = vmatmul.mubr.f32.gmra.mxu0 %v82
    %v741 = vpop.f32.mrf.mxu0
    %v742 = vadd.f32 %v673, %v741
    %v743 = vpop.f32.mrf.mxu0
    %744 = vmatprep.mubr.f32.mxu0 0.0
    %745 = vmatmul.mubr.f32.gmra.mxu0 %v85
    %v746 = vpop.f32.mrf.mxu0
    %v747 = vadd.f32 %v673, %v746
    %v748 = vpop.f32.mrf.mxu0
    %749 = vdwg.mxu0
    %s750 = scalar_lea.vmem %s4, 32
    %v751 = vld [vmem:[%s750] sm:$0xff]
    %v752 = vld [vmem:[%s750 + $0x8] sm:$0xff]
    %v753 = vld [vmem:[%s750 + $0x10] sm:$0xff]
    %v754 = vld [vmem:[%s750 + $0x18] sm:$0xff]
    %s755 = scalar_lea.vmem %s5, 1
    %v756 = vld [vmem:[%s755] sm:$0x1]
    %v758 = vlaneseq
    %v759 = vshrl.u32 %v758, 7
    %v760 = vsub.s32 0, %v759
    %v761 = vrot.slane %v756, %v760
    %763 = vmatprep.subr.mxu0 0.0
    %764 = vmatpush1.msra.mxu0 0.0
    %765 = vmatprep.subr.mxu0 0.0
    %766 = vmatpush1.msra.mxu0 0.0
    %767 = vmatprep.subr.mxu0 0.0
    %768 = vmatpush1.msra.mxu0 0.0
    %769 = vmatprep.subr.mxu0 0.0
    %770 = vmatpush1.msra.mxu0 0.0
    %771 = vmatprep.subr.mxu0 0.0
    %772 = vmatpush1.msra.mxu0 0.0
    %773 = vmatprep.subr.mxu0 0.0
    %774 = vmatpush1.msra.mxu0 0.0
    %775 = vmatprep.subr.mxu0 0.0
    %776 = vmatpush1.msra.mxu0 0.0
    %777 = vmatprep.subr.mxu0 0.0
    %778 = vmatpush1.msra.mxu0 0.0
    %779 = vmatprep.subr.mxu0 0.0
    %780 = vmatpush1.msra.mxu0 0.0
    %781 = vmatprep.subr.mxu0 0.0
    %782 = vmatpush1.msra.mxu0 0.0
    %783 = vmatprep.subr.mxu0 0.0
    %784 = vmatpush1.msra.mxu0 0.0
    %785 = vmatprep.subr.mxu0 0.0
    %786 = vmatpush1.msra.mxu0 0.0
    %787 = vmatprep.subr.mxu0 0.0
    %788 = vmatpush1.msra.mxu0 %v754
    %789 = vmatprep.subr.mxu0 0.0
    %790 = vmatpush1.msra.mxu0 %v753
    %791 = vmatprep.subr.mxu0 0.0
    %792 = vmatpush1.msra.mxu0 %v752
    %793 = vmatprep.subr.mxu0 0.0
    %794 = vmatpush1.msra.mxu0 %v751
    %795 = vmatprep.subr.mxu0 0.0
    %796 = vmatpush2.msra.mxu0 0.0
    %797 = vmatprep.subr.mxu0 0.0
    %798 = vmatpush2.msra.mxu0 0.0
    %799 = vmatprep.subr.mxu0 0.0
    %800 = vmatpush2.msra.mxu0 0.0
    %801 = vmatprep.subr.mxu0 0.0
    %802 = vmatpush2.msra.mxu0 0.0
    %803 = vmatprep.subr.mxu0 0.0
    %804 = vmatpush2.msra.mxu0 0.0
    %805 = vmatprep.subr.mxu0 0.0
    %806 = vmatpush2.msra.mxu0 0.0
    %807 = vmatprep.subr.mxu0 0.0
    %808 = vmatpush2.msra.mxu0 0.0
    %809 = vmatprep.subr.mxu0 0.0
    %810 = vmatpush2.msra.mxu0 0.0
    %811 = vmatprep.subr.mxu0 0.0
    %812 = vmatpush2.msra.mxu0 0.0
    %813 = vmatprep.subr.mxu0 0.0
    %814 = vmatpush2.msra.mxu0 0.0
    %815 = vmatprep.subr.mxu0 0.0
    %816 = vmatpush2.msra.mxu0 0.0
    %817 = vmatprep.subr.mxu0 0.0
    %818 = vmatpush2.msra.mxu0 0.0
    %819 = vmatprep.subr.mxu0 0.0
    %820 = vmatpush2.msra.mxu0 0.0
    %821 = vmatprep.subr.mxu0 0.0
    %822 = vmatpush2.msra.mxu0 0.0
    %823 = vmatprep.subr.mxu0 0.0
    %824 = vmatpush2.msra.mxu0 0.0
    %825 = vmatprep.subr.mxu0 0.0
    %826 = vmatpush2.msra.mxu0 0.0
    %827 = vmatprep.mubr.f32.mxu0 0.0
    %828 = vmatmul.mubr.f32.gmra.mxu0 %v82
    %v829 = vpop.f32.mrf.mxu0
    %v830 = vadd.f32 %v761, %v829
    %v831 = vpop.f32.mrf.mxu0
    %832 = vmatprep.mubr.f32.mxu0 0.0
    %833 = vmatmul.mubr.f32.gmra.mxu0 %v85
    %v834 = vpop.f32.mrf.mxu0
    %v835 = vadd.f32 %v761, %v834
    %v836 = vpop.f32.mrf.mxu0
    %837 = vdwg.mxu0
    %s838 = scalar_lea.vmem %s6, 32
    %v839 = vld [vmem:[%s838] sm:$0xff]
    %v840 = vld [vmem:[%s838 + $0x8] sm:$0xff]
    %v841 = vld [vmem:[%s838 + $0x10] sm:$0xff]
    %v842 = vld [vmem:[%s838 + $0x18] sm:$0xff]
    %s843 = scalar_lea.vmem %s7, 1
    %v844 = vld [vmem:[%s843] sm:$0x1]
    %v846 = vlaneseq
    %v847 = vshrl.u32 %v846, 7
    %v848 = vsub.s32 0, %v847
    %v849 = vrot.slane %v844, %v848
    %851 = vmatprep.subr.mxu0 0.0
    %852 = vmatpush1.msra.mxu0 0.0
    %853 = vmatprep.subr.mxu0 0.0
    %854 = vmatpush1.msra.mxu0 0.0
    %855 = vmatprep.subr.mxu0 0.0
    %856 = vmatpush1.msra.mxu0 0.0
    %857 = vmatprep.subr.mxu0 0.0
    %858 = vmatpush1.msra.mxu0 0.0
    %859 = vmatprep.subr.mxu0 0.0
    %860 = vmatpush1.msra.mxu0 0.0
    %861 = vmatprep.subr.mxu0 0.0
    %862 = vmatpush1.msra.mxu0 0.0
    %863 = vmatprep.subr.mxu0 0.0
    %864 = vmatpush1.msra.mxu0 0.0
    %865 = vmatprep.subr.mxu0 0.0
    %866 = vmatpush1.msra.mxu0 0.0
    %867 = vmatprep.subr.mxu0 0.0
    %868 = vmatpush1.msra.mxu0 0.0
    %869 = vmatprep.subr.mxu0 0.0
    %870 = vmatpush1.msra.mxu0 0.0
    %871 = vmatprep.subr.mxu0 0.0
    %872 = vmatpush1.msra.mxu0 0.0
    %873 = vmatprep.subr.mxu0 0.0
    %874 = vmatpush1.msra.mxu0 0.0
    %875 = vmatprep.subr.mxu0 0.0
    %876 = vmatpush1.msra.mxu0 %v842
    %877 = vmatprep.subr.mxu0 0.0
    %878 = vmatpush1.msra.mxu0 %v841
    %879 = vmatprep.subr.mxu0 0.0
    %880 = vmatpush1.msra.mxu0 %v840
    %881 = vmatprep.subr.mxu0 0.0
    %882 = vmatpush1.msra.mxu0 %v839
    %883 = vmatprep.subr.mxu0 0.0
    %884 = vmatpush2.msra.mxu0 0.0
    %885 = vmatprep.subr.mxu0 0.0
    %886 = vmatpush2.msra.mxu0 0.0
    %887 = vmatprep.subr.mxu0 0.0
    %888 = vmatpush2.msra.mxu0 0.0
    %889 = vmatprep.subr.mxu0 0.0
    %890 = vmatpush2.msra.mxu0 0.0
    %891 = vmatprep.subr.mxu0 0.0
    %892 = vmatpush2.msra.mxu0 0.0
    %893 = vmatprep.subr.mxu0 0.0
    %894 = vmatpush2.msra.mxu0 0.0
    %895 = vmatprep.subr.mxu0 0.0
    %896 = vmatpush2.msra.mxu0 0.0
    %897 = vmatprep.subr.mxu0 0.0
    %898 = vmatpush2.msra.mxu0 0.0
    %899 = vmatprep.subr.mxu0 0.0
    %900 = vmatpush2.msra.mxu0 0.0
    %901 = vmatprep.subr.mxu0 0.0
    %902 = vmatpush2.msra.mxu0 0.0
    %903 = vmatprep.subr.mxu0 0.0
    %904 = vmatpush2.msra.mxu0 0.0
    %905 = vmatprep.subr.mxu0 0.0
    %906 = vmatpush2.msra.mxu0 0.0
    %907 = vmatprep.subr.mxu0 0.0
    %908 = vmatpush2.msra.mxu0 0.0
    %909 = vmatprep.subr.mxu0 0.0
    %910 = vmatpush2.msra.mxu0 0.0
    %911 = vmatprep.subr.mxu0 0.0
    %912 = vmatpush2.msra.mxu0 0.0
    %913 = vmatprep.subr.mxu0 0.0
    %914 = vmatpush2.msra.mxu0 0.0
    %915 = vmatprep.mubr.f32.mxu0 0.0
    %916 = vmatmul.mubr.f32.gmra.mxu0 %v82
    %v917 = vpop.f32.mrf.mxu0
    %v918 = vadd.f32 %v849, %v917
    %v919 = vpop.f32.mrf.mxu0
    %920 = vmatprep.mubr.f32.mxu0 0.0
    %921 = vmatmul.mubr.f32.gmra.mxu0 %v85
    %v922 = vpop.f32.mrf.mxu0
    %v923 = vadd.f32 %v849, %v922
    %v924 = vpop.f32.mrf.mxu0
    %925 = vdwg.mxu0
    %v927 = vsel %vm334, %v742, 0
    %v930 = vsel %vm334, %v830, 0
    %932 = vmatprep.subr.mxu0 0.0
    %933 = vmatpush1.xpose.msra.mxu0 0.0
    %934 = vmatprep.subr.mxu0 0.0
    %935 = vmatpush1.xpose.msra.mxu0 0.0
    %936 = vmatprep.subr.mxu0 0.0
    %937 = vmatpush1.xpose.msra.mxu0 0.0
    %938 = vmatprep.subr.mxu0 0.0
    %939 = vmatpush1.xpose.msra.mxu0 0.0
    %940 = vmatprep.subr.mxu0 0.0
    %941 = vmatpush1.xpose.msra.mxu0 0.0
    %942 = vmatprep.subr.mxu0 0.0
    %943 = vmatpush1.xpose.msra.mxu0 0.0
    %944 = vmatprep.subr.mxu0 0.0
    %945 = vmatpush1.xpose.msra.mxu0 0.0
    %946 = vmatprep.subr.mxu0 0.0
    %947 = vmatpush1.xpose.msra.mxu0 0.0
    %948 = vmatprep.subr.mxu0 0.0
    %949 = vmatpush1.xpose.msra.mxu0 0.0
    %950 = vmatprep.subr.mxu0 0.0
    %951 = vmatpush1.xpose.msra.mxu0 0.0
    %952 = vmatprep.subr.mxu0 0.0
    %953 = vmatpush1.xpose.msra.mxu0 0.0
    %954 = vmatprep.subr.mxu0 0.0
    %955 = vmatpush1.xpose.msra.mxu0 0.0
    %956 = vmatprep.subr.mxu0 0.0
    %957 = vmatpush1.xpose.msra.mxu0 0.0
    %958 = vmatprep.subr.mxu0 0.0
    %959 = vmatpush1.xpose.msra.mxu0 0.0
    %960 = vmatprep.subr.mxu0 0.0
    %961 = vmatpush1.xpose.msra.mxu0 0.0
    %962 = vmatprep.subr.mxu0 0.0
    %963 = vmatpush1.xpose.msra.mxu0 %v930
    %964 = vmatprep.subr.mxu0 0.0
    %965 = vmatpush2.xpose.msra.mxu0 0.0
    %966 = vmatprep.subr.mxu0 0.0
    %967 = vmatpush2.xpose.msra.mxu0 0.0
    %968 = vmatprep.subr.mxu0 0.0
    %969 = vmatpush2.xpose.msra.mxu0 0.0
    %970 = vmatprep.subr.mxu0 0.0
    %971 = vmatpush2.xpose.msra.mxu0 0.0
    %972 = vmatprep.subr.mxu0 0.0
    %973 = vmatpush2.xpose.msra.mxu0 0.0
    %974 = vmatprep.subr.mxu0 0.0
    %975 = vmatpush2.xpose.msra.mxu0 0.0
    %976 = vmatprep.subr.mxu0 0.0
    %977 = vmatpush2.xpose.msra.mxu0 0.0
    %978 = vmatprep.subr.mxu0 0.0
    %979 = vmatpush2.xpose.msra.mxu0 0.0
    %980 = vmatprep.subr.mxu0 0.0
    %981 = vmatpush2.xpose.msra.mxu0 0.0
    %982 = vmatprep.subr.mxu0 0.0
    %983 = vmatpush2.xpose.msra.mxu0 0.0
    %984 = vmatprep.subr.mxu0 0.0
    %985 = vmatpush2.xpose.msra.mxu0 0.0
    %986 = vmatprep.subr.mxu0 0.0
    %987 = vmatpush2.xpose.msra.mxu0 0.0
    %988 = vmatprep.subr.mxu0 0.0
    %989 = vmatpush2.xpose.msra.mxu0 0.0
    %990 = vmatprep.subr.mxu0 0.0
    %991 = vmatpush2.xpose.msra.mxu0 0.0
    %992 = vmatprep.subr.mxu0 0.0
    %993 = vmatpush2.xpose.msra.mxu0 0.0
    %994 = vmatprep.subr.mxu0 0.0
    %995 = vmatpush2.xpose.msra.mxu0 0.0
    %996 = vmatprep.mubr.f32.mxu0 0.0
    %997 = vmatmul.mubr.f32.gmra.mxu0 %v927
    %v998 = vpop.f32.mrf.mxu0
    %v999 = vadd.f32 0.0, %v998
    %v1000 = vpop.f32.mrf.mxu0
    %1001 = vdwg.mxu0
    %v1003 = vsel %vm334, %v747, 0
    %v1006 = vsel %vm334, %v835, 0
    %1008 = vmatprep.subr.mxu0 0.0
    %1009 = vmatpush1.xpose.msra.mxu0 0.0
    %1010 = vmatprep.subr.mxu0 0.0
    %1011 = vmatpush1.xpose.msra.mxu0 0.0
    %1012 = vmatprep.subr.mxu0 0.0
    %1013 = vmatpush1.xpose.msra.mxu0 0.0
    %1014 = vmatprep.subr.mxu0 0.0
    %1015 = vmatpush1.xpose.msra.mxu0 0.0
    %1016 = vmatprep.subr.mxu0 0.0
    %1017 = vmatpush1.xpose.msra.mxu0 0.0
    %1018 = vmatprep.subr.mxu0 0.0
    %1019 = vmatpush1.xpose.msra.mxu0 0.0
    %1020 = vmatprep.subr.mxu0 0.0
    %1021 = vmatpush1.xpose.msra.mxu0 0.0
    %1022 = vmatprep.subr.mxu0 0.0
    %1023 = vmatpush1.xpose.msra.mxu0 0.0
    %1024 = vmatprep.subr.mxu0 0.0
    %1025 = vmatpush1.xpose.msra.mxu0 0.0
    %1026 = vmatprep.subr.mxu0 0.0
    %1027 = vmatpush1.xpose.msra.mxu0 0.0
    %1028 = vmatprep.subr.mxu0 0.0
    %1029 = vmatpush1.xpose.msra.mxu0 0.0
    %1030 = vmatprep.subr.mxu0 0.0
    %1031 = vmatpush1.xpose.msra.mxu0 0.0
    %1032 = vmatprep.subr.mxu0 0.0
    %1033 = vmatpush1.xpose.msra.mxu0 0.0
    %1034 = vmatprep.subr.mxu0 0.0
    %1035 = vmatpush1.xpose.msra.mxu0 0.0
    %1036 = vmatprep.subr.mxu0 0.0
    %1037 = vmatpush1.xpose.msra.mxu0 0.0
    %1038 = vmatprep.subr.mxu0 0.0
    %1039 = vmatpush1.xpose.msra.mxu0 %v1006
    %1040 = vmatprep.subr.mxu0 0.0
    %1041 = vmatpush2.xpose.msra.mxu0 0.0
    %1042 = vmatprep.subr.mxu0 0.0
    %1043 = vmatpush2.xpose.msra.mxu0 0.0
    %1044 = vmatprep.subr.mxu0 0.0
    %1045 = vmatpush2.xpose.msra.mxu0 0.0
    %1046 = vmatprep.subr.mxu0 0.0
    %1047 = vmatpush2.xpose.msra.mxu0 0.0
    %1048 = vmatprep.subr.mxu0 0.0
    %1049 = vmatpush2.xpose.msra.mxu0 0.0
    %1050 = vmatprep.subr.mxu0 0.0
    %1051 = vmatpush2.xpose.msra.mxu0 0.0
    %1052 = vmatprep.subr.mxu0 0.0
    %1053 = vmatpush2.xpose.msra.mxu0 0.0
    %1054 = vmatprep.subr.mxu0 0.0
    %1055 = vmatpush2.xpose.msra.mxu0 0.0
    %1056 = vmatprep.subr.mxu0 0.0
    %1057 = vmatpush2.xpose.msra.mxu0 0.0
    %1058 = vmatprep.subr.mxu0 0.0
    %1059 = vmatpush2.xpose.msra.mxu0 0.0
    %1060 = vmatprep.subr.mxu0 0.0
    %1061 = vmatpush2.xpose.msra.mxu0 0.0
    %1062 = vmatprep.subr.mxu0 0.0
    %1063 = vmatpush2.xpose.msra.mxu0 0.0
    %1064 = vmatprep.subr.mxu0 0.0
    %1065 = vmatpush2.xpose.msra.mxu0 0.0
    %1066 = vmatprep.subr.mxu0 0.0
    %1067 = vmatpush2.xpose.msra.mxu0 0.0
    %1068 = vmatprep.subr.mxu0 0.0
    %1069 = vmatpush2.xpose.msra.mxu0 0.0
    %1070 = vmatprep.subr.mxu0 0.0
    %1071 = vmatpush2.xpose.msra.mxu0 0.0
    %1072 = vmatprep.mubr.f32.mxu0 0.0
    %1073 = vmatmul.mubr.f32.gmra.mxu0 %v1003
    %v1074 = vpop.f32.mrf.mxu0
    %v1075 = vadd.f32 0.0, %v1074
    %v1076 = vpop.f32.mrf.mxu0
    %1077 = vdwg.mxu0
    %v1078 = vmul.f32 %v999, 0.25
    %v1079 = vmul.f32 %v1075, 0.25
    %v1080 = vsel %vm67, -1e+09, %v1078
    %v1081 = vsel %vm68, -1e+09, %v1079
    %v1082 = vsel %vm491, %v1080, -inf
    %1083 = vmax.xlane.f32.xlu0 %v1082
    %v1084 = vpop.xlane.xlu0 %1083
    %v1085 = vsel %vm491, %v1081, -inf
    %1086 = vmax.xlane.f32.xlu0 %v1085
    %v1087 = vpop.xlane.xlu0 %1086
    %v1088 = vsub.f32 %v1080, %v1084
    %v1089 = vsub.f32 %v1081, %v1087
    %v1090 = vmul.f32 %v1088, 1.442695
    %v1091 = vpow.pop %v1090
    %v1092 = vmul.f32 %v1089, 1.442695
    %v1093 = vpow.pop %v1092
    %v1094 = vsel %vm491, %v1091, 0.0
    %1095 = vadd.xlane.f32.xlu0 %v1094
    %v1096 = vpop.xlane.xlu0 %1095
    %v1097 = vsel %vm491, %v1093, 0.0
    %1098 = vadd.xlane.f32.xlu0 %v1097
    %v1099 = vpop.xlane.xlu0 %1098
    %v1100 = vrcp.pop %v1096
    %v1101 = vrcp.pop %v1099
    %v1102 = vmul.f32 %v1091, %v1100
    %v1103 = vmul.f32 %v1093, %v1101
    %v1105 = vsel %vm491, %v1102, 0
    %1107 = vmatprep.subr.mxu0 0.0
    %1108 = vmatpush1.msra.mxu0 0.0
    %1109 = vmatprep.subr.mxu0 0.0
    %1110 = vmatpush1.msra.mxu0 0.0
    %1111 = vmatprep.subr.mxu0 0.0
    %1112 = vmatpush1.msra.mxu0 0.0
    %1113 = vmatprep.subr.mxu0 0.0
    %1114 = vmatpush1.msra.mxu0 0.0
    %1115 = vmatprep.subr.mxu0 0.0
    %1116 = vmatpush1.msra.mxu0 0.0
    %1117 = vmatprep.subr.mxu0 0.0
    %1118 = vmatpush1.msra.mxu0 0.0
    %1119 = vmatprep.subr.mxu0 0.0
    %1120 = vmatpush1.msra.mxu0 0.0
    %1121 = vmatprep.subr.mxu0 0.0
    %1122 = vmatpush1.msra.mxu0 0.0
    %1123 = vmatprep.subr.mxu0 0.0
    %1124 = vmatpush1.msra.mxu0 0.0
    %1125 = vmatprep.subr.mxu0 0.0
    %1126 = vmatpush1.msra.mxu0 0.0
    %1127 = vmatprep.subr.mxu0 0.0
    %1128 = vmatpush1.msra.mxu0 0.0
    %1129 = vmatprep.subr.mxu0 0.0
    %1130 = vmatpush1.msra.mxu0 0.0
    %1131 = vmatprep.subr.mxu0 0.0
    %1132 = vmatpush1.msra.mxu0 0.0
    %1133 = vmatprep.subr.mxu0 0.0
    %1134 = vmatpush1.msra.mxu0 0.0
    %1135 = vmatprep.subr.mxu0 0.0
    %1136 = vmatpush1.msra.mxu0 0.0
    %1137 = vmatprep.subr.mxu0 0.0
    %1138 = vmatpush1.msra.mxu0 %v918
    %1139 = vmatprep.subr.mxu0 0.0
    %1140 = vmatpush2.msra.mxu0 0.0
    %1141 = vmatprep.subr.mxu0 0.0
    %1142 = vmatpush2.msra.mxu0 0.0
    %1143 = vmatprep.subr.mxu0 0.0
    %1144 = vmatpush2.msra.mxu0 0.0
    %1145 = vmatprep.subr.mxu0 0.0
    %1146 = vmatpush2.msra.mxu0 0.0
    %1147 = vmatprep.subr.mxu0 0.0
    %1148 = vmatpush2.msra.mxu0 0.0
    %1149 = vmatprep.subr.mxu0 0.0
    %1150 = vmatpush2.msra.mxu0 0.0
    %1151 = vmatprep.subr.mxu0 0.0
    %1152 = vmatpush2.msra.mxu0 0.0
    %1153 = vmatprep.subr.mxu0 0.0
    %1154 = vmatpush2.msra.mxu0 0.0
    %1155 = vmatprep.subr.mxu0 0.0
    %1156 = vmatpush2.msra.mxu0 0.0
    %1157 = vmatprep.subr.mxu0 0.0
    %1158 = vmatpush2.msra.mxu0 0.0
    %1159 = vmatprep.subr.mxu0 0.0
    %1160 = vmatpush2.msra.mxu0 0.0
    %1161 = vmatprep.subr.mxu0 0.0
    %1162 = vmatpush2.msra.mxu0 0.0
    %1163 = vmatprep.subr.mxu0 0.0
    %1164 = vmatpush2.msra.mxu0 0.0
    %1165 = vmatprep.subr.mxu0 0.0
    %1166 = vmatpush2.msra.mxu0 0.0
    %1167 = vmatprep.subr.mxu0 0.0
    %1168 = vmatpush2.msra.mxu0 0.0
    %1169 = vmatprep.subr.mxu0 0.0
    %1170 = vmatpush2.msra.mxu0 0.0
    %1171 = vmatprep.mubr.f32.mxu0 0.0
    %1172 = vmatmul.mubr.f32.gmra.mxu0 %v1105
    %v1173 = vpop.f32.mrf.mxu0
    %v1174 = vadd.f32 0.0, %v1173
    %v1175 = vpop.f32.mrf.mxu0
    %1176 = vdwg.mxu0
    %v1178 = vsel %vm491, %v1103, 0
    %1180 = vmatprep.subr.mxu0 0.0
    %1181 = vmatpush1.msra.mxu0 0.0
    %1182 = vmatprep.subr.mxu0 0.0
    %1183 = vmatpush1.msra.mxu0 0.0
    %1184 = vmatprep.subr.mxu0 0.0
    %1185 = vmatpush1.msra.mxu0 0.0
    %1186 = vmatprep.subr.mxu0 0.0
    %1187 = vmatpush1.msra.mxu0 0.0
    %1188 = vmatprep.subr.mxu0 0.0
    %1189 = vmatpush1.msra.mxu0 0.0
    %1190 = vmatprep.subr.mxu0 0.0
    %1191 = vmatpush1.msra.mxu0 0.0
    %1192 = vmatprep.subr.mxu0 0.0
    %1193 = vmatpush1.msra.mxu0 0.0
    %1194 = vmatprep.subr.mxu0 0.0
    %1195 = vmatpush1.msra.mxu0 0.0
    %1196 = vmatprep.subr.mxu0 0.0
    %1197 = vmatpush1.msra.mxu0 0.0
    %1198 = vmatprep.subr.mxu0 0.0
    %1199 = vmatpush1.msra.mxu0 0.0
    %1200 = vmatprep.subr.mxu0 0.0
    %1201 = vmatpush1.msra.mxu0 0.0
    %1202 = vmatprep.subr.mxu0 0.0
    %1203 = vmatpush1.msra.mxu0 0.0
    %1204 = vmatprep.subr.mxu0 0.0
    %1205 = vmatpush1.msra.mxu0 0.0
    %1206 = vmatprep.subr.mxu0 0.0
    %1207 = vmatpush1.msra.mxu0 0.0
    %1208 = vmatprep.subr.mxu0 0.0
    %1209 = vmatpush1.msra.mxu0 0.0
    %1210 = vmatprep.subr.mxu0 0.0
    %1211 = vmatpush1.msra.mxu0 %v923
    %1212 = vmatprep.subr.mxu0 0.0
    %1213 = vmatpush2.msra.mxu0 0.0
    %1214 = vmatprep.subr.mxu0 0.0
    %1215 = vmatpush2.msra.mxu0 0.0
    %1216 = vmatprep.subr.mxu0 0.0
    %1217 = vmatpush2.msra.mxu0 0.0
    %1218 = vmatprep.subr.mxu0 0.0
    %1219 = vmatpush2.msra.mxu0 0.0
    %1220 = vmatprep.subr.mxu0 0.0
    %1221 = vmatpush2.msra.mxu0 0.0
    %1222 = vmatprep.subr.mxu0 0.0
    %1223 = vmatpush2.msra.mxu0 0.0
    %1224 = vmatprep.subr.mxu0 0.0
    %1225 = vmatpush2.msra.mxu0 0.0
    %1226 = vmatprep.subr.mxu0 0.0
    %1227 = vmatpush2.msra.mxu0 0.0
    %1228 = vmatprep.subr.mxu0 0.0
    %1229 = vmatpush2.msra.mxu0 0.0
    %1230 = vmatprep.subr.mxu0 0.0
    %1231 = vmatpush2.msra.mxu0 0.0
    %1232 = vmatprep.subr.mxu0 0.0
    %1233 = vmatpush2.msra.mxu0 0.0
    %1234 = vmatprep.subr.mxu0 0.0
    %1235 = vmatpush2.msra.mxu0 0.0
    %1236 = vmatprep.subr.mxu0 0.0
    %1237 = vmatpush2.msra.mxu0 0.0
    %1238 = vmatprep.subr.mxu0 0.0
    %1239 = vmatpush2.msra.mxu0 0.0
    %1240 = vmatprep.subr.mxu0 0.0
    %1241 = vmatpush2.msra.mxu0 0.0
    %1242 = vmatprep.subr.mxu0 0.0
    %1243 = vmatpush2.msra.mxu0 0.0
    %1244 = vmatprep.mubr.f32.mxu0 0.0
    %1245 = vmatmul.mubr.f32.gmra.mxu0 %v1178
    %v1246 = vpop.f32.mrf.mxu0
    %v1247 = vadd.f32 0.0, %v1246
    %v1248 = vpop.f32.mrf.mxu0
    %1249 = vdwg.mxu0
    %s1250 = scalar_lea.vmem %s8, 16
    %v1251 = vld [vmem:[%s1250] sm:$0xff]
    %v1252 = vld [vmem:[%s1250 + $0x8] sm:$0xff]
    %v1254 = vsel %vm334, %v1174, 0
    %v1257 = vsel %vm334, %v1247, 0
    %1259 = vmatprep.subr.mxu0 0.0
    %1260 = vmatpush1.msra.mxu0 0.0
    %1261 = vmatprep.subr.mxu0 0.0
    %1262 = vmatpush1.msra.mxu0 0.0
    %1263 = vmatprep.subr.mxu0 0.0
    %1264 = vmatpush1.msra.mxu0 0.0
    %1265 = vmatprep.subr.mxu0 0.0
    %1266 = vmatpush1.msra.mxu0 0.0
    %1267 = vmatprep.subr.mxu0 0.0
    %1268 = vmatpush1.msra.mxu0 0.0
    %1269 = vmatprep.subr.mxu0 0.0
    %1270 = vmatpush1.msra.mxu0 0.0
    %1271 = vmatprep.subr.mxu0 0.0
    %1272 = vmatpush1.msra.mxu0 0.0
    %1273 = vmatprep.subr.mxu0 0.0
    %1274 = vmatpush1.msra.mxu0 0.0
    %1275 = vmatprep.subr.mxu0 0.0
    %1276 = vmatpush1.msra.mxu0 0.0
    %1277 = vmatprep.subr.mxu0 0.0
    %1278 = vmatpush1.msra.mxu0 0.0
    %1279 = vmatprep.subr.mxu0 0.0
    %1280 = vmatpush1.msra.mxu0 0.0
    %1281 = vmatprep.subr.mxu0 0.0
    %1282 = vmatpush1.msra.mxu0 0.0
    %1283 = vmatprep.subr.mxu0 0.0
    %1284 = vmatpush1.msra.mxu0 0.0
    %1285 = vmatprep.subr.mxu0 0.0
    %1286 = vmatpush1.msra.mxu0 0.0
    %1287 = vmatprep.subr.mxu0 0.0
    %1288 = vmatpush1.msra.mxu0 %v1252
    %1289 = vmatprep.subr.mxu0 0.0
    %1290 = vmatpush1.msra.mxu0 %v1251
    %1291 = vmatprep.subr.mxu0 0.0
    %1292 = vmatpush2.msra.mxu0 0.0
    %1293 = vmatprep.subr.mxu0 0.0
    %1294 = vmatpush2.msra.mxu0 0.0
    %1295 = vmatprep.subr.mxu0 0.0
    %1296 = vmatpush2.msra.mxu0 0.0
    %1297 = vmatprep.subr.mxu0 0.0
    %1298 = vmatpush2.msra.mxu0 0.0
    %1299 = vmatprep.subr.mxu0 0.0
    %1300 = vmatpush2.msra.mxu0 0.0
    %1301 = vmatprep.subr.mxu0 0.0
    %1302 = vmatpush2.msra.mxu0 0.0
    %1303 = vmatprep.subr.mxu0 0.0
    %1304 = vmatpush2.msra.mxu0 0.0
    %1305 = vmatprep.subr.mxu0 0.0
    %1306 = vmatpush2.msra.mxu0 0.0
    %1307 = vmatprep.subr.mxu0 0.0
    %1308 = vmatpush2.msra.mxu0 0.0
    %1309 = vmatprep.subr.mxu0 0.0
    %1310 = vmatpush2.msra.mxu0 0.0
    %1311 = vmatprep.subr.mxu0 0.0
    %1312 = vmatpush2.msra.mxu0 0.0
    %1313 = vmatprep.subr.mxu0 0.0
    %1314 = vmatpush2.msra.mxu0 0.0
    %1315 = vmatprep.subr.mxu0 0.0
    %1316 = vmatpush2.msra.mxu0 0.0
    %1317 = vmatprep.subr.mxu0 0.0
    %1318 = vmatpush2.msra.mxu0 0.0
    %1319 = vmatprep.subr.mxu0 0.0
    %1320 = vmatpush2.msra.mxu0 0.0
    %1321 = vmatprep.subr.mxu0 0.0
    %1322 = vmatpush2.msra.mxu0 0.0
    %1323 = vmatprep.mubr.f32.mxu0 0.0
    %1324 = vmatmul.mubr.f32.gmra.mxu0 %v1254
    %v1325 = vpop.f32.mrf.mxu0
    %v1326 = vadd.f32 0.0, %v1325
    %v1327 = vpop.f32.mrf.mxu0
    %1328 = vmatprep.mubr.f32.mxu0 0.0
    %1329 = vmatmul.mubr.f32.gmra.mxu0 %v1257
    %v1330 = vpop.f32.mrf.mxu0
    %v1331 = vadd.f32 0.0, %v1330
    %v1332 = vpop.f32.mrf.mxu0
    %1333 = vdwg.mxu0
    %v1335 = vsel %vm334, %v584, 0
    %v1338 = vsel %vm334, %v657, 0
    %1340 = vmatprep.subr.mxu0 0.0
    %1341 = vmatpush1.msra.mxu0 0.0
    %1342 = vmatprep.subr.mxu0 0.0
    %1343 = vmatpush1.msra.mxu0 0.0
    %1344 = vmatprep.subr.mxu0 0.0
    %1345 = vmatpush1.msra.mxu0 0.0
    %1346 = vmatprep.subr.mxu0 0.0
    %1347 = vmatpush1.msra.mxu0 0.0
    %1348 = vmatprep.subr.mxu0 0.0
    %1349 = vmatpush1.msra.mxu0 0.0
    %1350 = vmatprep.subr.mxu0 0.0
    %1351 = vmatpush1.msra.mxu0 0.0
    %1352 = vmatprep.subr.mxu0 0.0
    %1353 = vmatpush1.msra.mxu0 0.0
    %1354 = vmatprep.subr.mxu0 0.0
    %1355 = vmatpush1.msra.mxu0 0.0
    %1356 = vmatprep.subr.mxu0 0.0
    %1357 = vmatpush1.msra.mxu0 0.0
    %1358 = vmatprep.subr.mxu0 0.0
    %1359 = vmatpush1.msra.mxu0 0.0
    %1360 = vmatprep.subr.mxu0 0.0
    %1361 = vmatpush1.msra.mxu0 0.0
    %1362 = vmatprep.subr.mxu0 0.0
    %1363 = vmatpush1.msra.mxu0 0.0
    %1364 = vmatprep.subr.mxu0 0.0
    %1365 = vmatpush1.msra.mxu0 0.0
    %1366 = vmatprep.subr.mxu0 0.0
    %1367 = vmatpush1.msra.mxu0 0.0
    %1368 = vmatprep.subr.mxu0 0.0
    %1369 = vmatpush1.msra.mxu0 %v661
    %1370 = vmatprep.subr.mxu0 0.0
    %1371 = vmatpush1.msra.mxu0 %v660
    %1372 = vmatprep.subr.mxu0 0.0
    %1373 = vmatpush2.msra.mxu0 0.0
    %1374 = vmatprep.subr.mxu0 0.0
    %1375 = vmatpush2.msra.mxu0 0.0
    %1376 = vmatprep.subr.mxu0 0.0
    %1377 = vmatpush2.msra.mxu0 0.0
    %1378 = vmatprep.subr.mxu0 0.0
    %1379 = vmatpush2.msra.mxu0 0.0
    %1380 = vmatprep.subr.mxu0 0.0
    %1381 = vmatpush2.msra.mxu0 0.0
    %1382 = vmatprep.subr.mxu0 0.0
    %1383 = vmatpush2.msra.mxu0 0.0
    %1384 = vmatprep.subr.mxu0 0.0
    %1385 = vmatpush2.msra.mxu0 0.0
    %1386 = vmatprep.subr.mxu0 0.0
    %1387 = vmatpush2.msra.mxu0 0.0
    %1388 = vmatprep.subr.mxu0 0.0
    %1389 = vmatpush2.msra.mxu0 0.0
    %1390 = vmatprep.subr.mxu0 0.0
    %1391 = vmatpush2.msra.mxu0 0.0
    %1392 = vmatprep.subr.mxu0 0.0
    %1393 = vmatpush2.msra.mxu0 0.0
    %1394 = vmatprep.subr.mxu0 0.0
    %1395 = vmatpush2.msra.mxu0 0.0
    %1396 = vmatprep.subr.mxu0 0.0
    %1397 = vmatpush2.msra.mxu0 0.0
    %1398 = vmatprep.subr.mxu0 0.0
    %1399 = vmatpush2.msra.mxu0 0.0
    %1400 = vmatprep.subr.mxu0 0.0
    %1401 = vmatpush2.msra.mxu0 0.0
    %1402 = vmatprep.subr.mxu0 0.0
    %1403 = vmatpush2.msra.mxu0 0.0
    %1404 = vmatprep.mubr.f32.mxu0 0.0
    %1405 = vmatmul.mubr.f32.gmra.mxu0 %v1335
    %v1406 = vpop.f32.mrf.mxu0
    %v1407 = vadd.f32 %v1326, %v1406
    %v1408 = vpop.f32.mrf.mxu0
    %1409 = vmatprep.mubr.f32.mxu0 0.0
    %1410 = vmatmul.mubr.f32.gmra.mxu0 %v1338
    %v1411 = vpop.f32.mrf.mxu0
    %v1412 = vadd.f32 %v1331, %v1411
    %v1413 = vpop.f32.mrf.mxu0
    %1414 = vdwg.mxu0
    %1415 = vst.msk [vmem:[#allocation4] sm:$0xff] %vm491, %v512
    %1416 = vst.msk [vmem:[#allocation4 + $0x8] sm:$0xff] %vm491, %v1102
    %1417 = vst.msk [vmem:[#allocation4 + $0x10] sm:$0xff] %vm491, %v513
    %1418 = vst.msk [vmem:[#allocation4 + $0x18] sm:$0xff] %vm491, %v1103
    %v1419 = vld [vmem:[%s9] sm:$0x1]
    %v1421 = vlaneseq
    %v1422 = vshrl.u32 %v1421, 7
    %v1423 = vsub.s32 0, %v1422
    %v1424 = vrot.slane %v1419, %v1423
    %v1426 = vadd.f32 %v1407, %v1424
    %v1427 = vadd.f32 %v1412, %v1424
    %v1428 = vadd.f32 %v63, %v1426
    %v1429 = vadd.f32 %v64, %v1427
    %v1430 = vld [vmem:[%s10] sm:$0x1]
    %v1431 = vld [vmem:[%s11] sm:$0x1]
    %v1432 = vsel %vm80, %v1428, 0.0
    %1433 = vadd.xlane.f32.xlu0 %v1432
    %v1434 = vpop.xlane.xlu0 %1433
    %v1435 = vsel %vm80, %v1429, 0.0
    %1436 = vadd.xlane.f32.xlu0 %v1435
    %v1437 = vpop.xlane.xlu0 %1436
    %v1438 = vrcp.pop 32.0
    %v1439 = vmul.f32 %v1434, %v1438
    %v1440 = vmul.f32 %v1437, %v1438
    %v1441 = vsub.f32 %v1428, %v1439
    %v1442 = vsub.f32 %v1429, %v1440
    %v1443 = vmul.f32 %v1441, %v1441
    %v1444 = vmul.f32 %v1442, %v1442
    %v1445 = vsel %vm80, %v1443, 0.0
    %1446 = vadd.xlane.f32.xlu0 %v1445
    %v1447 = vpop.xlane.xlu0 %1446
    %v1448 = vsel %vm80, %v1444, 0.0
    %1449 = vadd.xlane.f32.xlu0 %v1448
    %v1450 = vpop.xlane.xlu0 %1449
    %v1451 = vmul.f32 %v1447, %v1438
    %v1452 = vmul.f32 %v1450, %v1438
    %v1453 = vadd.f32 %v1451, 1e-12
    %v1454 = vadd.f32 %v1452, 1e-12
    %v1455 = vrsqrt.pop %v1453
    %v1456 = vrsqrt.pop %v1454
    %v1457 = vmul.f32 %v1441, %v1455
    %v1458 = vmul.f32 %v1442, %v1456
    %v1460 = vlaneseq
    %v1461 = vshrl.u32 %v1460, 7
    %v1462 = vsub.s32 0, %v1461
    %v1463 = vrot.slane %v1430, %v1462
    %v1465 = vmul.f32 %v1457, %v1463
    %v1466 = vmul.f32 %v1458, %v1463
    %v1468 = vlaneseq
    %v1469 = vshrl.u32 %v1468, 7
    %v1470 = vsub.s32 0, %v1469
    %v1471 = vrot.slane %v1431, %v1470
    %v1473 = vadd.f32 %v1465, %v1471
    %v1474 = vadd.f32 %v1466, %v1471
    %v1475 = vld [vmem:[%s12] sm:$0xff]
    %v1476 = vld [vmem:[%s12 + $0x8] sm:$0xff]
    %v1477 = vld [vmem:[%s12 + $0x10] sm:$0xff]
    %v1478 = vld [vmem:[%s12 + $0x18] sm:$0xff]
    %v1479 = vld [vmem:[%s13] sm:$0x1]
    %v1481 = vlaneseq
    %v1482 = vshrl.u32 %v1481, 7
    %v1483 = vsub.s32 0, %v1482
    %v1484 = vrot.slane %v1479, %v1483
    %v1487 = vsel %vm80, %v1473, 0
    %v1490 = vsel %vm80, %v1474, 0
    %1492 = vmatprep.subr.mxu0 0.0
    %1493 = vmatpush1.msra.mxu0 0.0
    %1494 = vmatprep.subr.mxu0 0.0
    %1495 = vmatpush1.msra.mxu0 0.0
    %1496 = vmatprep.subr.mxu0 0.0
    %1497 = vmatpush1.msra.mxu0 0.0
    %1498 = vmatprep.subr.mxu0 0.0
    %1499 = vmatpush1.msra.mxu0 0.0
    %1500 = vmatprep.subr.mxu0 0.0
    %1501 = vmatpush1.msra.mxu0 0.0
    %1502 = vmatprep.subr.mxu0 0.0
    %1503 = vmatpush1.msra.mxu0 0.0
    %1504 = vmatprep.subr.mxu0 0.0
    %1505 = vmatpush1.msra.mxu0 0.0
    %1506 = vmatprep.subr.mxu0 0.0
    %1507 = vmatpush1.msra.mxu0 0.0
    %1508 = vmatprep.subr.mxu0 0.0
    %1509 = vmatpush1.msra.mxu0 0.0
    %1510 = vmatprep.subr.mxu0 0.0
    %1511 = vmatpush1.msra.mxu0 0.0
    %1512 = vmatprep.subr.mxu0 0.0
    %1513 = vmatpush1.msra.mxu0 0.0
    %1514 = vmatprep.subr.mxu0 0.0
    %1515 = vmatpush1.msra.mxu0 0.0
    %1516 = vmatprep.subr.mxu0 0.0
    %1517 = vmatpush1.msra.mxu0 %v1478
    %1518 = vmatprep.subr.mxu0 0.0
    %1519 = vmatpush1.msra.mxu0 %v1477
    %1520 = vmatprep.subr.mxu0 0.0
    %1521 = vmatpush1.msra.mxu0 %v1476
    %1522 = vmatprep.subr.mxu0 0.0
    %1523 = vmatpush1.msra.mxu0 %v1475
    %1524 = vmatprep.subr.mxu0 0.0
    %1525 = vmatpush2.msra.mxu0 0.0
    %1526 = vmatprep.subr.mxu0 0.0
    %1527 = vmatpush2.msra.mxu0 0.0
    %1528 = vmatprep.subr.mxu0 0.0
    %1529 = vmatpush2.msra.mxu0 0.0
    %1530 = vmatprep.subr.mxu0 0.0
    %1531 = vmatpush2.msra.mxu0 0.0
    %1532 = vmatprep.subr.mxu0 0.0
    %1533 = vmatpush2.msra.mxu0 0.0
    %1534 = vmatprep.subr.mxu0 0.0
    %1535 = vmatpush2.msra.mxu0 0.0
    %1536 = vmatprep.subr.mxu0 0.0
    %1537 = vmatpush2.msra.mxu0 0.0
    %1538 = vmatprep.subr.mxu0 0.0
    %1539 = vmatpush2.msra.mxu0 0.0
    %1540 = vmatprep.subr.mxu0 0.0
    %1541 = vmatpush2.msra.mxu0 0.0
    %1542 = vmatprep.subr.mxu0 0.0
    %1543 = vmatpush2.msra.mxu0 0.0
    %1544 = vmatprep.subr.mxu0 0.0
    %1545 = vmatpush2.msra.mxu0 0.0
    %1546 = vmatprep.subr.mxu0 0.0
    %1547 = vmatpush2.msra.mxu0 0.0
    %1548 = vmatprep.subr.mxu0 0.0
    %1549 = vmatpush2.msra.mxu0 0.0
    %1550 = vmatprep.subr.mxu0 0.0
    %1551 = vmatpush2.msra.mxu0 0.0
    %1552 = vmatprep.subr.mxu0 0.0
    %1553 = vmatpush2.msra.mxu0 0.0
    %1554 = vmatprep.subr.mxu0 0.0
    %1555 = vmatpush2.msra.mxu0 0.0
    %1556 = vmatprep.mubr.f32.mxu0 0.0
    %1557 = vmatmul.mubr.f32.gmra.mxu0 %v1487
    %v1558 = vpop.f32.mrf.mxu0
    %v1559 = vadd.f32 %v1484, %v1558
    %v1560 = vpop.f32.mrf.mxu0
    %1561 = vmatprep.mubr.f32.mxu0 0.0
    %1562 = vmatmul.mubr.f32.gmra.mxu0 %v1490
    %v1563 = vpop.f32.mrf.mxu0
    %v1564 = vadd.f32 %v1484, %v1563
    %v1565 = vpop.f32.mrf.mxu0
    %1566 = vdwg.mxu0
    %v1567 = vmul.f32 %v1559, 0.5
    %v1568 = vmul.f32 %v1564, 0.5
    %v1569 = vmul.f32 %v1559, 0.70710677
    %v1570 = vmul.f32 %v1564, 0.70710677
    %vm1571 = vcmp.ge.f32.partialorder %v1569, 0.0
    %vm1572 = vcmp.ge.f32.partialorder %v1570, 0.0
    %v1573 = vsel %vm1571, 1.0, -1.0
    %v1574 = vsel %vm1572, 1.0, -1.0
    %v1575 = vand.u32 2147483647, %v1569
    %v1576 = vand.u32 2147483647, %v1570
    %v1577 = vmul.f32 %v1575, 0.3275911
    %v1578 = vmul.f32 %v1576, 0.3275911
    %v1579 = vadd.f32 %v1577, 1.0
    %v1580 = vadd.f32 %v1578, 1.0
    %v1581 = vrcp.pop %v1579
    %v1582 = vmul.f32 1.0, %v1581
    %v1583 = vrcp.pop %v1580
    %v1584 = vmul.f32 1.0, %v1583
    %v1585 = vmul.f32 %v1582, 1.0614054
    %v1586 = vmul.f32 %v1584, 1.0614054
    %v1587 = vsub.f32 %v1585, 1.4531521
    %v1588 = vsub.f32 %v1586, 1.4531521
    %v1589 = vmul.f32 %v1587, %v1582
    %v1590 = vmul.f32 %v1588, %v1584
    %v1591 = vadd.f32 %v1589, 1.4214138
    %v1592 = vadd.f32 %v1590, 1.4214138
    %v1593 = vmul.f32 %v1591, %v1582
    %v1594 = vmul.f32 %v1592, %v1584
    %v1595 = vsub.f32 %v1593, 0.28449672
    %v1596 = vsub.f32 %v1594, 0.28449672
    %v1597 = vmul.f32 %v1595, %v1582
    %v1598 = vmul.f32 %v1596, %v1584
    %v1599 = vadd.f32 %v1597, 0.2548296
    %v1600 = vadd.f32 %v1598, 0.2548296
    %v1601 = vmul.f32 %v1599, %v1582
    %v1602 = vmul.f32 %v1600, %v1584
    %v1603 = vsub.f32 0.0, %v1575
    %v1604 = vsub.f32 0.0, %v1576
    %v1605 = vmul.f32 %v1603, %v1575
    %v1606 = vmul.f32 %v1604, %v1576
    %v1607 = vmul.f32 %v1605, 1.442695
    %v1608 = vpow.pop %v1607
    %v1609 = vmul.f32 %v1606, 1.442695
    %v1610 = vpow.pop %v1609
    %v1611 = vmul.f32 %v1601, %v1608
    %v1612 = vmul.f32 %v1602, %v1610
    %v1613 = vsub.f32 1.0, %v1611
    %v1614 = vsub.f32 1.0, %v1612
    %v1615 = vmul.f32 %v1573, %v1613
    %v1616 = vmul.f32 %v1574, %v1614
    %v1617 = vadd.f32 %v1615, 1.0
    %v1618 = vadd.f32 %v1616, 1.0
    %v1619 = vmul.f32 %v1567, %v1617
    %v1620 = vmul.f32 %v1568, %v1618
    %v1621 = vld [vmem:[%s14] sm:$0xff]
    %v1622 = vld [vmem:[%s14 + $0x8] sm:$0xff]
    %v1623 = vld [vmem:[%s14 + $0x10] sm:$0xff]
    %v1624 = vld [vmem:[%s14 + $0x18] sm:$0xff]
    %v1625 = vld [vmem:[%s14 + $0x20] sm:$0xff]
    %v1626 = vld [vmem:[%s14 + $0x28] sm:$0xff]
    %v1627 = vld [vmem:[%s14 + $0x30] sm:$0xff]
    %v1628 = vld [vmem:[%s14 + $0x38] sm:$0xff]
    %v1629 = vld [vmem:[%s14 + $0x40] sm:$0xff]
    %v1630 = vld [vmem:[%s14 + $0x48] sm:$0xff]
    %v1631 = vld [vmem:[%s14 + $0x50] sm:$0xff]
    %v1632 = vld [vmem:[%s14 + $0x58] sm:$0xff]
    %v1633 = vld [vmem:[%s14 + $0x60] sm:$0xff]
    %v1634 = vld [vmem:[%s14 + $0x68] sm:$0xff]
    %v1635 = vld [vmem:[%s14 + $0x70] sm:$0xff]
    %v1636 = vld [vmem:[%s14 + $0x78] sm:$0xff]
    %v1637 = vld [vmem:[%s15] sm:$0x1]
    %v1639 = vlaneseq
    %v1640 = vshrl.u32 %v1639, 7
    %v1641 = vsub.s32 0, %v1640
    %v1642 = vrot.slane %v1637, %v1641
    %1644 = vmatprep.subr.mxu0 0.0
    %1645 = vmatpush1.msra.mxu0 %v1636
    %1646 = vmatprep.subr.mxu0 0.0
    %1647 = vmatpush1.msra.mxu0 %v1635
    %1648 = vmatprep.subr.mxu0 0.0
    %1649 = vmatpush1.msra.mxu0 %v1634
    %1650 = vmatprep.subr.mxu0 0.0
    %1651 = vmatpush1.msra.mxu0 %v1633
    %1652 = vmatprep.subr.mxu0 0.0
    %1653 = vmatpush1.msra.mxu0 %v1632
    %1654 = vmatprep.subr.mxu0 0.0
    %1655 = vmatpush1.msra.mxu0 %v1631
    %1656 = vmatprep.subr.mxu0 0.0
    %1657 = vmatpush1.msra.mxu0 %v1630
    %1658 = vmatprep.subr.mxu0 0.0
    %1659 = vmatpush1.msra.mxu0 %v1629
    %1660 = vmatprep.subr.mxu0 0.0
    %1661 = vmatpush1.msra.mxu0 %v1628
    %1662 = vmatprep.subr.mxu0 0.0
    %1663 = vmatpush1.msra.mxu0 %v1627
    %1664 = vmatprep.subr.mxu0 0.0
    %1665 = vmatpush1.msra.mxu0 %v1626
    %1666 = vmatprep.subr.mxu0 0.0
    %1667 = vmatpush1.msra.mxu0 %v1625
    %1668 = vmatprep.subr.mxu0 0.0
    %1669 = vmatpush1.msra.mxu0 %v1624
    %1670 = vmatprep.subr.mxu0 0.0
    %1671 = vmatpush1.msra.mxu0 %v1623
    %1672 = vmatprep.subr.mxu0 0.0
    %1673 = vmatpush1.msra.mxu0 %v1622
    %1674 = vmatprep.subr.mxu0 0.0
    %1675 = vmatpush1.msra.mxu0 %v1621
    %1676 = vmatprep.subr.mxu0 0.0
    %1677 = vmatpush2.msra.mxu0 0.0
    %1678 = vmatprep.subr.mxu0 0.0
    %1679 = vmatpush2.msra.mxu0 0.0
    %1680 = vmatprep.subr.mxu0 0.0
    %1681 = vmatpush2.msra.mxu0 0.0
    %1682 = vmatprep.subr.mxu0 0.0
    %1683 = vmatpush2.msra.mxu0 0.0
    %1684 = vmatprep.subr.mxu0 0.0
    %1685 = vmatpush2.msra.mxu0 0.0
    %1686 = vmatprep.subr.mxu0 0.0
    %1687 = vmatpush2.msra.mxu0 0.0
    %1688 = vmatprep.subr.mxu0 0.0
    %1689 = vmatpush2.msra.mxu0 0.0
    %1690 = vmatprep.subr.mxu0 0.0
    %1691 = vmatpush2.msra.mxu0 0.0
    %1692 = vmatprep.subr.mxu0 0.0
    %1693 = vmatpush2.msra.mxu0 0.0
    %1694 = vmatprep.subr.mxu0 0.0
    %1695 = vmatpush2.msra.mxu0 0.0
    %1696 = vmatprep.subr.mxu0 0.0
    %1697 = vmatpush2.msra.mxu0 0.0
    %1698 = vmatprep.subr.mxu0 0.0
    %1699 = vmatpush2.msra.mxu0 0.0
    %1700 = vmatprep.subr.mxu0 0.0
    %1701 = vmatpush2.msra.mxu0 0.0
    %1702 = vmatprep.subr.mxu0 0.0
    %1703 = vmatpush2.msra.mxu0 0.0
    %1704 = vmatprep.subr.mxu0 0.0
    %1705 = vmatpush2.msra.mxu0 0.0
    %1706 = vmatprep.subr.mxu0 0.0
    %1707 = vmatpush2.msra.mxu0 0.0
    %1708 = vmatprep.mubr.f32.mxu0 0.0
    %1709 = vmatmul.mubr.f32.gmra.mxu0 %v1619
    %v1710 = vpop.f32.mrf.mxu0
    %v1711 = vadd.f32 %v1642, %v1710
    %v1712 = vpop.f32.mrf.mxu0
    %1713 = vmatprep.mubr.f32.mxu0 0.0
    %1714 = vmatmul.mubr.f32.gmra.mxu0 %v1620
    %v1715 = vpop.f32.mrf.mxu0
    %v1716 = vadd.f32 %v1642, %v1715
    %v1717 = vpop.f32.mrf.mxu0
    %1718 = vdwg.mxu0
    %v1719 = vadd.f32 %v1711, %v1473
    %v1720 = vadd.f32 %v1716, %v1474
    %v1721 = vld [vmem:[%s16] sm:$0x1]
    %v1722 = vld [vmem:[%s17] sm:$0x1]
    %v1723 = vsel %vm80, %v1719, 0.0
    %1724 = vadd.xlane.f32.xlu0 %v1723
    %v1725 = vpop.xlane.xlu0 %1724
    %v1726 = vsel %vm80, %v1720, 0.0
    %1727 = vadd.xlane.f32.xlu0 %v1726
    %v1728 = vpop.xlane.xlu0 %1727
    %v1729 = vmul.f32 %v1725, %v1438
    %v1730 = vmul.f32 %v1728, %v1438
    %v1731 = vsub.f32 %v1719, %v1729
    %v1732 = vsub.f32 %v1720, %v1730
    %v1733 = vmul.f32 %v1731, %v1731
    %v1734 = vmul.f32 %v1732, %v1732
    %v1735 = vsel %vm80, %v1733, 0.0
    %1736 = vadd.xlane.f32.xlu0 %v1735
    %v1737 = vpop.xlane.xlu0 %1736
    %v1738 = vsel %vm80, %v1734, 0.0
    %1739 = vadd.xlane.f32.xlu0 %v1738
    %v1740 = vpop.xlane.xlu0 %1739
    %v1741 = vmul.f32 %v1737, %v1438
    %v1742 = vmul.f32 %v1740, %v1438
    %v1743 = vadd.f32 %v1741, 1e-12
    %v1744 = vadd.f32 %v1742, 1e-12
    %v1745 = vrsqrt.pop %v1743
    %v1746 = vrsqrt.pop %v1744
    %v1747 = vmul.f32 %v1731, %v1745
    %v1748 = vmul.f32 %v1732, %v1746
    %v1750 = vlaneseq
    %v1751 = vshrl.u32 %v1750, 7
    %v1752 = vsub.s32 0, %v1751
    %v1753 = vrot.slane %v1721, %v1752
    %v1755 = vmul.f32 %v1747, %v1753
    %v1756 = vmul.f32 %v1748, %v1753
    %v1758 = vlaneseq
    %v1759 = vshrl.u32 %v1758, 7
    %v1760 = vsub.s32 0, %v1759
    %v1761 = vrot.slane %v1722, %v1760
    %v1763 = vadd.f32 %v1755, %v1761
    %v1764 = vadd.f32 %v1756, %v1761
    %s1765 = scalar_lea.vmem %s2, 64
    %v1766 = vld [vmem:[%s1765] sm:$0xff]
    %v1767 = vld [vmem:[%s1765 + $0x8] sm:$0xff]
    %v1768 = vld [vmem:[%s1765 + $0x10] sm:$0xff]
    %v1769 = vld [vmem:[%s1765 + $0x18] sm:$0xff]
    %s1770 = scalar_lea.vmem %s3, 2
    %v1771 = vld [vmem:[%s1770] sm:$0x1]
    %v1773 = vlaneseq
    %v1774 = vshrl.u32 %v1773, 7
    %v1775 = vsub.s32 0, %v1774
    %v1776 = vrot.slane %v1771, %v1775
    %v1779 = vsel %vm80, %v1763, 0
    %v1782 = vsel %vm80, %v1764, 0
    %1784 = vmatprep.subr.mxu0 0.0
    %1785 = vmatpush1.msra.mxu0 0.0
    %1786 = vmatprep.subr.mxu0 0.0
    %1787 = vmatpush1.msra.mxu0 0.0
    %1788 = vmatprep.subr.mxu0 0.0
    %1789 = vmatpush1.msra.mxu0 0.0
    %1790 = vmatprep.subr.mxu0 0.0
    %1791 = vmatpush1.msra.mxu0 0.0
    %1792 = vmatprep.subr.mxu0 0.0
    %1793 = vmatpush1.msra.mxu0 0.0
    %1794 = vmatprep.subr.mxu0 0.0
    %1795 = vmatpush1.msra.mxu0 0.0
    %1796 = vmatprep.subr.mxu0 0.0
    %1797 = vmatpush1.msra.mxu0 0.0
    %1798 = vmatprep.subr.mxu0 0.0
    %1799 = vmatpush1.msra.mxu0 0.0
    %1800 = vmatprep.subr.mxu0 0.0
    %1801 = vmatpush1.msra.mxu0 0.0
    %1802 = vmatprep.subr.mxu0 0.0
    %1803 = vmatpush1.msra.mxu0 0.0
    %1804 = vmatprep.subr.mxu0 0.0
    %1805 = vmatpush1.msra.mxu0 0.0
    %1806 = vmatprep.subr.mxu0 0.0
    %1807 = vmatpush1.msra.mxu0 0.0
    %1808 = vmatprep.subr.mxu0 0.0
    %1809 = vmatpush1.msra.mxu0 %v1769
    %1810 = vmatprep.subr.mxu0 0.0
    %1811 = vmatpush1.msra.mxu0 %v1768
    %1812 = vmatprep.subr.mxu0 0.0
    %1813 = vmatpush1.msra.mxu0 %v1767
    %1814 = vmatprep.subr.mxu0 0.0
    %1815 = vmatpush1.msra.mxu0 %v1766
    %1816 = vmatprep.subr.mxu0 0.0
    %1817 = vmatpush2.msra.mxu0 0.0
    %1818 = vmatprep.subr.mxu0 0.0
    %1819 = vmatpush2.msra.mxu0 0.0
    %1820 = vmatprep.subr.mxu0 0.0
    %1821 = vmatpush2.msra.mxu0 0.0
    %1822 = vmatprep.subr.mxu0 0.0
    %1823 = vmatpush2.msra.mxu0 0.0
    %1824 = vmatprep.subr.mxu0 0.0
    %1825 = vmatpush2.msra.mxu0 0.0
    %1826 = vmatprep.subr.mxu0 0.0
    %1827 = vmatpush2.msra.mxu0 0.0
    %1828 = vmatprep.subr.mxu0 0.0
    %1829 = vmatpush2.msra.mxu0 0.0
    %1830 = vmatprep.subr.mxu0 0.0
    %1831 = vmatpush2.msra.mxu0 0.0
    %1832 = vmatprep.subr.mxu0 0.0
    %1833 = vmatpush2.msra.mxu0 0.0
    %1834 = vmatprep.subr.mxu0 0.0
    %1835 = vmatpush2.msra.mxu0 0.0
    %1836 = vmatprep.subr.mxu0 0.0
    %1837 = vmatpush2.msra.mxu0 0.0
    %1838 = vmatprep.subr.mxu0 0.0
    %1839 = vmatpush2.msra.mxu0 0.0
    %1840 = vmatprep.subr.mxu0 0.0
    %1841 = vmatpush2.msra.mxu0 0.0
    %1842 = vmatprep.subr.mxu0 0.0
    %1843 = vmatpush2.msra.mxu0 0.0
    %1844 = vmatprep.subr.mxu0 0.0
    %1845 = vmatpush2.msra.mxu0 0.0
    %1846 = vmatprep.subr.mxu0 0.0
    %1847 = vmatpush2.msra.mxu0 0.0
    %1848 = vmatprep.mubr.f32.mxu0 0.0
    %1849 = vmatmul.mubr.f32.gmra.mxu0 %v1779
    %v1850 = vpop.f32.mrf.mxu0
    %v1851 = vadd.f32 %v1776, %v1850
    %v1852 = vpop.f32.mrf.mxu0
    %1853 = vmatprep.mubr.f32.mxu0 0.0
    %1854 = vmatmul.mubr.f32.gmra.mxu0 %v1782
    %v1855 = vpop.f32.mrf.mxu0
    %v1856 = vadd.f32 %v1776, %v1855
    %v1857 = vpop.f32.mrf.mxu0
    %1858 = vdwg.mxu0
    %s1859 = scalar_lea.vmem %s4, 64
    %v1860 = vld [vmem:[%s1859] sm:$0xff]
    %v1861 = vld [vmem:[%s1859 + $0x8] sm:$0xff]
    %v1862 = vld [vmem:[%s1859 + $0x10] sm:$0xff]
    %v1863 = vld [vmem:[%s1859 + $0x18] sm:$0xff]
    %s1864 = scalar_lea.vmem %s5, 2
    %v1865 = vld [vmem:[%s1864] sm:$0x1]
    %v1867 = vlaneseq
    %v1868 = vshrl.u32 %v1867, 7
    %v1869 = vsub.s32 0, %v1868
    %v1870 = vrot.slane %v1865, %v1869
    %1872 = vmatprep.subr.mxu0 0.0
    %1873 = vmatpush1.msra.mxu0 0.0
    %1874 = vmatprep.subr.mxu0 0.0
    %1875 = vmatpush1.msra.mxu0 0.0
    %1876 = vmatprep.subr.mxu0 0.0
    %1877 = vmatpush1.msra.mxu0 0.0
    %1878 = vmatprep.subr.mxu0 0.0
    %1879 = vmatpush1.msra.mxu0 0.0
    %1880 = vmatprep.subr.mxu0 0.0
    %1881 = vmatpush1.msra.mxu0 0.0
    %1882 = vmatprep.subr.mxu0 0.0
    %1883 = vmatpush1.msra.mxu0 0.0
    %1884 = vmatprep.subr.mxu0 0.0
    %1885 = vmatpush1.msra.mxu0 0.0
    %1886 = vmatprep.subr.mxu0 0.0
    %1887 = vmatpush1.msra.mxu0 0.0
    %1888 = vmatprep.subr.mxu0 0.0
    %1889 = vmatpush1.msra.mxu0 0.0
    %1890 = vmatprep.subr.mxu0 0.0
    %1891 = vmatpush1.msra.mxu0 0.0
    %1892 = vmatprep.subr.mxu0 0.0
    %1893 = vmatpush1.msra.mxu0 0.0
    %1894 = vmatprep.subr.mxu0 0.0
    %1895 = vmatpush1.msra.mxu0 0.0
    %1896 = vmatprep.subr.mxu0 0.0
    %1897 = vmatpush1.msra.mxu0 %v1863
    %1898 = vmatprep.subr.mxu0 0.0
    %1899 = vmatpush1.msra.mxu0 %v1862
    %1900 = vmatprep.subr.mxu0 0.0
    %1901 = vmatpush1.msra.mxu0 %v1861
    %1902 = vmatprep.subr.mxu0 0.0
    %1903 = vmatpush1.msra.mxu0 %v1860
    %1904 = vmatprep.subr.mxu0 0.0
    %1905 = vmatpush2.msra.mxu0 0.0
    %1906 = vmatprep.subr.mxu0 0.0
    %1907 = vmatpush2.msra.mxu0 0.0
    %1908 = vmatprep.subr.mxu0 0.0
    %1909 = vmatpush2.msra.mxu0 0.0
    %1910 = vmatprep.subr.mxu0 0.0
    %1911 = vmatpush2.msra.mxu0 0.0
    %1912 = vmatprep.subr.mxu0 0.0
    %1913 = vmatpush2.msra.mxu0 0.0
    %1914 = vmatprep.subr.mxu0 0.0
    %1915 = vmatpush2.msra.mxu0 0.0
    %1916 = vmatprep.subr.mxu0 0.0
    %1917 = vmatpush2.msra.mxu0 0.0
    %1918 = vmatprep.subr.mxu0 0.0
    %1919 = vmatpush2.msra.mxu0 0.0
    %1920 = vmatprep.subr.mxu0 0.0
    %1921 = vmatpush2.msra.mxu0 0.0
    %1922 = vmatprep.subr.mxu0 0.0
    %1923 = vmatpush2.msra.mxu0 0.0
    %1924 = vmatprep.subr.mxu0 0.0
    %1925 = vmatpush2.msra.mxu0 0.0
    %1926 = vmatprep.subr.mxu0 0.0
    %1927 = vmatpush2.msra.mxu0 0.0
    %1928 = vmatprep.subr.mxu0 0.0
    %1929 = vmatpush2.msra.mxu0 0.0
    %1930 = vmatprep.subr.mxu0 0.0
    %1931 = vmatpush2.msra.mxu0 0.0
    %1932 = vmatprep.subr.mxu0 0.0
    %1933 = vmatpush2.msra.mxu0 0.0
    %1934 = vmatprep.subr.mxu0 0.0
    %1935 = vmatpush2.msra.mxu0 0.0
    %1936 = vmatprep.mubr.f32.mxu0 0.0
    %1937 = vmatmul.mubr.f32.gmra.mxu0 %v1779
    %v1938 = vpop.f32.mrf.mxu0
    %v1939 = vadd.f32 %v1870, %v1938
    %v1940 = vpop.f32.mrf.mxu0
    %1941 = vmatprep.mubr.f32.mxu0 0.0
    %1942 = vmatmul.mubr.f32.gmra.mxu0 %v1782
    %v1943 = vpop.f32.mrf.mxu0
    %v1944 = vadd.f32 %v1870, %v1943
    %v1945 = vpop.f32.mrf.mxu0
    %1946 = vdwg.mxu0
    %s1947 = scalar_lea.vmem %s6, 64
    %v1948 = vld [vmem:[%s1947] sm:$0xff]
    %v1949 = vld [vmem:[%s1947 + $0x8] sm:$0xff]
    %v1950 = vld [vmem:[%s1947 + $0x10] sm:$0xff]
    %v1951 = vld [vmem:[%s1947 + $0x18] sm:$0xff]
    %s1952 = scalar_lea.vmem %s7, 2
    %v1953 = vld [vmem:[%s1952] sm:$0x1]
    %v1955 = vlaneseq
    %v1956 = vshrl.u32 %v1955, 7
    %v1957 = vsub.s32 0, %v1956
    %v1958 = vrot.slane %v1953, %v1957
    %1960 = vmatprep.subr.mxu0 0.0
    %1961 = vmatpush1.msra.mxu0 0.0
    %1962 = vmatprep.subr.mxu0 0.0
    %1963 = vmatpush1.msra.mxu0 0.0
    %1964 = vmatprep.subr.mxu0 0.0
    %1965 = vmatpush1.msra.mxu0 0.0
    %1966 = vmatprep.subr.mxu0 0.0
    %1967 = vmatpush1.msra.mxu0 0.0
    %1968 = vmatprep.subr.mxu0 0.0
    %1969 = vmatpush1.msra.mxu0 0.0
    %1970 = vmatprep.subr.mxu0 0.0
    %1971 = vmatpush1.msra.mxu0 0.0
    %1972 = vmatprep.subr.mxu0 0.0
    %1973 = vmatpush1.msra.mxu0 0.0
    %1974 = vmatprep.subr.mxu0 0.0
    %1975 = vmatpush1.msra.mxu0 0.0
    %1976 = vmatprep.subr.mxu0 0.0
    %1977 = vmatpush1.msra.mxu0 0.0
    %1978 = vmatprep.subr.mxu0 0.0
    %1979 = vmatpush1.msra.mxu0 0.0
    %1980 = vmatprep.subr.mxu0 0.0
    %1981 = vmatpush1.msra.mxu0 0.0
    %1982 = vmatprep.subr.mxu0 0.0
    %1983 = vmatpush1.msra.mxu0 0.0
    %1984 = vmatprep.subr.mxu0 0.0
    %1985 = vmatpush1.msra.mxu0 %v1951
    %1986 = vmatprep.subr.mxu0 0.0
    %1987 = vmatpush1.msra.mxu0 %v1950
    %1988 = vmatprep.subr.mxu0 0.0
    %1989 = vmatpush1.msra.mxu0 %v1949
    %1990 = vmatprep.subr.mxu0 0.0
    %1991 = vmatpush1.msra.mxu0 %v1948
    %1992 = vmatprep.subr.mxu0 0.0
    %1993 = vmatpush2.msra.mxu0 0.0
    %1994 = vmatprep.subr.mxu0 0.0
    %1995 = vmatpush2.msra.mxu0 0.0
    %1996 = vmatprep.subr.mxu0 0.0
    %1997 = vmatpush2.msra.mxu0 0.0
    %1998 = vmatprep.subr.mxu0 0.0
    %1999 = vmatpush2.msra.mxu0 0.0
    %2000 = vmatprep.subr.mxu0 0.0
    %2001 = vmatpush2.msra.mxu0 0.0
    %2002 = vmatprep.subr.mxu0 0.0
    %2003 = vmatpush2.msra.mxu0 0.0
    %2004 = vmatprep.subr.mxu0 0.0
    %2005 = vmatpush2.msra.mxu0 0.0
    %2006 = vmatprep.subr.mxu0 0.0
    %2007 = vmatpush2.msra.mxu0 0.0
    %2008 = vmatprep.subr.mxu0 0.0
    %2009 = vmatpush2.msra.mxu0 0.0
    %2010 = vmatprep.subr.mxu0 0.0
    %2011 = vmatpush2.msra.mxu0 0.0
    %2012 = vmatprep.subr.mxu0 0.0
    %2013 = vmatpush2.msra.mxu0 0.0
    %2014 = vmatprep.subr.mxu0 0.0
    %2015 = vmatpush2.msra.mxu0 0.0
    %2016 = vmatprep.subr.mxu0 0.0
    %2017 = vmatpush2.msra.mxu0 0.0
    %2018 = vmatprep.subr.mxu0 0.0
    %2019 = vmatpush2.msra.mxu0 0.0
    %2020 = vmatprep.subr.mxu0 0.0
    %2021 = vmatpush2.msra.mxu0 0.0
    %2022 = vmatprep.subr.mxu0 0.0
    %2023 = vmatpush2.msra.mxu0 0.0
    %2024 = vmatprep.mubr.f32.mxu0 0.0
    %2025 = vmatmul.mubr.f32.gmra.mxu0 %v1779
    %v2026 = vpop.f32.mrf.mxu0
    %v2027 = vadd.f32 %v1958, %v2026
    %v2028 = vpop.f32.mrf.mxu0
    %2029 = vmatprep.mubr.f32.mxu0 0.0
    %2030 = vmatmul.mubr.f32.gmra.mxu0 %v1782
    %v2031 = vpop.f32.mrf.mxu0
    %v2032 = vadd.f32 %v1958, %v2031
    %v2033 = vpop.f32.mrf.mxu0
    %2034 = vdwg.mxu0
    %v2036 = vsel %vm334, %v1851, 0
    %v2039 = vsel %vm334, %v1939, 0
    %2041 = vmatprep.subr.mxu0 0.0
    %2042 = vmatpush1.xpose.msra.mxu0 0.0
    %2043 = vmatprep.subr.mxu0 0.0
    %2044 = vmatpush1.xpose.msra.mxu0 0.0
    %2045 = vmatprep.subr.mxu0 0.0
    %2046 = vmatpush1.xpose.msra.mxu0 0.0
    %2047 = vmatprep.subr.mxu0 0.0
    %2048 = vmatpush1.xpose.msra.mxu0 0.0
    %2049 = vmatprep.subr.mxu0 0.0
    %2050 = vmatpush1.xpose.msra.mxu0 0.0
    %2051 = vmatprep.subr.mxu0 0.0
    %2052 = vmatpush1.xpose.msra.mxu0 0.0
    %2053 = vmatprep.subr.mxu0 0.0
    %2054 = vmatpush1.xpose.msra.mxu0 0.0
    %2055 = vmatprep.subr.mxu0 0.0
    %2056 = vmatpush1.xpose.msra.mxu0 0.0
    %2057 = vmatprep.subr.mxu0 0.0
    %2058 = vmatpush1.xpose.msra.mxu0 0.0
    %2059 = vmatprep.subr.mxu0 0.0
    %2060 = vmatpush1.xpose.msra.mxu0 0.0
    %2061 = vmatprep.subr.mxu0 0.0
    %2062 = vmatpush1.xpose.msra.mxu0 0.0
    %2063 = vmatprep.subr.mxu0 0.0
    %2064 = vmatpush1.xpose.msra.mxu0 0.0
    %2065 = vmatprep.subr.mxu0 0.0
    %2066 = vmatpush1.xpose.msra.mxu0 0.0
    %2067 = vmatprep.subr.mxu0 0.0
    %2068 = vmatpush1.xpose.msra.mxu0 0.0
    %2069 = vmatprep.subr.mxu0 0.0
    %2070 = vmatpush1.xpose.msra.mxu0 0.0
    %2071 = vmatprep.subr.mxu0 0.0
    %2072 = vmatpush1.xpose.msra.mxu0 %v2039
    %2073 = vmatprep.subr.mxu0 0.0
    %2074 = vmatpush2.xpose.msra.mxu0 0.0
    %2075 = vmatprep.subr.mxu0 0.0
    %2076 = vmatpush2.xpose.msra.mxu0 0.0
    %2077 = vmatprep.subr.mxu0 0.0
    %2078 = vmatpush2.xpose.msra.mxu0 0.0
    %2079 = vmatprep.subr.mxu0 0.0
    %2080 = vmatpush2.xpose.msra.mxu0 0.0
    %2081 = vmatprep.subr.mxu0 0.0
    %2082 = vmatpush2.xpose.msra.mxu0 0.0
    %2083 = vmatprep.subr.mxu0 0.0
    %2084 = vmatpush2.xpose.msra.mxu0 0.0
    %2085 = vmatprep.subr.mxu0 0.0
    %2086 = vmatpush2.xpose.msra.mxu0 0.0
    %2087 = vmatprep.subr.mxu0 0.0
    %2088 = vmatpush2.xpose.msra.mxu0 0.0
    %2089 = vmatprep.subr.mxu0 0.0
    %2090 = vmatpush2.xpose.msra.mxu0 0.0
    %2091 = vmatprep.subr.mxu0 0.0
    %2092 = vmatpush2.xpose.msra.mxu0 0.0
    %2093 = vmatprep.subr.mxu0 0.0
    %2094 = vmatpush2.xpose.msra.mxu0 0.0
    %2095 = vmatprep.subr.mxu0 0.0
    %2096 = vmatpush2.xpose.msra.mxu0 0.0
    %2097 = vmatprep.subr.mxu0 0.0
    %2098 = vmatpush2.xpose.msra.mxu0 0.0
    %2099 = vmatprep.subr.mxu0 0.0
    %2100 = vmatpush2.xpose.msra.mxu0 0.0
    %2101 = vmatprep.subr.mxu0 0.0
    %2102 = vmatpush2.xpose.msra.mxu0 0.0
    %2103 = vmatprep.subr.mxu0 0.0
    %2104 = vmatpush2.xpose.msra.mxu0 0.0
    %2105 = vmatprep.mubr.f32.mxu0 0.0
    %2106 = vmatmul.mubr.f32.gmra.mxu0 %v2036
    %v2107 = vpop.f32.mrf.mxu0
    %v2108 = vadd.f32 0.0, %v2107
    %v2109 = vpop.f32.mrf.mxu0
    %2110 = vdwg.mxu0
    %v2112 = vsel %vm334, %v1856, 0
    %v2115 = vsel %vm334, %v1944, 0
    %2117 = vmatprep.subr.mxu0 0.0
    %2118 = vmatpush1.xpose.msra.mxu0 0.0
    %2119 = vmatprep.subr.mxu0 0.0
    %2120 = vmatpush1.xpose.msra.mxu0 0.0
    %2121 = vmatprep.subr.mxu0 0.0
    %2122 = vmatpush1.xpose.msra.mxu0 0.0
    %2123 = vmatprep.subr.mxu0 0.0
    %2124 = vmatpush1.xpose.msra.mxu0 0.0
    %2125 = vmatprep.subr.mxu0 0.0
    %2126 = vmatpush1.xpose.msra.mxu0 0.0
    %2127 = vmatprep.subr.mxu0 0.0
    %2128 = vmatpush1.xpose.msra.mxu0 0.0
    %2129 = vmatprep.subr.mxu0 0.0
    %2130 = vmatpush1.xpose.msra.mxu0 0.0
    %2131 = vmatprep.subr.mxu0 0.0
    %2132 = vmatpush1.xpose.msra.mxu0 0.0
    %2133 = vmatprep.subr.mxu0 0.0
    %2134 = vmatpush1.xpose.msra.mxu0 0.0
    %2135 = vmatprep.subr.mxu0 0.0
    %2136 = vmatpush1.xpose.msra.mxu0 0.0
    %2137 = vmatprep.subr.mxu0 0.0
    %2138 = vmatpush1.xpose.msra.mxu0 0.0
    %2139 = vmatprep.subr.mxu0 0.0
    %2140 = vmatpush1.xpose.msra.mxu0 0.0
    %2141 = vmatprep.subr.mxu0 0.0
    %2142 = vmatpush1.xpose.msra.mxu0 0.0
    %2143 = vmatprep.subr.mxu0 0.0
    %2144 = vmatpush1.xpose.msra.mxu0 0.0
    %2145 = vmatprep.subr.mxu0 0.0
    %2146 = vmatpush1.xpose.msra.mxu0 0.0
    %2147 = vmatprep.subr.mxu0 0.0
    %2148 = vmatpush1.xpose.msra.mxu0 %v2115
    %2149 = vmatprep.subr.mxu0 0.0
    %2150 = vmatpush2.xpose.msra.mxu0 0.0
    %2151 = vmatprep.subr.mxu0 0.0
    %2152 = vmatpush2.xpose.msra.mxu0 0.0
    %2153 = vmatprep.subr.mxu0 0.0
    %2154 = vmatpush2.xpose.msra.mxu0 0.0
    %2155 = vmatprep.subr.mxu0 0.0
    %2156 = vmatpush2.xpose.msra.mxu0 0.0
    %2157 = vmatprep.subr.mxu0 0.0
    %2158 = vmatpush2.xpose.msra.mxu0 0.0
    %2159 = vmatprep.subr.mxu0 0.0
    %2160 = vmatpush2.xpose.msra.mxu0 0.0
    %2161 = vmatprep.subr.mxu0 0.0
    %2162 = vmatpush2.xpose.msra.mxu0 0.0
    %2163 = vmatprep.subr.mxu0 0.0
    %2164 = vmatpush2.xpose.msra.mxu0 0.0
    %2165 = vmatprep.subr.mxu0 0.0
    %2166 = vmatpush2.xpose.msra.mxu0 0.0
    %2167 = vmatprep.subr.mxu0 0.0
    %2168 = vmatpush2.xpose.msra.mxu0 0.0
    %2169 = vmatprep.subr.mxu0 0.0
    %2170 = vmatpush2.xpose.msra.mxu0 0.0
    %2171 = vmatprep.subr.mxu0 0.0
    %2172 = vmatpush2.xpose.msra.mxu0 0.0
    %2173 = vmatprep.subr.mxu0 0.0
    %2174 = vmatpush2.xpose.msra.mxu0 0.0
    %2175 = vmatprep.subr.mxu0 0.0
    %2176 = vmatpush2.xpose.msra.mxu0 0.0
    %2177 = vmatprep.subr.mxu0 0.0
    %2178 = vmatpush2.xpose.msra.mxu0 0.0
    %2179 = vmatprep.subr.mxu0 0.0
    %2180 = vmatpush2.xpose.msra.mxu0 0.0
    %2181 = vmatprep.mubr.f32.mxu0 0.0
    %2182 = vmatmul.mubr.f32.gmra.mxu0 %v2112
    %v2183 = vpop.f32.mrf.mxu0
    %v2184 = vadd.f32 0.0, %v2183
    %v2185 = vpop.f32.mrf.mxu0
    %2186 = vdwg.mxu0
    %v2187 = vmul.f32 %v2108, 0.25
    %v2188 = vmul.f32 %v2184, 0.25
    %v2189 = vsel %vm67, -1e+09, %v2187
    %v2190 = vsel %vm68, -1e+09, %v2188
    %v2191 = vsel %vm491, %v2189, -inf
    %2192 = vmax.xlane.f32.xlu0 %v2191
    %v2193 = vpop.xlane.xlu0 %2192
    %v2194 = vsel %vm491, %v2190, -inf
    %2195 = vmax.xlane.f32.xlu0 %v2194
    %v2196 = vpop.xlane.xlu0 %2195
    %v2197 = vsub.f32 %v2189, %v2193
    %v2198 = vsub.f32 %v2190, %v2196
    %v2199 = vmul.f32 %v2197, 1.442695
    %v2200 = vpow.pop %v2199
    %v2201 = vmul.f32 %v2198, 1.442695
    %v2202 = vpow.pop %v2201
    %v2203 = vsel %vm491, %v2200, 0.0
    %2204 = vadd.xlane.f32.xlu0 %v2203
    %v2205 = vpop.xlane.xlu0 %2204
    %v2206 = vsel %vm491, %v2202, 0.0
    %2207 = vadd.xlane.f32.xlu0 %v2206
    %v2208 = vpop.xlane.xlu0 %2207
    %v2209 = vrcp.pop %v2205
    %v2210 = vrcp.pop %v2208
    %v2211 = vmul.f32 %v2200, %v2209
    %v2212 = vmul.f32 %v2202, %v2210
    %v2214 = vsel %vm491, %v2211, 0
    %2216 = vmatprep.subr.mxu0 0.0
    %2217 = vmatpush1.msra.mxu0 0.0
    %2218 = vmatprep.subr.mxu0 0.0
    %2219 = vmatpush1.msra.mxu0 0.0
    %2220 = vmatprep.subr.mxu0 0.0
    %2221 = vmatpush1.msra.mxu0 0.0
    %2222 = vmatprep.subr.mxu0 0.0
    %2223 = vmatpush1.msra.mxu0 0.0
    %2224 = vmatprep.subr.mxu0 0.0
    %2225 = vmatpush1.msra.mxu0 0.0
    %2226 = vmatprep.subr.mxu0 0.0
    %2227 = vmatpush1.msra.mxu0 0.0
    %2228 = vmatprep.subr.mxu0 0.0
    %2229 = vmatpush1.msra.mxu0 0.0
    %2230 = vmatprep.subr.mxu0 0.0
    %2231 = vmatpush1.msra.mxu0 0.0
    %2232 = vmatprep.subr.mxu0 0.0
    %2233 = vmatpush1.msra.mxu0 0.0
    %2234 = vmatprep.subr.mxu0 0.0
    %2235 = vmatpush1.msra.mxu0 0.0
    %2236 = vmatprep.subr.mxu0 0.0
    %2237 = vmatpush1.msra.mxu0 0.0
    %2238 = vmatprep.subr.mxu0 0.0
    %2239 = vmatpush1.msra.mxu0 0.0
    %2240 = vmatprep.subr.mxu0 0.0
    %2241 = vmatpush1.msra.mxu0 0.0
    %2242 = vmatprep.subr.mxu0 0.0
    %2243 = vmatpush1.msra.mxu0 0.0
    %2244 = vmatprep.subr.mxu0 0.0
    %2245 = vmatpush1.msra.mxu0 0.0
    %2246 = vmatprep.subr.mxu0 0.0
    %2247 = vmatpush1.msra.mxu0 %v2027
    %2248 = vmatprep.subr.mxu0 0.0
    %2249 = vmatpush2.msra.mxu0 0.0
    %2250 = vmatprep.subr.mxu0 0.0
    %2251 = vmatpush2.msra.mxu0 0.0
    %2252 = vmatprep.subr.mxu0 0.0
    %2253 = vmatpush2.msra.mxu0 0.0
    %2254 = vmatprep.subr.mxu0 0.0
    %2255 = vmatpush2.msra.mxu0 0.0
    %2256 = vmatprep.subr.mxu0 0.0
    %2257 = vmatpush2.msra.mxu0 0.0
    %2258 = vmatprep.subr.mxu0 0.0
    %2259 = vmatpush2.msra.mxu0 0.0
    %2260 = vmatprep.subr.mxu0 0.0
    %2261 = vmatpush2.msra.mxu0 0.0
    %2262 = vmatprep.subr.mxu0 0.0
    %2263 = vmatpush2.msra.mxu0 0.0
    %2264 = vmatprep.subr.mxu0 0.0
    %2265 = vmatpush2.msra.mxu0 0.0
    %2266 = vmatprep.subr.mxu0 0.0
    %2267 = vmatpush2.msra.mxu0 0.0
    %2268 = vmatprep.subr.mxu0 0.0
    %2269 = vmatpush2.msra.mxu0 0.0
    %2270 = vmatprep.subr.mxu0 0.0
    %2271 = vmatpush2.msra.mxu0 0.0
    %2272 = vmatprep.subr.mxu0 0.0
    %2273 = vmatpush2.msra.mxu0 0.0
    %2274 = vmatprep.subr.mxu0 0.0
    %2275 = vmatpush2.msra.mxu0 0.0
    %2276 = vmatprep.subr.mxu0 0.0
    %2277 = vmatpush2.msra.mxu0 0.0
    %2278 = vmatprep.subr.mxu0 0.0
    %2279 = vmatpush2.msra.mxu0 0.0
    %2280 = vmatprep.mubr.f32.mxu0 0.0
    %2281 = vmatmul.mubr.f32.gmra.mxu0 %v2214
    %v2282 = vpop.f32.mrf.mxu0
    %v2283 = vadd.f32 0.0, %v2282
    %v2284 = vpop.f32.mrf.mxu0
    %2285 = vdwg.mxu0
    %v2287 = vsel %vm491, %v2212, 0
    %2289 = vmatprep.subr.mxu0 0.0
    %2290 = vmatpush1.msra.mxu0 0.0
    %2291 = vmatprep.subr.mxu0 0.0
    %2292 = vmatpush1.msra.mxu0 0.0
    %2293 = vmatprep.subr.mxu0 0.0
    %2294 = vmatpush1.msra.mxu0 0.0
    %2295 = vmatprep.subr.mxu0 0.0
    %2296 = vmatpush1.msra.mxu0 0.0
    %2297 = vmatprep.subr.mxu0 0.0
    %2298 = vmatpush1.msra.mxu0 0.0
    %2299 = vmatprep.subr.mxu0 0.0
    %2300 = vmatpush1.msra.mxu0 0.0
    %2301 = vmatprep.subr.mxu0 0.0
    %2302 = vmatpush1.msra.mxu0 0.0
    %2303 = vmatprep.subr.mxu0 0.0
    %2304 = vmatpush1.msra.mxu0 0.0
    %2305 = vmatprep.subr.mxu0 0.0
    %2306 = vmatpush1.msra.mxu0 0.0
    %2307 = vmatprep.subr.mxu0 0.0
    %2308 = vmatpush1.msra.mxu0 0.0
    %2309 = vmatprep.subr.mxu0 0.0
    %2310 = vmatpush1.msra.mxu0 0.0
    %2311 = vmatprep.subr.mxu0 0.0
    %2312 = vmatpush1.msra.mxu0 0.0
    %2313 = vmatprep.subr.mxu0 0.0
    %2314 = vmatpush1.msra.mxu0 0.0
    %2315 = vmatprep.subr.mxu0 0.0
    %2316 = vmatpush1.msra.mxu0 0.0
    %2317 = vmatprep.subr.mxu0 0.0
    %2318 = vmatpush1.msra.mxu0 0.0
    %2319 = vmatprep.subr.mxu0 0.0
    %2320 = vmatpush1.msra.mxu0 %v2032
    %2321 = vmatprep.subr.mxu0 0.0
    %2322 = vmatpush2.msra.mxu0 0.0
    %2323 = vmatprep.subr.mxu0 0.0
    %2324 = vmatpush2.msra.mxu0 0.0
    %2325 = vmatprep.subr.mxu0 0.0
    %2326 = vmatpush2.msra.mxu0 0.0
    %2327 = vmatprep.subr.mxu0 0.0
    %2328 = vmatpush2.msra.mxu0 0.0
    %2329 = vmatprep.subr.mxu0 0.0
    %2330 = vmatpush2.msra.mxu0 0.0
    %2331 = vmatprep.subr.mxu0 0.0
    %2332 = vmatpush2.msra.mxu0 0.0
    %2333 = vmatprep.subr.mxu0 0.0
    %2334 = vmatpush2.msra.mxu0 0.0
    %2335 = vmatprep.subr.mxu0 0.0
    %2336 = vmatpush2.msra.mxu0 0.0
    %2337 = vmatprep.subr.mxu0 0.0
    %2338 = vmatpush2.msra.mxu0 0.0
    %2339 = vmatprep.subr.mxu0 0.0
    %2340 = vmatpush2.msra.mxu0 0.0
    %2341 = vmatprep.subr.mxu0 0.0
    %2342 = vmatpush2.msra.mxu0 0.0
    %2343 = vmatprep.subr.mxu0 0.0
    %2344 = vmatpush2.msra.mxu0 0.0
    %2345 = vmatprep.subr.mxu0 0.0
    %2346 = vmatpush2.msra.mxu0 0.0
    %2347 = vmatprep.subr.mxu0 0.0
    %2348 = vmatpush2.msra.mxu0 0.0
    %2349 = vmatprep.subr.mxu0 0.0
    %2350 = vmatpush2.msra.mxu0 0.0
    %2351 = vmatprep.subr.mxu0 0.0
    %2352 = vmatpush2.msra.mxu0 0.0
    %2353 = vmatprep.mubr.f32.mxu0 0.0
    %2354 = vmatmul.mubr.f32.gmra.mxu0 %v2287
    %v2355 = vpop.f32.mrf.mxu0
    %v2356 = vadd.f32 0.0, %v2355
    %v2357 = vpop.f32.mrf.mxu0
    %2358 = vdwg.mxu0
    %s2359 = scalar_lea.vmem %s8, 32
    %v2360 = vld [vmem:[%s2359] sm:$0xff]
    %v2361 = vld [vmem:[%s2359 + $0x8] sm:$0xff]
    %s2362 = scalar_lea.vmem %s2, 96
    %v2363 = vld [vmem:[%s2362] sm:$0xff]
    %v2364 = vld [vmem:[%s2362 + $0x8] sm:$0xff]
    %v2365 = vld [vmem:[%s2362 + $0x10] sm:$0xff]
    %v2366 = vld [vmem:[%s2362 + $0x18] sm:$0xff]
    %s2367 = scalar_lea.vmem %s3, 3
    %v2368 = vld [vmem:[%s2367] sm:$0x1]
    %v2370 = vlaneseq
    %v2371 = vshrl.u32 %v2370, 7
    %v2372 = vsub.s32 0, %v2371
    %v2373 = vrot.slane %v2368, %v2372
    %2375 = vmatprep.subr.mxu0 0.0
    %2376 = vmatpush1.msra.mxu0 0.0
    %2377 = vmatprep.subr.mxu0 0.0
    %2378 = vmatpush1.msra.mxu0 0.0
    %2379 = vmatprep.subr.mxu0 0.0
    %2380 = vmatpush1.msra.mxu0 0.0
    %2381 = vmatprep.subr.mxu0 0.0
    %2382 = vmatpush1.msra.mxu0 0.0
    %2383 = vmatprep.subr.mxu0 0.0
    %2384 = vmatpush1.msra.mxu0 0.0
    %2385 = vmatprep.subr.mxu0 0.0
    %2386 = vmatpush1.msra.mxu0 0.0
    %2387 = vmatprep.subr.mxu0 0.0
    %2388 = vmatpush1.msra.mxu0 0.0
    %2389 = vmatprep.subr.mxu0 0.0
    %2390 = vmatpush1.msra.mxu0 0.0
    %2391 = vmatprep.subr.mxu0 0.0
    %2392 = vmatpush1.msra.mxu0 0.0
    %2393 = vmatprep.subr.mxu0 0.0
    %2394 = vmatpush1.msra.mxu0 0.0
    %2395 = vmatprep.subr.mxu0 0.0
    %2396 = vmatpush1.msra.mxu0 0.0
    %2397 = vmatprep.subr.mxu0 0.0
    %2398 = vmatpush1.msra.mxu0 0.0
    %2399 = vmatprep.subr.mxu0 0.0
    %2400 = vmatpush1.msra.mxu0 %v2366
    %2401 = vmatprep.subr.mxu0 0.0
    %2402 = vmatpush1.msra.mxu0 %v2365
    %2403 = vmatprep.subr.mxu0 0.0
    %2404 = vmatpush1.msra.mxu0 %v2364
    %2405 = vmatprep.subr.mxu0 0.0
    %2406 = vmatpush1.msra.mxu0 %v2363
    %2407 = vmatprep.subr.mxu0 0.0
    %2408 = vmatpush2.msra.mxu0 0.0
    %2409 = vmatprep.subr.mxu0 0.0
    %2410 = vmatpush2.msra.mxu0 0.0
    %2411 = vmatprep.subr.mxu0 0.0
    %2412 = vmatpush2.msra.mxu0 0.0
    %2413 = vmatprep.subr.mxu0 0.0
    %2414 = vmatpush2.msra.mxu0 0.0
    %2415 = vmatprep.subr.mxu0 0.0
    %2416 = vmatpush2.msra.mxu0 0.0
    %2417 = vmatprep.subr.mxu0 0.0
    %2418 = vmatpush2.msra.mxu0 0.0
    %2419 = vmatprep.subr.mxu0 0.0
    %2420 = vmatpush2.msra.mxu0 0.0
    %2421 = vmatprep.subr.mxu0 0.0
    %2422 = vmatpush2.msra.mxu0 0.0
    %2423 = vmatprep.subr.mxu0 0.0
    %2424 = vmatpush2.msra.mxu0 0.0
    %2425 = vmatprep.subr.mxu0 0.0
    %2426 = vmatpush2.msra.mxu0 0.0
    %2427 = vmatprep.subr.mxu0 0.0
    %2428 = vmatpush2.msra.mxu0 0.0
    %2429 = vmatprep.subr.mxu0 0.0
    %2430 = vmatpush2.msra.mxu0 0.0
    %2431 = vmatprep.subr.mxu0 0.0
    %2432 = vmatpush2.msra.mxu0 0.0
    %2433 = vmatprep.subr.mxu0 0.0
    %2434 = vmatpush2.msra.mxu0 0.0
    %2435 = vmatprep.subr.mxu0 0.0
    %2436 = vmatpush2.msra.mxu0 0.0
    %2437 = vmatprep.subr.mxu0 0.0
    %2438 = vmatpush2.msra.mxu0 0.0
    %2439 = vmatprep.mubr.f32.mxu0 0.0
    %2440 = vmatmul.mubr.f32.gmra.mxu0 %v1779
    %v2441 = vpop.f32.mrf.mxu0
    %v2442 = vadd.f32 %v2373, %v2441
    %v2443 = vpop.f32.mrf.mxu0
    %2444 = vmatprep.mubr.f32.mxu0 0.0
    %2445 = vmatmul.mubr.f32.gmra.mxu0 %v1782
    %v2446 = vpop.f32.mrf.mxu0
    %v2447 = vadd.f32 %v2373, %v2446
    %v2448 = vpop.f32.mrf.mxu0
    %2449 = vdwg.mxu0
    %s2450 = scalar_lea.vmem %s4, 96
    %v2451 = vld [vmem:[%s2450] sm:$0xff]
    %v2452 = vld [vmem:[%s2450 + $0x8] sm:$0xff]
    %v2453 = vld [vmem:[%s2450 + $0x10] sm:$0xff]
    %v2454 = vld [vmem:[%s2450 + $0x18] sm:$0xff]
    %s2455 = scalar_lea.vmem %s5, 3
    %v2456 = vld [vmem:[%s2455] sm:$0x1]
    %v2458 = vlaneseq
    %v2459 = vshrl.u32 %v2458, 7
    %v2460 = vsub.s32 0, %v2459
    %v2461 = vrot.slane %v2456, %v2460
    %2463 = vmatprep.subr.mxu0 0.0
    %2464 = vmatpush1.msra.mxu0 0.0
    %2465 = vmatprep.subr.mxu0 0.0
    %2466 = vmatpush1.msra.mxu0 0.0
    %2467 = vmatprep.subr.mxu0 0.0
    %2468 = vmatpush1.msra.mxu0 0.0
    %2469 = vmatprep.subr.mxu0 0.0
    %2470 = vmatpush1.msra.mxu0 0.0
    %2471 = vmatprep.subr.mxu0 0.0
    %2472 = vmatpush1.msra.mxu0 0.0
    %2473 = vmatprep.subr.mxu0 0.0
    %2474 = vmatpush1.msra.mxu0 0.0
    %2475 = vmatprep.subr.mxu0 0.0
    %2476 = vmatpush1.msra.mxu0 0.0
    %2477 = vmatprep.subr.mxu0 0.0
    %2478 = vmatpush1.msra.mxu0 0.0
    %2479 = vmatprep.subr.mxu0 0.0
    %2480 = vmatpush1.msra.mxu0 0.0
    %2481 = vmatprep.subr.mxu0 0.0
    %2482 = vmatpush1.msra.mxu0 0.0
    %2483 = vmatprep.subr.mxu0 0.0
    %2484 = vmatpush1.msra.mxu0 0.0
    %2485 = vmatprep.subr.mxu0 0.0
    %2486 = vmatpush1.msra.mxu0 0.0
    %2487 = vmatprep.subr.mxu0 0.0
    %2488 = vmatpush1.msra.mxu0 %v2454
    %2489 = vmatprep.subr.mxu0 0.0
    %2490 = vmatpush1.msra.mxu0 %v2453
    %2491 = vmatprep.subr.mxu0 0.0
    %2492 = vmatpush1.msra.mxu0 %v2452
    %2493 = vmatprep.subr.mxu0 0.0
    %2494 = vmatpush1.msra.mxu0 %v2451
    %2495 = vmatprep.subr.mxu0 0.0
    %2496 = vmatpush2.msra.mxu0 0.0
    %2497 = vmatprep.subr.mxu0 0.0
    %2498 = vmatpush2.msra.mxu0 0.0
    %2499 = vmatprep.subr.mxu0 0.0
    %2500 = vmatpush2.msra.mxu0 0.0
    %2501 = vmatprep.subr.mxu0 0.0
    %2502 = vmatpush2.msra.mxu0 0.0
    %2503 = vmatprep.subr.mxu0 0.0
    %2504 = vmatpush2.msra.mxu0 0.0
    %2505 = vmatprep.subr.mxu0 0.0
    %2506 = vmatpush2.msra.mxu0 0.0
    %2507 = vmatprep.subr.mxu0 0.0
    %2508 = vmatpush2.msra.mxu0 0.0
    %2509 = vmatprep.subr.mxu0 0.0
    %2510 = vmatpush2.msra.mxu0 0.0
    %2511 = vmatprep.subr.mxu0 0.0
    %2512 = vmatpush2.msra.mxu0 0.0
    %2513 = vmatprep.subr.mxu0 0.0
    %2514 = vmatpush2.msra.mxu0 0.0
    %2515 = vmatprep.subr.mxu0 0.0
    %2516 = vmatpush2.msra.mxu0 0.0
    %2517 = vmatprep.subr.mxu0 0.0
    %2518 = vmatpush2.msra.mxu0 0.0
    %2519 = vmatprep.subr.mxu0 0.0
    %2520 = vmatpush2.msra.mxu0 0.0
    %2521 = vmatprep.subr.mxu0 0.0
    %2522 = vmatpush2.msra.mxu0 0.0
    %2523 = vmatprep.subr.mxu0 0.0
    %2524 = vmatpush2.msra.mxu0 0.0
    %2525 = vmatprep.subr.mxu0 0.0
    %2526 = vmatpush2.msra.mxu0 0.0
    %2527 = vmatprep.mubr.f32.mxu0 0.0
    %2528 = vmatmul.mubr.f32.gmra.mxu0 %v1779
    %v2529 = vpop.f32.mrf.mxu0
    %v2530 = vadd.f32 %v2461, %v2529
    %v2531 = vpop.f32.mrf.mxu0
    %2532 = vmatprep.mubr.f32.mxu0 0.0
    %2533 = vmatmul.mubr.f32.gmra.mxu0 %v1782
    %v2534 = vpop.f32.mrf.mxu0
    %v2535 = vadd.f32 %v2461, %v2534
    %v2536 = vpop.f32.mrf.mxu0
    %2537 = vdwg.mxu0
    %s2538 = scalar_lea.vmem %s6, 96
    %v2539 = vld [vmem:[%s2538] sm:$0xff]
    %v2540 = vld [vmem:[%s2538 + $0x8] sm:$0xff]
    %v2541 = vld [vmem:[%s2538 + $0x10] sm:$0xff]
    %v2542 = vld [vmem:[%s2538 + $0x18] sm:$0xff]
    %s2543 = scalar_lea.vmem %s7, 3
    %v2544 = vld [vmem:[%s2543] sm:$0x1]
    %v2546 = vlaneseq
    %v2547 = vshrl.u32 %v2546, 7
    %v2548 = vsub.s32 0, %v2547
    %v2549 = vrot.slane %v2544, %v2548
    %2551 = vmatprep.subr.mxu0 0.0
    %2552 = vmatpush1.msra.mxu0 0.0
    %2553 = vmatprep.subr.mxu0 0.0
    %2554 = vmatpush1.msra.mxu0 0.0
    %2555 = vmatprep.subr.mxu0 0.0
    %2556 = vmatpush1.msra.mxu0 0.0
    %2557 = vmatprep.subr.mxu0 0.0
    %2558 = vmatpush1.msra.mxu0 0.0
    %2559 = vmatprep.subr.mxu0 0.0
    %2560 = vmatpush1.msra.mxu0 0.0
    %2561 = vmatprep.subr.mxu0 0.0
    %2562 = vmatpush1.msra.mxu0 0.0
    %2563 = vmatprep.subr.mxu0 0.0
    %2564 = vmatpush1.msra.mxu0 0.0
    %2565 = vmatprep.subr.mxu0 0.0
    %2566 = vmatpush1.msra.mxu0 0.0
    %2567 = vmatprep.subr.mxu0 0.0
    %2568 = vmatpush1.msra.mxu0 0.0
    %2569 = vmatprep.subr.mxu0 0.0
    %2570 = vmatpush1.msra.mxu0 0.0
    %2571 = vmatprep.subr.mxu0 0.0
    %2572 = vmatpush1.msra.mxu0 0.0
    %2573 = vmatprep.subr.mxu0 0.0
    %2574 = vmatpush1.msra.mxu0 0.0
    %2575 = vmatprep.subr.mxu0 0.0
    %2576 = vmatpush1.msra.mxu0 %v2542
    %2577 = vmatprep.subr.mxu0 0.0
    %2578 = vmatpush1.msra.mxu0 %v2541
    %2579 = vmatprep.subr.mxu0 0.0
    %2580 = vmatpush1.msra.mxu0 %v2540
    %2581 = vmatprep.subr.mxu0 0.0
    %2582 = vmatpush1.msra.mxu0 %v2539
    %2583 = vmatprep.subr.mxu0 0.0
    %2584 = vmatpush2.msra.mxu0 0.0
    %2585 = vmatprep.subr.mxu0 0.0
    %2586 = vmatpush2.msra.mxu0 0.0
    %2587 = vmatprep.subr.mxu0 0.0
    %2588 = vmatpush2.msra.mxu0 0.0
    %2589 = vmatprep.subr.mxu0 0.0
    %2590 = vmatpush2.msra.mxu0 0.0
    %2591 = vmatprep.subr.mxu0 0.0
    %2592 = vmatpush2.msra.mxu0 0.0
    %2593 = vmatprep.subr.mxu0 0.0
    %2594 = vmatpush2.msra.mxu0 0.0
    %2595 = vmatprep.subr.mxu0 0.0
    %2596 = vmatpush2.msra.mxu0 0.0
    %2597 = vmatprep.subr.mxu0 0.0
    %2598 = vmatpush2.msra.mxu0 0.0
    %2599 = vmatprep.subr.mxu0 0.0
    %2600 = vmatpush2.msra.mxu0 0.0
    %2601 = vmatprep.subr.mxu0 0.0
    %2602 = vmatpush2.msra.mxu0 0.0
    %2603 = vmatprep.subr.mxu0 0.0
    %2604 = vmatpush2.msra.mxu0 0.0
    %2605 = vmatprep.subr.mxu0 0.0
    %2606 = vmatpush2.msra.mxu0 0.0
    %2607 = vmatprep.subr.mxu0 0.0
    %2608 = vmatpush2.msra.mxu0 0.0
    %2609 = vmatprep.subr.mxu0 0.0
    %2610 = vmatpush2.msra.mxu0 0.0
    %2611 = vmatprep.subr.mxu0 0.0
    %2612 = vmatpush2.msra.mxu0 0.0
    %2613 = vmatprep.subr.mxu0 0.0
    %2614 = vmatpush2.msra.mxu0 0.0
    %2615 = vmatprep.mubr.f32.mxu0 0.0
    %2616 = vmatmul.mubr.f32.gmra.mxu0 %v1779
    %v2617 = vpop.f32.mrf.mxu0
    %v2618 = vadd.f32 %v2549, %v2617
    %v2619 = vpop.f32.mrf.mxu0
    %2620 = vmatprep.mubr.f32.mxu0 0.0
    %2621 = vmatmul.mubr.f32.gmra.mxu0 %v1782
    %v2622 = vpop.f32.mrf.mxu0
    %v2623 = vadd.f32 %v2549, %v2622
    %v2624 = vpop.f32.mrf.mxu0
    %2625 = vdwg.mxu0
    %v2627 = vsel %vm334, %v2442, 0
    %v2630 = vsel %vm334, %v2530, 0
    %2632 = vmatprep.subr.mxu0 0.0
    %2633 = vmatpush1.xpose.msra.mxu0 0.0
    %2634 = vmatprep.subr.mxu0 0.0
    %2635 = vmatpush1.xpose.msra.mxu0 0.0
    %2636 = vmatprep.subr.mxu0 0.0
    %2637 = vmatpush1.xpose.msra.mxu0 0.0
    %2638 = vmatprep.subr.mxu0 0.0
    %2639 = vmatpush1.xpose.msra.mxu0 0.0
    %2640 = vmatprep.subr.mxu0 0.0
    %2641 = vmatpush1.xpose.msra.mxu0 0.0
    %2642 = vmatprep.subr.mxu0 0.0
    %2643 = vmatpush1.xpose.msra.mxu0 0.0
    %2644 = vmatprep.subr.mxu0 0.0
    %2645 = vmatpush1.xpose.msra.mxu0 0.0
    %2646 = vmatprep.subr.mxu0 0.0
    %2647 = vmatpush1.xpose.msra.mxu0 0.0
    %2648 = vmatprep.subr.mxu0 0.0
    %2649 = vmatpush1.xpose.msra.mxu0 0.0
    %2650 = vmatprep.subr.mxu0 0.0
    %2651 = vmatpush1.xpose.msra.mxu0 0.0
    %2652 = vmatprep.subr.mxu0 0.0
    %2653 = vmatpush1.xpose.msra.mxu0 0.0
    %2654 = vmatprep.subr.mxu0 0.0
    %2655 = vmatpush1.xpose.msra.mxu0 0.0
    %2656 = vmatprep.subr.mxu0 0.0
    %2657 = vmatpush1.xpose.msra.mxu0 0.0
    %2658 = vmatprep.subr.mxu0 0.0
    %2659 = vmatpush1.xpose.msra.mxu0 0.0
    %2660 = vmatprep.subr.mxu0 0.0
    %2661 = vmatpush1.xpose.msra.mxu0 0.0
    %2662 = vmatprep.subr.mxu0 0.0
    %2663 = vmatpush1.xpose.msra.mxu0 %v2630
    %2664 = vmatprep.subr.mxu0 0.0
    %2665 = vmatpush2.xpose.msra.mxu0 0.0
    %2666 = vmatprep.subr.mxu0 0.0
    %2667 = vmatpush2.xpose.msra.mxu0 0.0
    %2668 = vmatprep.subr.mxu0 0.0
    %2669 = vmatpush2.xpose.msra.mxu0 0.0
    %2670 = vmatprep.subr.mxu0 0.0
    %2671 = vmatpush2.xpose.msra.mxu0 0.0
    %2672 = vmatprep.subr.mxu0 0.0
    %2673 = vmatpush2.xpose.msra.mxu0 0.0
    %2674 = vmatprep.subr.mxu0 0.0
    %2675 = vmatpush2.xpose.msra.mxu0 0.0
    %2676 = vmatprep.subr.mxu0 0.0
    %2677 = vmatpush2.xpose.msra.mxu0 0.0
    %2678 = vmatprep.subr.mxu0 0.0
    %2679 = vmatpush2.xpose.msra.mxu0 0.0
    %2680 = vmatprep.subr.mxu0 0.0
    %2681 = vmatpush2.xpose.msra.mxu0 0.0
    %2682 = vmatprep.subr.mxu0 0.0
    %2683 = vmatpush2.xpose.msra.mxu0 0.0
    %2684 = vmatprep.subr.mxu0 0.0
    %2685 = vmatpush2.xpose.msra.mxu0 0.0
    %2686 = vmatprep.subr.mxu0 0.0
    %2687 = vmatpush2.xpose.msra.mxu0 0.0
    %2688 = vmatprep.subr.mxu0 0.0
    %2689 = vmatpush2.xpose.msra.mxu0 0.0
    %2690 = vmatprep.subr.mxu0 0.0
    %2691 = vmatpush2.xpose.msra.mxu0 0.0
    %2692 = vmatprep.subr.mxu0 0.0
    %2693 = vmatpush2.xpose.msra.mxu0 0.0
    %2694 = vmatprep.subr.mxu0 0.0
    %2695 = vmatpush2.xpose.msra.mxu0 0.0
    %2696 = vmatprep.mubr.f32.mxu0 0.0
    %2697 = vmatmul.mubr.f32.gmra.mxu0 %v2627
    %v2698 = vpop.f32.mrf.mxu0
    %v2699 = vadd.f32 0.0, %v2698
    %v2700 = vpop.f32.mrf.mxu0
    %2701 = vdwg.mxu0
    %v2703 = vsel %vm334, %v2447, 0
    %v2706 = vsel %vm334, %v2535, 0
    %2708 = vmatprep.subr.mxu0 0.0
    %2709 = vmatpush1.xpose.msra.mxu0 0.0
    %2710 = vmatprep.subr.mxu0 0.0
    %2711 = vmatpush1.xpose.msra.mxu0 0.0
    %2712 = vmatprep.subr.mxu0 0.0
    %2713 = vmatpush1.xpose.msra.mxu0 0.0
    %2714 = vmatprep.subr.mxu0 0.0
    %2715 = vmatpush1.xpose.msra.mxu0 0.0
    %2716 = vmatprep.subr.mxu0 0.0
    %2717 = vmatpush1.xpose.msra.mxu0 0.0
    %2718 = vmatprep.subr.mxu0 0.0
    %2719 = vmatpush1.xpose.msra.mxu0 0.0
    %2720 = vmatprep.subr.mxu0 0.0
    %2721 = vmatpush1.xpose.msra.mxu0 0.0
    %2722 = vmatprep.subr.mxu0 0.0
    %2723 = vmatpush1.xpose.msra.mxu0 0.0
    %2724 = vmatprep.subr.mxu0 0.0
    %2725 = vmatpush1.xpose.msra.mxu0 0.0
    %2726 = vmatprep.subr.mxu0 0.0
    %2727 = vmatpush1.xpose.msra.mxu0 0.0
    %2728 = vmatprep.subr.mxu0 0.0
    %2729 = vmatpush1.xpose.msra.mxu0 0.0
    %2730 = vmatprep.subr.mxu0 0.0
    %2731 = vmatpush1.xpose.msra.mxu0 0.0
    %2732 = vmatprep.subr.mxu0 0.0
    %2733 = vmatpush1.xpose.msra.mxu0 0.0
    %2734 = vmatprep.subr.mxu0 0.0
    %2735 = vmatpush1.xpose.msra.mxu0 0.0
    %2736 = vmatprep.subr.mxu0 0.0
    %2737 = vmatpush1.xpose.msra.mxu0 0.0
    %2738 = vmatprep.subr.mxu0 0.0
    %2739 = vmatpush1.xpose.msra.mxu0 %v2706
    %2740 = vmatprep.subr.mxu0 0.0
    %2741 = vmatpush2.xpose.msra.mxu0 0.0
    %2742 = vmatprep.subr.mxu0 0.0
    %2743 = vmatpush2.xpose.msra.mxu0 0.0
    %2744 = vmatprep.subr.mxu0 0.0
    %2745 = vmatpush2.xpose.msra.mxu0 0.0
    %2746 = vmatprep.subr.mxu0 0.0
    %2747 = vmatpush2.xpose.msra.mxu0 0.0
    %2748 = vmatprep.subr.mxu0 0.0
    %2749 = vmatpush2.xpose.msra.mxu0 0.0
    %2750 = vmatprep.subr.mxu0 0.0
    %2751 = vmatpush2.xpose.msra.mxu0 0.0
    %2752 = vmatprep.subr.mxu0 0.0
    %2753 = vmatpush2.xpose.msra.mxu0 0.0
    %2754 = vmatprep.subr.mxu0 0.0
    %2755 = vmatpush2.xpose.msra.mxu0 0.0
    %2756 = vmatprep.subr.mxu0 0.0
    %2757 = vmatpush2.xpose.msra.mxu0 0.0
    %2758 = vmatprep.subr.mxu0 0.0
    %2759 = vmatpush2.xpose.msra.mxu0 0.0
    %2760 = vmatprep.subr.mxu0 0.0
    %2761 = vmatpush2.xpose.msra.mxu0 0.0
    %2762 = vmatprep.subr.mxu0 0.0
    %2763 = vmatpush2.xpose.msra.mxu0 0.0
    %2764 = vmatprep.subr.mxu0 0.0
    %2765 = vmatpush2.xpose.msra.mxu0 0.0
    %2766 = vmatprep.subr.mxu0 0.0
    %2767 = vmatpush2.xpose.msra.mxu0 0.0
    %2768 = vmatprep.subr.mxu0 0.0
    %2769 = vmatpush2.xpose.msra.mxu0 0.0
    %2770 = vmatprep.subr.mxu0 0.0
    %2771 = vmatpush2.xpose.msra.mxu0 0.0
    %2772 = vmatprep.mubr.f32.mxu0 0.0
    %2773 = vmatmul.mubr.f32.gmra.mxu0 %v2703
    %v2774 = vpop.f32.mrf.mxu0
    %v2775 = vadd.f32 0.0, %v2774
    %v2776 = vpop.f32.mrf.mxu0
    %2777 = vdwg.mxu0
    %v2778 = vmul.f32 %v2699, 0.25
    %v2779 = vmul.f32 %v2775, 0.25
    %v2780 = vsel %vm67, -1e+09, %v2778
    %v2781 = vsel %vm68, -1e+09, %v2779
    %v2782 = vsel %vm491, %v2780, -inf
    %2783 = vmax.xlane.f32.xlu0 %v2782
    %v2784 = vpop.xlane.xlu0 %2783
    %v2785 = vsel %vm491, %v2781, -inf
    %2786 = vmax.xlane.f32.xlu0 %v2785
    %v2787 = vpop.xlane.xlu0 %2786
    %v2788 = vsub.f32 %v2780, %v2784
    %v2789 = vsub.f32 %v2781, %v2787
    %v2790 = vmul.f32 %v2788, 1.442695
    %v2791 = vpow.pop %v2790
    %v2792 = vmul.f32 %v2789, 1.442695
    %v2793 = vpow.pop %v2792
    %v2794 = vsel %vm491, %v2791, 0.0
    %2795 = vadd.xlane.f32.xlu0 %v2794
    %v2796 = vpop.xlane.xlu0 %2795
    %v2797 = vsel %vm491, %v2793, 0.0
    %2798 = vadd.xlane.f32.xlu0 %v2797
    %v2799 = vpop.xlane.xlu0 %2798
    %v2800 = vrcp.pop %v2796
    %v2801 = vrcp.pop %v2799
    %v2802 = vmul.f32 %v2791, %v2800
    %v2803 = vmul.f32 %v2793, %v2801
    %v2805 = vsel %vm491, %v2802, 0
    %2807 = vmatprep.subr.mxu0 0.0
    %2808 = vmatpush1.msra.mxu0 0.0
    %2809 = vmatprep.subr.mxu0 0.0
    %2810 = vmatpush1.msra.mxu0 0.0
    %2811 = vmatprep.subr.mxu0 0.0
    %2812 = vmatpush1.msra.mxu0 0.0
    %2813 = vmatprep.subr.mxu0 0.0
    %2814 = vmatpush1.msra.mxu0 0.0
    %2815 = vmatprep.subr.mxu0 0.0
    %2816 = vmatpush1.msra.mxu0 0.0
    %2817 = vmatprep.subr.mxu0 0.0
    %2818 = vmatpush1.msra.mxu0 0.0
    %2819 = vmatprep.subr.mxu0 0.0
    %2820 = vmatpush1.msra.mxu0 0.0
    %2821 = vmatprep.subr.mxu0 0.0
    %2822 = vmatpush1.msra.mxu0 0.0
    %2823 = vmatprep.subr.mxu0 0.0
    %2824 = vmatpush1.msra.mxu0 0.0
    %2825 = vmatprep.subr.mxu0 0.0
    %2826 = vmatpush1.msra.mxu0 0.0
    %2827 = vmatprep.subr.mxu0 0.0
    %2828 = vmatpush1.msra.mxu0 0.0
    %2829 = vmatprep.subr.mxu0 0.0
    %2830 = vmatpush1.msra.mxu0 0.0
    %2831 = vmatprep.subr.mxu0 0.0
    %2832 = vmatpush1.msra.mxu0 0.0
    %2833 = vmatprep.subr.mxu0 0.0
    %2834 = vmatpush1.msra.mxu0 0.0
    %2835 = vmatprep.subr.mxu0 0.0
    %2836 = vmatpush1.msra.mxu0 0.0
    %2837 = vmatprep.subr.mxu0 0.0
    %2838 = vmatpush1.msra.mxu0 %v2618
    %2839 = vmatprep.subr.mxu0 0.0
    %2840 = vmatpush2.msra.mxu0 0.0
    %2841 = vmatprep.subr.mxu0 0.0
    %2842 = vmatpush2.msra.mxu0 0.0
    %2843 = vmatprep.subr.mxu0 0.0
    %2844 = vmatpush2.msra.mxu0 0.0
    %2845 = vmatprep.subr.mxu0 0.0
    %2846 = vmatpush2.msra.mxu0 0.0
    %2847 = vmatprep.subr.mxu0 0.0
    %2848 = vmatpush2.msra.mxu0 0.0
    %2849 = vmatprep.subr.mxu0 0.0
    %2850 = vmatpush2.msra.mxu0 0.0
    %2851 = vmatprep.subr.mxu0 0.0
    %2852 = vmatpush2.msra.mxu0 0.0
    %2853 = vmatprep.subr.mxu0 0.0
    %2854 = vmatpush2.msra.mxu0 0.0
    %2855 = vmatprep.subr.mxu0 0.0
    %2856 = vmatpush2.msra.mxu0 0.0
    %2857 = vmatprep.subr.mxu0 0.0
    %2858 = vmatpush2.msra.mxu0 0.0
    %2859 = vmatprep.subr.mxu0 0.0
    %2860 = vmatpush2.msra.mxu0 0.0
    %2861 = vmatprep.subr.mxu0 0.0
    %2862 = vmatpush2.msra.mxu0 0.0
    %2863 = vmatprep.subr.mxu0 0.0
    %2864 = vmatpush2.msra.mxu0 0.0
    %2865 = vmatprep.subr.mxu0 0.0
    %2866 = vmatpush2.msra.mxu0 0.0
    %2867 = vmatprep.subr.mxu0 0.0
    %2868 = vmatpush2.msra.mxu0 0.0
    %2869 = vmatprep.subr.mxu0 0.0
    %2870 = vmatpush2.msra.mxu0 0.0
    %2871 = vmatprep.mubr.f32.mxu0 0.0
    %2872 = vmatmul.mubr.f32.gmra.mxu0 %v2805
    %v2873 = vpop.f32.mrf.mxu0
    %v2874 = vadd.f32 0.0, %v2873
    %v2875 = vpop.f32.mrf.mxu0
    %2876 = vdwg.mxu0
    %v2878 = vsel %vm491, %v2803, 0
    %2880 = vmatprep.subr.mxu0 0.0
    %2881 = vmatpush1.msra.mxu0 0.0
    %2882 = vmatprep.subr.mxu0 0.0
    %2883 = vmatpush1.msra.mxu0 0.0
    %2884 = vmatprep.subr.mxu0 0.0
    %2885 = vmatpush1.msra.mxu0 0.0
    %2886 = vmatprep.subr.mxu0 0.0
    %2887 = vmatpush1.msra.mxu0 0.0
    %2888 = vmatprep.subr.mxu0 0.0
    %2889 = vmatpush1.msra.mxu0 0.0
    %2890 = vmatprep.subr.mxu0 0.0
    %2891 = vmatpush1.msra.mxu0 0.0
    %2892 = vmatprep.subr.mxu0 0.0
    %2893 = vmatpush1.msra.mxu0 0.0
    %2894 = vmatprep.subr.mxu0 0.0
    %2895 = vmatpush1.msra.mxu0 0.0
    %2896 = vmatprep.subr.mxu0 0.0
    %2897 = vmatpush1.msra.mxu0 0.0
    %2898 = vmatprep.subr.mxu0 0.0
    %2899 = vmatpush1.msra.mxu0 0.0
    %2900 = vmatprep.subr.mxu0 0.0
    %2901 = vmatpush1.msra.mxu0 0.0
    %2902 = vmatprep.subr.mxu0 0.0
    %2903 = vmatpush1.msra.mxu0 0.0
    %2904 = vmatprep.subr.mxu0 0.0
    %2905 = vmatpush1.msra.mxu0 0.0
    %2906 = vmatprep.subr.mxu0 0.0
    %2907 = vmatpush1.msra.mxu0 0.0
    %2908 = vmatprep.subr.mxu0 0.0
    %2909 = vmatpush1.msra.mxu0 0.0
    %2910 = vmatprep.subr.mxu0 0.0
    %2911 = vmatpush1.msra.mxu0 %v2623
    %2912 = vmatprep.subr.mxu0 0.0
    %2913 = vmatpush2.msra.mxu0 0.0
    %2914 = vmatprep.subr.mxu0 0.0
    %2915 = vmatpush2.msra.mxu0 0.0
    %2916 = vmatprep.subr.mxu0 0.0
    %2917 = vmatpush2.msra.mxu0 0.0
    %2918 = vmatprep.subr.mxu0 0.0
    %2919 = vmatpush2.msra.mxu0 0.0
    %2920 = vmatprep.subr.mxu0 0.0
    %2921 = vmatpush2.msra.mxu0 0.0
    %2922 = vmatprep.subr.mxu0 0.0
    %2923 = vmatpush2.msra.mxu0 0.0
    %2924 = vmatprep.subr.mxu0 0.0
    %2925 = vmatpush2.msra.mxu0 0.0
    %2926 = vmatprep.subr.mxu0 0.0
    %2927 = vmatpush2.msra.mxu0 0.0
    %2928 = vmatprep.subr.mxu0 0.0
    %2929 = vmatpush2.msra.mxu0 0.0
    %2930 = vmatprep.subr.mxu0 0.0
    %2931 = vmatpush2.msra.mxu0 0.0
    %2932 = vmatprep.subr.mxu0 0.0
    %2933 = vmatpush2.msra.mxu0 0.0
    %2934 = vmatprep.subr.mxu0 0.0
    %2935 = vmatpush2.msra.mxu0 0.0
    %2936 = vmatprep.subr.mxu0 0.0
    %2937 = vmatpush2.msra.mxu0 0.0
    %2938 = vmatprep.subr.mxu0 0.0
    %2939 = vmatpush2.msra.mxu0 0.0
    %2940 = vmatprep.subr.mxu0 0.0
    %2941 = vmatpush2.msra.mxu0 0.0
    %2942 = vmatprep.subr.mxu0 0.0
    %2943 = vmatpush2.msra.mxu0 0.0
    %2944 = vmatprep.mubr.f32.mxu0 0.0
    %2945 = vmatmul.mubr.f32.gmra.mxu0 %v2878
    %v2946 = vpop.f32.mrf.mxu0
    %v2947 = vadd.f32 0.0, %v2946
    %v2948 = vpop.f32.mrf.mxu0
    %2949 = vdwg.mxu0
    %s2950 = scalar_lea.vmem %s8, 48
    %v2951 = vld [vmem:[%s2950] sm:$0xff]
    %v2952 = vld [vmem:[%s2950 + $0x8] sm:$0xff]
    %v2954 = vsel %vm334, %v2874, 0
    %v2957 = vsel %vm334, %v2947, 0
    %2959 = vmatprep.subr.mxu0 0.0
    %2960 = vmatpush1.msra.mxu0 0.0
    %2961 = vmatprep.subr.mxu0 0.0
    %2962 = vmatpush1.msra.mxu0 0.0
    %2963 = vmatprep.subr.mxu0 0.0
    %2964 = vmatpush1.msra.mxu0 0.0
    %2965 = vmatprep.subr.mxu0 0.0
    %2966 = vmatpush1.msra.mxu0 0.0
    %2967 = vmatprep.subr.mxu0 0.0
    %2968 = vmatpush1.msra.mxu0 0.0
    %2969 = vmatprep.subr.mxu0 0.0
    %2970 = vmatpush1.msra.mxu0 0.0
    %2971 = vmatprep.subr.mxu0 0.0
    %2972 = vmatpush1.msra.mxu0 0.0
    %2973 = vmatprep.subr.mxu0 0.0
    %2974 = vmatpush1.msra.mxu0 0.0
    %2975 = vmatprep.subr.mxu0 0.0
    %2976 = vmatpush1.msra.mxu0 0.0
    %2977 = vmatprep.subr.mxu0 0.0
    %2978 = vmatpush1.msra.mxu0 0.0
    %2979 = vmatprep.subr.mxu0 0.0
    %2980 = vmatpush1.msra.mxu0 0.0
    %2981 = vmatprep.subr.mxu0 0.0
    %2982 = vmatpush1.msra.mxu0 0.0
    %2983 = vmatprep.subr.mxu0 0.0
    %2984 = vmatpush1.msra.mxu0 0.0
    %2985 = vmatprep.subr.mxu0 0.0
    %2986 = vmatpush1.msra.mxu0 0.0
    %2987 = vmatprep.subr.mxu0 0.0
    %2988 = vmatpush1.msra.mxu0 %v2952
    %2989 = vmatprep.subr.mxu0 0.0
    %2990 = vmatpush1.msra.mxu0 %v2951
    %2991 = vmatprep.subr.mxu0 0.0
    %2992 = vmatpush2.msra.mxu0 0.0
    %2993 = vmatprep.subr.mxu0 0.0
    %2994 = vmatpush2.msra.mxu0 0.0
    %2995 = vmatprep.subr.mxu0 0.0
    %2996 = vmatpush2.msra.mxu0 0.0
    %2997 = vmatprep.subr.mxu0 0.0
    %2998 = vmatpush2.msra.mxu0 0.0
    %2999 = vmatprep.subr.mxu0 0.0
    %3000 = vmatpush2.msra.mxu0 0.0
    %3001 = vmatprep.subr.mxu0 0.0
    %3002 = vmatpush2.msra.mxu0 0.0
    %3003 = vmatprep.subr.mxu0 0.0
    %3004 = vmatpush2.msra.mxu0 0.0
    %3005 = vmatprep.subr.mxu0 0.0
    %3006 = vmatpush2.msra.mxu0 0.0
    %3007 = vmatprep.subr.mxu0 0.0
    %3008 = vmatpush2.msra.mxu0 0.0
    %3009 = vmatprep.subr.mxu0 0.0
    %3010 = vmatpush2.msra.mxu0 0.0
    %3011 = vmatprep.subr.mxu0 0.0
    %3012 = vmatpush2.msra.mxu0 0.0
    %3013 = vmatprep.subr.mxu0 0.0
    %3014 = vmatpush2.msra.mxu0 0.0
    %3015 = vmatprep.subr.mxu0 0.0
    %3016 = vmatpush2.msra.mxu0 0.0
    %3017 = vmatprep.subr.mxu0 0.0
    %3018 = vmatpush2.msra.mxu0 0.0
    %3019 = vmatprep.subr.mxu0 0.0
    %3020 = vmatpush2.msra.mxu0 0.0
    %3021 = vmatprep.subr.mxu0 0.0
    %3022 = vmatpush2.msra.mxu0 0.0
    %3023 = vmatprep.mubr.f32.mxu0 0.0
    %3024 = vmatmul.mubr.f32.gmra.mxu0 %v2954
    %v3025 = vpop.f32.mrf.mxu0
    %v3026 = vadd.f32 0.0, %v3025
    %v3027 = vpop.f32.mrf.mxu0
    %3028 = vmatprep.mubr.f32.mxu0 0.0
    %3029 = vmatmul.mubr.f32.gmra.mxu0 %v2957
    %v3030 = vpop.f32.mrf.mxu0
    %v3031 = vadd.f32 0.0, %v3030
    %v3032 = vpop.f32.mrf.mxu0
    %3033 = vdwg.mxu0
    %v3035 = vsel %vm334, %v2283, 0
    %v3038 = vsel %vm334, %v2356, 0
    %3040 = vmatprep.subr.mxu0 0.0
    %3041 = vmatpush1.msra.mxu0 0.0
    %3042 = vmatprep.subr.mxu0 0.0
    %3043 = vmatpush1.msra.mxu0 0.0
    %3044 = vmatprep.subr.mxu0 0.0
    %3045 = vmatpush1.msra.mxu0 0.0
    %3046 = vmatprep.subr.mxu0 0.0
    %3047 = vmatpush1.msra.mxu0 0.0
    %3048 = vmatprep.subr.mxu0 0.0
    %3049 = vmatpush1.msra.mxu0 0.0
    %3050 = vmatprep.subr.mxu0 0.0
    %3051 = vmatpush1.msra.mxu0 0.0
    %3052 = vmatprep.subr.mxu0 0.0
    %3053 = vmatpush1.msra.mxu0 0.0
    %3054 = vmatprep.subr.mxu0 0.0
    %3055 = vmatpush1.msra.mxu0 0.0
    %3056 = vmatprep.subr.mxu0 0.0
    %3057 = vmatpush1.msra.mxu0 0.0
    %3058 = vmatprep.subr.mxu0 0.0
    %3059 = vmatpush1.msra.mxu0 0.0
    %3060 = vmatprep.subr.mxu0 0.0
    %3061 = vmatpush1.msra.mxu0 0.0
    %3062 = vmatprep.subr.mxu0 0.0
    %3063 = vmatpush1.msra.mxu0 0.0
    %3064 = vmatprep.subr.mxu0 0.0
    %3065 = vmatpush1.msra.mxu0 0.0
    %3066 = vmatprep.subr.mxu0 0.0
    %3067 = vmatpush1.msra.mxu0 0.0
    %3068 = vmatprep.subr.mxu0 0.0
    %3069 = vmatpush1.msra.mxu0 %v2361
    %3070 = vmatprep.subr.mxu0 0.0
    %3071 = vmatpush1.msra.mxu0 %v2360
    %3072 = vmatprep.subr.mxu0 0.0
    %3073 = vmatpush2.msra.mxu0 0.0
    %3074 = vmatprep.subr.mxu0 0.0
    %3075 = vmatpush2.msra.mxu0 0.0
    %3076 = vmatprep.subr.mxu0 0.0
    %3077 = vmatpush2.msra.mxu0 0.0
    %3078 = vmatprep.subr.mxu0 0.0
    %3079 = vmatpush2.msra.mxu0 0.0
    %3080 = vmatprep.subr.mxu0 0.0
    %3081 = vmatpush2.msra.mxu0 0.0
    %3082 = vmatprep.subr.mxu0 0.0
    %3083 = vmatpush2.msra.mxu0 0.0
    %3084 = vmatprep.subr.mxu0 0.0
    %3085 = vmatpush2.msra.mxu0 0.0
    %3086 = vmatprep.subr.mxu0 0.0
    %3087 = vmatpush2.msra.mxu0 0.0
    %3088 = vmatprep.subr.mxu0 0.0
    %3089 = vmatpush2.msra.mxu0 0.0
    %3090 = vmatprep.subr.mxu0 0.0
    %3091 = vmatpush2.msra.mxu0 0.0
    %3092 = vmatprep.subr.mxu0 0.0
    %3093 = vmatpush2.msra.mxu0 0.0
    %3094 = vmatprep.subr.mxu0 0.0
    %3095 = vmatpush2.msra.mxu0 0.0
    %3096 = vmatprep.subr.mxu0 0.0
    %3097 = vmatpush2.msra.mxu0 0.0
    %3098 = vmatprep.subr.mxu0 0.0
    %3099 = vmatpush2.msra.mxu0 0.0
    %3100 = vmatprep.subr.mxu0 0.0
    %3101 = vmatpush2.msra.mxu0 0.0
    %3102 = vmatprep.subr.mxu0 0.0
    %3103 = vmatpush2.msra.mxu0 0.0
    %3104 = vmatprep.mubr.f32.mxu0 0.0
    %3105 = vmatmul.mubr.f32.gmra.mxu0 %v3035
    %v3106 = vpop.f32.mrf.mxu0
    %v3107 = vadd.f32 %v3026, %v3106
    %v3108 = vpop.f32.mrf.mxu0
    %3109 = vmatprep.mubr.f32.mxu0 0.0
    %3110 = vmatmul.mubr.f32.gmra.mxu0 %v3038
    %v3111 = vpop.f32.mrf.mxu0
    %v3112 = vadd.f32 %v3031, %v3111
    %v3113 = vpop.f32.mrf.mxu0
    %3114 = vdwg.mxu0
    %s3115 = scalar_lea.vmem [#allocation4], 32
    %3116 = vst.msk [vmem:[%s3115] sm:$0xff] %vm491, %v2211
    %3117 = vst.msk [vmem:[%s3115 + $0x8] sm:$0xff] %vm491, %v2802
    %3118 = vst.msk [vmem:[%s3115 + $0x10] sm:$0xff] %vm491, %v2212
    %3119 = vst.msk [vmem:[%s3115 + $0x18] sm:$0xff] %vm491, %v2803
    %s3120 = scalar_lea.vmem %s9, 1
    %v3121 = vld [vmem:[%s3120] sm:$0x1]
    %v3123 = vlaneseq
    %v3124 = vshrl.u32 %v3123, 7
    %v3125 = vsub.s32 0, %v3124
    %v3126 = vrot.slane %v3121, %v3125
    %v3128 = vadd.f32 %v3107, %v3126
    %v3129 = vadd.f32 %v3112, %v3126
    %v3130 = vadd.f32 %v1763, %v3128
    %v3131 = vadd.f32 %v1764, %v3129
    %s3132 = scalar_lea.vmem %s10, 1
    %v3133 = vld [vmem:[%s3132] sm:$0x1]
    %s3134 = scalar_lea.vmem %s11, 1
    %v3135 = vld [vmem:[%s3134] sm:$0x1]
    %v3136 = vsel %vm80, %v3130, 0.0
    %3137 = vadd.xlane.f32.xlu0 %v3136
    %v3138 = vpop.xlane.xlu0 %3137
    %v3139 = vsel %vm80, %v3131, 0.0
    %3140 = vadd.xlane.f32.xlu0 %v3139
    %v3141 = vpop.xlane.xlu0 %3140
    %v3142 = vmul.f32 %v3138, %v1438
    %v3143 = vmul.f32 %v3141, %v1438
    %v3144 = vsub.f32 %v3130, %v3142
    %v3145 = vsub.f32 %v3131, %v3143
    %v3146 = vmul.f32 %v3144, %v3144
    %v3147 = vmul.f32 %v3145, %v3145
    %v3148 = vsel %vm80, %v3146, 0.0
    %3149 = vadd.xlane.f32.xlu0 %v3148
    %v3150 = vpop.xlane.xlu0 %3149
    %v3151 = vsel %vm80, %v3147, 0.0
    %3152 = vadd.xlane.f32.xlu0 %v3151
    %v3153 = vpop.xlane.xlu0 %3152
    %v3154 = vmul.f32 %v3150, %v1438
    %v3155 = vmul.f32 %v3153, %v1438
    %v3156 = vadd.f32 %v3154, 1e-12
    %v3157 = vadd.f32 %v3155, 1e-12
    %v3158 = vrsqrt.pop %v3156
    %v3159 = vrsqrt.pop %v3157
    %v3160 = vmul.f32 %v3144, %v3158
    %v3161 = vmul.f32 %v3145, %v3159
    %v3163 = vlaneseq
    %v3164 = vshrl.u32 %v3163, 7
    %v3165 = vsub.s32 0, %v3164
    %v3166 = vrot.slane %v3133, %v3165
    %v3168 = vmul.f32 %v3160, %v3166
    %v3169 = vmul.f32 %v3161, %v3166
    %v3171 = vlaneseq
    %v3172 = vshrl.u32 %v3171, 7
    %v3173 = vsub.s32 0, %v3172
    %v3174 = vrot.slane %v3135, %v3173
    %v3176 = vadd.f32 %v3168, %v3174
    %v3177 = vadd.f32 %v3169, %v3174
    %s3178 = scalar_lea.vmem %s12, 32
    %v3179 = vld [vmem:[%s3178] sm:$0xff]
    %v3180 = vld [vmem:[%s3178 + $0x8] sm:$0xff]
    %v3181 = vld [vmem:[%s3178 + $0x10] sm:$0xff]
    %v3182 = vld [vmem:[%s3178 + $0x18] sm:$0xff]
    %s3183 = scalar_lea.vmem %s13, 1
    %v3184 = vld [vmem:[%s3183] sm:$0x1]
    %v3186 = vlaneseq
    %v3187 = vshrl.u32 %v3186, 7
    %v3188 = vsub.s32 0, %v3187
    %v3189 = vrot.slane %v3184, %v3188
    %v3192 = vsel %vm80, %v3176, 0
    %v3195 = vsel %vm80, %v3177, 0
    %3197 = vmatprep.subr.mxu0 0.0
    %3198 = vmatpush1.msra.mxu0 0.0
    %3199 = vmatprep.subr.mxu0 0.0
    %3200 = vmatpush1.msra.mxu0 0.0
    %3201 = vmatprep.subr.mxu0 0.0
    %3202 = vmatpush1.msra.mxu0 0.0
    %3203 = vmatprep.subr.mxu0 0.0
    %3204 = vmatpush1.msra.mxu0 0.0
    %3205 = vmatprep.subr.mxu0 0.0
    %3206 = vmatpush1.msra.mxu0 0.0
    %3207 = vmatprep.subr.mxu0 0.0
    %3208 = vmatpush1.msra.mxu0 0.0
    %3209 = vmatprep.subr.mxu0 0.0
    %3210 = vmatpush1.msra.mxu0 0.0
    %3211 = vmatprep.subr.mxu0 0.0
    %3212 = vmatpush1.msra.mxu0 0.0
    %3213 = vmatprep.subr.mxu0 0.0
    %3214 = vmatpush1.msra.mxu0 0.0
    %3215 = vmatprep.subr.mxu0 0.0
    %3216 = vmatpush1.msra.mxu0 0.0
    %3217 = vmatprep.subr.mxu0 0.0
    %3218 = vmatpush1.msra.mxu0 0.0
    %3219 = vmatprep.subr.mxu0 0.0
    %3220 = vmatpush1.msra.mxu0 0.0
    %3221 = vmatprep.subr.mxu0 0.0
    %3222 = vmatpush1.msra.mxu0 %v3182
    %3223 = vmatprep.subr.mxu0 0.0
    %3224 = vmatpush1.msra.mxu0 %v3181
    %3225 = vmatprep.subr.mxu0 0.0
    %3226 = vmatpush1.msra.mxu0 %v3180
    %3227 = vmatprep.subr.mxu0 0.0
    %3228 = vmatpush1.msra.mxu0 %v3179
    %3229 = vmatprep.subr.mxu0 0.0
    %3230 = vmatpush2.msra.mxu0 0.0
    %3231 = vmatprep.subr.mxu0 0.0
    %3232 = vmatpush2.msra.mxu0 0.0
    %3233 = vmatprep.subr.mxu0 0.0
    %3234 = vmatpush2.msra.mxu0 0.0
    %3235 = vmatprep.subr.mxu0 0.0
    %3236 = vmatpush2.msra.mxu0 0.0
    %3237 = vmatprep.subr.mxu0 0.0
    %3238 = vmatpush2.msra.mxu0 0.0
    %3239 = vmatprep.subr.mxu0 0.0
    %3240 = vmatpush2.msra.mxu0 0.0
    %3241 = vmatprep.subr.mxu0 0.0
    %3242 = vmatpush2.msra.mxu0 0.0
    %3243 = vmatprep.subr.mxu0 0.0
    %3244 = vmatpush2.msra.mxu0 0.0
    %3245 = vmatprep.subr.mxu0 0.0
    %3246 = vmatpush2.msra.mxu0 0.0
    %3247 = vmatprep.subr.mxu0 0.0
    %3248 = vmatpush2.msra.mxu0 0.0
    %3249 = vmatprep.subr.mxu0 0.0
    %3250 = vmatpush2.msra.mxu0 0.0
    %3251 = vmatprep.subr.mxu0 0.0
    %3252 = vmatpush2.msra.mxu0 0.0
    %3253 = vmatprep.subr.mxu0 0.0
    %3254 = vmatpush2.msra.mxu0 0.0
    %3255 = vmatprep.subr.mxu0 0.0
    %3256 = vmatpush2.msra.mxu0 0.0
    %3257 = vmatprep.subr.mxu0 0.0
    %3258 = vmatpush2.msra.mxu0 0.0
    %3259 = vmatprep.subr.mxu0 0.0
    %3260 = vmatpush2.msra.mxu0 0.0
    %3261 = vmatprep.mubr.f32.mxu0 0.0
    %3262 = vmatmul.mubr.f32.gmra.mxu0 %v3192
    %v3263 = vpop.f32.mrf.mxu0
    %v3264 = vadd.f32 %v3189, %v3263
    %v3265 = vpop.f32.mrf.mxu0
    %3266 = vmatprep.mubr.f32.mxu0 0.0
    %3267 = vmatmul.mubr.f32.gmra.mxu0 %v3195
    %v3268 = vpop.f32.mrf.mxu0
    %v3269 = vadd.f32 %v3189, %v3268
    %v3270 = vpop.f32.mrf.mxu0
    %3271 = vdwg.mxu0
    %v3272 = vmul.f32 %v3264, 0.5
    %v3273 = vmul.f32 %v3269, 0.5
    %v3274 = vmul.f32 %v3264, 0.70710677
    %v3275 = vmul.f32 %v3269, 0.70710677
    %vm3276 = vcmp.ge.f32.partialorder %v3274, 0.0
    %vm3277 = vcmp.ge.f32.partialorder %v3275, 0.0
    %v3278 = vsel %vm3276, 1.0, -1.0
    %v3279 = vsel %vm3277, 1.0, -1.0
    %v3280 = vand.u32 2147483647, %v3274
    %v3281 = vand.u32 2147483647, %v3275
    %v3282 = vmul.f32 %v3280, 0.3275911
    %v3283 = vmul.f32 %v3281, 0.3275911
    %v3284 = vadd.f32 %v3282, 1.0
    %v3285 = vadd.f32 %v3283, 1.0
    %v3286 = vrcp.pop %v3284
    %v3287 = vmul.f32 1.0, %v3286
    %v3288 = vrcp.pop %v3285
    %v3289 = vmul.f32 1.0, %v3288
    %v3290 = vmul.f32 %v3287, 1.0614054
    %v3291 = vmul.f32 %v3289, 1.0614054
    %v3292 = vsub.f32 %v3290, 1.4531521
    %v3293 = vsub.f32 %v3291, 1.4531521
    %v3294 = vmul.f32 %v3292, %v3287
    %v3295 = vmul.f32 %v3293, %v3289
    %v3296 = vadd.f32 %v3294, 1.4214138
    %v3297 = vadd.f32 %v3295, 1.4214138
    %v3298 = vmul.f32 %v3296, %v3287
    %v3299 = vmul.f32 %v3297, %v3289
    %v3300 = vsub.f32 %v3298, 0.28449672
    %v3301 = vsub.f32 %v3299, 0.28449672
    %v3302 = vmul.f32 %v3300, %v3287
    %v3303 = vmul.f32 %v3301, %v3289
    %v3304 = vadd.f32 %v3302, 0.2548296
    %v3305 = vadd.f32 %v3303, 0.2548296
    %v3306 = vmul.f32 %v3304, %v3287
    %v3307 = vmul.f32 %v3305, %v3289
    %v3308 = vsub.f32 0.0, %v3280
    %v3309 = vsub.f32 0.0, %v3281
    %v3310 = vmul.f32 %v3308, %v3280
    %v3311 = vmul.f32 %v3309, %v3281
    %v3312 = vmul.f32 %v3310, 1.442695
    %v3313 = vpow.pop %v3312
    %v3314 = vmul.f32 %v3311, 1.442695
    %v3315 = vpow.pop %v3314
    %v3316 = vmul.f32 %v3306, %v3313
    %v3317 = vmul.f32 %v3307, %v3315
    %v3318 = vsub.f32 1.0, %v3316
    %v3319 = vsub.f32 1.0, %v3317
    %v3320 = vmul.f32 %v3278, %v3318
    %v3321 = vmul.f32 %v3279, %v3319
    %v3322 = vadd.f32 %v3320, 1.0
    %v3323 = vadd.f32 %v3321, 1.0
    %v3324 = vmul.f32 %v3272, %v3322
    %v3325 = vmul.f32 %v3273, %v3323
    %s3326 = scalar_lea.vmem %s14, 128
    %v3327 = vld [vmem:[%s3326] sm:$0xff]
    %v3328 = vld [vmem:[%s3326 + $0x8] sm:$0xff]
    %v3329 = vld [vmem:[%s3326 + $0x10] sm:$0xff]
    %v3330 = vld [vmem:[%s3326 + $0x18] sm:$0xff]
    %v3331 = vld [vmem:[%s3326 + $0x20] sm:$0xff]
    %v3332 = vld [vmem:[%s3326 + $0x28] sm:$0xff]
    %v3333 = vld [vmem:[%s3326 + $0x30] sm:$0xff]
    %v3334 = vld [vmem:[%s3326 + $0x38] sm:$0xff]
    %v3335 = vld [vmem:[%s3326 + $0x40] sm:$0xff]
    %v3336 = vld [vmem:[%s3326 + $0x48] sm:$0xff]
    %v3337 = vld [vmem:[%s3326 + $0x50] sm:$0xff]
    %v3338 = vld [vmem:[%s3326 + $0x58] sm:$0xff]
    %v3339 = vld [vmem:[%s3326 + $0x60] sm:$0xff]
    %v3340 = vld [vmem:[%s3326 + $0x68] sm:$0xff]
    %v3341 = vld [vmem:[%s3326 + $0x70] sm:$0xff]
    %v3342 = vld [vmem:[%s3326 + $0x78] sm:$0xff]
    %s3343 = scalar_lea.vmem %s15, 1
    %v3344 = vld [vmem:[%s3343] sm:$0x1]
    %v3346 = vlaneseq
    %v3347 = vshrl.u32 %v3346, 7
    %v3348 = vsub.s32 0, %v3347
    %v3349 = vrot.slane %v3344, %v3348
    %3351 = vmatprep.subr.mxu0 0.0
    %3352 = vmatpush1.msra.mxu0 %v3342
    %3353 = vmatprep.subr.mxu0 0.0
    %3354 = vmatpush1.msra.mxu0 %v3341
    %3355 = vmatprep.subr.mxu0 0.0
    %3356 = vmatpush1.msra.mxu0 %v3340
    %3357 = vmatprep.subr.mxu0 0.0
    %3358 = vmatpush1.msra.mxu0 %v3339
    %3359 = vmatprep.subr.mxu0 0.0
    %3360 = vmatpush1.msra.mxu0 %v3338
    %3361 = vmatprep.subr.mxu0 0.0
    %3362 = vmatpush1.msra.mxu0 %v3337
    %3363 = vmatprep.subr.mxu0 0.0
    %3364 = vmatpush1.msra.mxu0 %v3336
    %3365 = vmatprep.subr.mxu0 0.0
    %3366 = vmatpush1.msra.mxu0 %v3335
    %3367 = vmatprep.subr.mxu0 0.0
    %3368 = vmatpush1.msra.mxu0 %v3334
    %3369 = vmatprep.subr.mxu0 0.0
    %3370 = vmatpush1.msra.mxu0 %v3333
    %3371 = vmatprep.subr.mxu0 0.0
    %3372 = vmatpush1.msra.mxu0 %v3332
    %3373 = vmatprep.subr.mxu0 0.0
    %3374 = vmatpush1.msra.mxu0 %v3331
    %3375 = vmatprep.subr.mxu0 0.0
    %3376 = vmatpush1.msra.mxu0 %v3330
    %3377 = vmatprep.subr.mxu0 0.0
    %3378 = vmatpush1.msra.mxu0 %v3329
    %3379 = vmatprep.subr.mxu0 0.0
    %3380 = vmatpush1.msra.mxu0 %v3328
    %3381 = vmatprep.subr.mxu0 0.0
    %3382 = vmatpush1.msra.mxu0 %v3327
    %3383 = vmatprep.subr.mxu0 0.0
    %3384 = vmatpush2.msra.mxu0 0.0
    %3385 = vmatprep.subr.mxu0 0.0
    %3386 = vmatpush2.msra.mxu0 0.0
    %3387 = vmatprep.subr.mxu0 0.0
    %3388 = vmatpush2.msra.mxu0 0.0
    %3389 = vmatprep.subr.mxu0 0.0
    %3390 = vmatpush2.msra.mxu0 0.0
    %3391 = vmatprep.subr.mxu0 0.0
    %3392 = vmatpush2.msra.mxu0 0.0
    %3393 = vmatprep.subr.mxu0 0.0
    %3394 = vmatpush2.msra.mxu0 0.0
    %3395 = vmatprep.subr.mxu0 0.0
    %3396 = vmatpush2.msra.mxu0 0.0
    %3397 = vmatprep.subr.mxu0 0.0
    %3398 = vmatpush2.msra.mxu0 0.0
    %3399 = vmatprep.subr.mxu0 0.0
    %3400 = vmatpush2.msra.mxu0 0.0
    %3401 = vmatprep.subr.mxu0 0.0
    %3402 = vmatpush2.msra.mxu0 0.0
    %3403 = vmatprep.subr.mxu0 0.0
    %3404 = vmatpush2.msra.mxu0 0.0
    %3405 = vmatprep.subr.mxu0 0.0
    %3406 = vmatpush2.msra.mxu0 0.0
    %3407 = vmatprep.subr.mxu0 0.0
    %3408 = vmatpush2.msra.mxu0 0.0
    %3409 = vmatprep.subr.mxu0 0.0
    %3410 = vmatpush2.msra.mxu0 0.0
    %3411 = vmatprep.subr.mxu0 0.0
    %3412 = vmatpush2.msra.mxu0 0.0
    %3413 = vmatprep.subr.mxu0 0.0
    %3414 = vmatpush2.msra.mxu0 0.0
    %3415 = vmatprep.mubr.f32.mxu0 0.0
    %3416 = vmatmul.mubr.f32.gmra.mxu0 %v3324
    %v3417 = vpop.f32.mrf.mxu0
    %v3418 = vadd.f32 %v3349, %v3417
    %v3419 = vpop.f32.mrf.mxu0
    %3420 = vmatprep.mubr.f32.mxu0 0.0
    %3421 = vmatmul.mubr.f32.gmra.mxu0 %v3325
    %v3422 = vpop.f32.mrf.mxu0
    %v3423 = vadd.f32 %v3349, %v3422
    %v3424 = vpop.f32.mrf.mxu0
    %3425 = vdwg.mxu0
    %v3426 = vadd.f32 %v3418, %v3176
    %v3427 = vadd.f32 %v3423, %v3177
    %s3428 = scalar_lea.vmem %s16, 1
    %v3429 = vld [vmem:[%s3428] sm:$0x1]
    %s3430 = scalar_lea.vmem %s17, 1
    %v3431 = vld [vmem:[%s3430] sm:$0x1]
    %v3432 = vsel %vm80, %v3426, 0.0
    %3433 = vadd.xlane.f32.xlu0 %v3432
    %v3434 = vpop.xlane.xlu0 %3433
    %v3435 = vsel %vm80, %v3427, 0.0
    %3436 = vadd.xlane.f32.xlu0 %v3435
    %v3437 = vpop.xlane.xlu0 %3436
    %v3438 = vmul.f32 %v3434, %v1438
    %v3439 = vmul.f32 %v3437, %v1438
    %v3440 = vsub.f32 %v3426, %v3438
    %v3441 = vsub.f32 %v3427, %v3439
    %v3442 = vmul.f32 %v3440, %v3440
    %v3443 = vmul.f32 %v3441, %v3441
    %v3444 = vsel %vm80, %v3442, 0.0
    %3445 = vadd.xlane.f32.xlu0 %v3444
    %v3446 = vpop.xlane.xlu0 %3445
    %v3447 = vsel %vm80, %v3443, 0.0
    %3448 = vadd.xlane.f32.xlu0 %v3447
    %v3449 = vpop.xlane.xlu0 %3448
    %v3450 = vmul.f32 %v3446, %v1438
    %v3451 = vmul.f32 %v3449, %v1438
    %v3452 = vadd.f32 %v3450, 1e-12
    %v3453 = vadd.f32 %v3451, 1e-12
    %v3454 = vrsqrt.pop %v3452
    %v3455 = vrsqrt.pop %v3453
    %v3456 = vmul.f32 %v3440, %v3454
    %v3457 = vmul.f32 %v3441, %v3455
    %v3459 = vlaneseq
    %v3460 = vshrl.u32 %v3459, 7
    %v3461 = vsub.s32 0, %v3460
    %v3462 = vrot.slane %v3429, %v3461
    %v3464 = vmul.f32 %v3456, %v3462
    %v3465 = vmul.f32 %v3457, %v3462
    %v3467 = vlaneseq
    %v3468 = vshrl.u32 %v3467, 7
    %v3469 = vsub.s32 0, %v3468
    %v3470 = vrot.slane %v3431, %v3469
    %v3472 = vadd.f32 %v3464, %v3470
    %v3473 = vadd.f32 %v3465, %v3470
    %3474 = vst.msk [vmem:[#allocation2] sm:$0xff] %vm80, %v3472
    %3475 = vst.msk [vmem:[#allocation2 + $0x8] sm:$0xff] %vm80, %v3473
    // Predicated region
    $region74: #{tpu_custom_call.1} parent=1 // pred_check
      _
    $region75: #{tpu_custom_call.1} parent=1 // pred_check_branch
      %3477 = sbr.rel (0) target = $region77
    $region76: #{tpu_custom_call.1} parent=1 // pred_region
      %s3479 = ssub.s32 256, 256
      %3480 = vsyncadd [#allocation3], %s3479
      %s3481 = sshll.u32 [#allocation2], 4
      %s3482 = int_to_ptr.vmem [resolvable:$true] %s3481
      %3487 = dma.vmem_to_hbm [thread:$0]  %s3482, 256, %s18, [#allocation3], 128, 128, 8
    $region77: #{tpu_custom_call.1} parent=1 // pred_fallthru
      _
    // Predicated region
    $region78: #{tpu_custom_call.1} parent=1 // pred_check
      _
    $region79: #{tpu_custom_call.1} parent=1 // pred_check_branch
      %3489 = sbr.rel (0) target = $region81
    $region80: #{tpu_custom_call.1} parent=1 // pred_region
      %s3491 = ssub.s32 1024, 1024
      %3492 = vsyncadd [#allocation5], %s3491
      %s3493 = sshll.u32 [#allocation4], 4
      %s3494 = int_to_ptr.vmem [resolvable:$true] %s3493
      %3499 = dma.vmem_to_hbm [thread:$0]  %s3494, 1024, %s19, [#allocation5], 128, 128, 8
    $region81: #{tpu_custom_call.1} parent=1 // pred_fallthru
      _
    // Predicated region
    $region82: #{tpu_custom_call.1} parent=1 // pred_check
      _
    $region83: #{tpu_custom_call.1} parent=1 // pred_check_branch
      %3501 = sbr.rel (0) target = $region85
    $region84: #{tpu_custom_call.1} parent=1 // pred_region
      %3502 = dma.done [#allocation3], 256
    $region85: #{tpu_custom_call.1} parent=1 // pred_fallthru
      _
    // Predicated region
    $region86: #{tpu_custom_call.1} parent=1 // pred_check
      _
    $region87: #{tpu_custom_call.1} parent=1 // pred_check_branch
      %3504 = sbr.rel (0) target = $region89
    $region88: #{tpu_custom_call.1} parent=1 // pred_region
      %3505 = dma.done [#allocation5], 1024
    $region89: #{tpu_custom_call.1} parent=1 // pred_fallthru
      _
    %3506 = vsyncpa [#allocation3], 1
    %3507 = vsyncpa [#allocation5], 1

</llo_original>
